<compile_context>
chip_gen: v7x
topology: tpu7x:2x2x1
jax: 0.10.0
libtpu: 0.0.40
codegen_flags: <defaults>
</compile_context>

<pallas_src>
import functools

import jax
import jax.numpy as jnp
from jax import lax
from jax.experimental import pallas as pl
from jax.experimental.pallas import tpu as pltpu


# ---------------------------------------------------------------------------
# Fused Pallas kernel (single invocation, whole batch, node-last layout)
# ---------------------------------------------------------------------------
def _fused_cell_kernel(inp_g_ref, ux_ref, usx_ref, st_ref, supT_ref,
                       pg_ref, bgT_ref, pux_ref, pus_ref, buT_ref, eT_ref,
                       out_ref, *, link_len, hidden, embed_dim, batch):
    n = out_ref.shape[-1]
    f32 = jnp.float32
    eT = eT_ref[...]                      # (D, N)  node embeddings, node-last
    e_b = eT[:, None, :]                  # (D, 1, N) sublane-broadcast helper
    bgT = bgT_ref[...]                    # (2H, N)
    buT = buT_ref[...]                    # (H, N)

    for b in range(batch):                # tiny static unroll (B is small)
        # ---------------- gate GCN: z_r = sigmoid(...) ----------------
        xgT = inp_g_ref[b]                # (Ci, N) = (cat(x, state) + extras)^T
        qg = jnp.zeros((embed_dim * 2 * hidden, n), f32)
        for k in range(link_len):         # static Chebyshev-hop unroll
            hop = jnp.dot(xgT, supT_ref[k], preferred_element_type=f32)     # (Ci, N)  MXU
            qg = qg + jnp.dot(pg_ref[k], hop, preferred_element_type=f32)   # (D*2H, N) MXU
        # per-node embedding weighting: reduce over the leading (vreg) axis
        gT = jnp.sum(qg.reshape(embed_dim, 2 * hidden, n) * e_b, axis=0) + bgT
        zrT = jax.nn.sigmoid(gT)          # (2H, N)
        zT = zrT[:hidden, :]              # z  (first H output channels)
        rT = zrT[hidden:, :]              # r  (last H output channels)

        # ------ candidate GCN on cat(x, z*state) via split weights ------
        stT = st_ref[b]                   # (H, N)  state^T
        usT = zT * stT + usx_ref[b]       # state half of the candidate input
        uxT = ux_ref[b]                   # (Di, N) x half (precomputed)
        qu = jnp.zeros((embed_dim * hidden, n), f32)
        for k in range(link_len):
            hx = jnp.dot(uxT, supT_ref[k], preferred_element_type=f32)      # (Di, N)
            hs = jnp.dot(usT, supT_ref[k], preferred_element_type=f32)      # (H, N)
            qu = qu + jnp.dot(pux_ref[k], hx, preferred_element_type=f32)   # (D*H, N)
            qu = qu + jnp.dot(pus_ref[k], hs, preferred_element_type=f32)
        uT = jnp.sum(qu.reshape(embed_dim, hidden, n) * e_b, axis=0) + buT
        hcT = jnp.tanh(uT)

        # ---------------- fused GRU combine, node-last store ------------
        out_ref[b] = rT * stT + (1.0 - rT) * hcT


# ---------------------------------------------------------------------------
# Plain-JAX glue (small setup: ZFC conv scale, supports, window/Hodge streams)
# ---------------------------------------------------------------------------
def _zfc_cnn_scale(zfc_img, conv_w):
    # 3x3 single-channel conv over the ZFC filtration image -> scalar scale.
    img = zfc_img[None, None, :, :]                       # NCHW (1,1,P,P)
    k = conv_w[None, None, :, :]                          # OIHW (1,1,3,3)
    out = lax.conv_general_dilated(
        img, k, window_strides=(1, 1), padding="SAME",
        dimension_numbers=("NCHW", "OIHW", "NCHW"))
    return jax.nn.sigmoid(jnp.mean(jax.nn.relu(out)))


def _build_supports(node_emb, fixed_adj, adj, stay_cost, jump_cost, zfc_scale, link_len):
    n = node_emb.shape[0]
    s_adapt = jax.nn.softmax(jax.nn.relu(node_emb @ node_emb.T), axis=1)
    s = s_adapt + zfc_scale * (stay_cost * fixed_adj + jump_cost * adj)
    support_set = [jnp.eye(n, dtype=jnp.float32), s]
    for _ in range(2, link_len):
        support_set.append(2.0 * s @ support_set[-1] - support_set[-2])
    return jnp.stack(support_set[:link_len], axis=0)      # (K, N, N)


def _build_extra(x_full, node_emb, hodge_l, x_e_window, incidence, p):
    # temporal window transform + Hodge edge stream -> node features (B, N, Ci)
    ww = jnp.einsum("nd,dwi->nwi", node_emb, p["weights_window"])     # (N, W, Ci)
    x_w = jnp.einsum("bwni,nwi->bni", x_full, ww)                     # (B, N, Ci)
    x_e = jnp.einsum("ef,bwf->bwe", hodge_l, x_e_window)              # (B, W, E)
    x_n = jnp.einsum("ne,bwe->bn", jnp.abs(incidence), x_e) / x_e_window.shape[1]
    x_h = x_n[:, :, None] * p["weights_hodge"][None, None, :]         # (B, N, Ci)
    return x_w + x_h


def zfcshgcn_cnn_cell_forward(params, x, state, x_full, node_embeddings, fixed_adj,
                              adj, stay_cost, jump_cost, ZFC, hodge_Laplacian,
                              x_e_window, incidence_matrix, *, link_len):
    B, N, Di = x.shape
    H = state.shape[-1]
    Ci = Di + H
    D = node_embeddings.shape[-1]

    # --- tiny scalar / support setup stays in XLA (shared by both GCNs) ---
    zfc_scale = _zfc_cnn_scale(ZFC, params["zfc_conv_w"])
    supports = _build_supports(node_embeddings, fixed_adj, adj,
                               stay_cost, jump_cost, zfc_scale, link_len)
    supT = jnp.transpose(supports, (0, 2, 1))                         # (K, N, N) = S_k^T

    extra_g = _build_extra(x_full, node_embeddings, hodge_Laplacian,
                           x_e_window, incidence_matrix, params["gate"])
    extra_u = _build_extra(x_full, node_embeddings, hodge_Laplacian,
                           x_e_window, incidence_matrix, params["update"])

    # --- node-last kernel inputs ---
    inp_gT = jnp.transpose(jnp.concatenate([x, state], -1) + extra_g, (0, 2, 1))  # (B, Ci, N)
    uxT = jnp.transpose(x + extra_u[..., :Di], (0, 2, 1))                         # (B, Di, N)
    usxT = jnp.transpose(extra_u[..., Di:], (0, 2, 1))                            # (B, H, N)
    stT = jnp.transpose(state, (0, 2, 1))                                         # (B, H, N)

    # factored adaptive weights: p[k, d*Co + o, i] = weights_pool[d, k, i, o]
    pg = jnp.transpose(params["gate"]["weights_pool"], (1, 0, 3, 2)).reshape(
        link_len, D * 2 * H, Ci)
    pu = jnp.transpose(params["update"]["weights_pool"], (1, 0, 3, 2)).reshape(
        link_len, D * H, Ci)
    pux, pus = pu[..., :Di], pu[..., Di:]                  # split: x-part / state-part
    bgT = (node_embeddings @ params["gate"]["bias_pool"]).T           # (2H, N)
    buT = (node_embeddings @ params["update"]["bias_pool"]).T         # (H, N)
    eT = node_embeddings.T                                            # (D, N)

    kern = functools.partial(_fused_cell_kernel, link_len=link_len, hidden=H,
                             embed_dim=D, batch=B)
    vspec = pl.BlockSpec(memory_space=pltpu.MemorySpace.VMEM)  # whole array in VMEM
    hT = pl.pallas_call(
        kern,
        out_shape=jax.ShapeDtypeStruct((B, H, N), jnp.float32),       # node-last output
        in_specs=[vspec] * 11,
        out_specs=vspec,
    )(inp_gT, uxT, usxT, stT, supT, pg, bgT, pux, pus, buT, eT)
    return jnp.transpose(hT, (0, 2, 1))                               # (B, N, H)


# ---------------------------------------------------------------------------
# Pure-JAX reference of the same (reconstructed) cell math — for validation
# ---------------------------------------------------------------------------
def _reference_forward(params, x, state, x_full, node_embeddings, fixed_adj, adj,
                       stay_cost, jump_cost, ZFC, hodge_Laplacian, x_e_window,
                       incidence_matrix, *, link_len):
    hp = jax.lax.Precision.HIGHEST
    zfc_scale = _zfc_cnn_scale(ZFC, params["zfc_conv_w"])
    supports = _build_supports(node_embeddings, fixed_adj, adj,
                               stay_cost, jump_cost, zfc_scale, link_len)

    def gcn(x_comb, p):
        w = jnp.einsum("nd,dkio->nkio", node_embeddings, p["weights_pool"],
                       precision=hp)                                   # (N, K, Ci, Co)
        b = node_embeddings @ p["bias_pool"]                           # (N, Co)
        xg = jnp.einsum("knm,bmi->bkni", supports, x_comb, precision=hp)
        return jnp.einsum("bkni,nkio->bno", xg, w, precision=hp) + b

    eg = _build_extra(x_full, node_embeddings, hodge_Laplacian, x_e_window,
                      incidence_matrix, params["gate"])
    eu = _build_extra(x_full, node_embeddings, hodge_Laplacian, x_e_window,
                      incidence_matrix, params["update"])
    zr = jax.nn.sigmoid(gcn(jnp.concatenate([x, state], -1) + eg, params["gate"]))
    z, r = jnp.split(zr, 2, axis=-1)
    hc = jnp.tanh(gcn(jnp.concatenate([x, z * state], -1) + eu, params["update"]))
    return r * state + (1.0 - r) * hc


# ---------------------------------------------------------------------------
# Deterministic parameter init
# ---------------------------------------------------------------------------
def init_gcn_params(key, dim_in_g, dim_out_g, window_len, link_len, embed_dim):
    ks = jax.random.split(key, 4)
    s = 0.1
    return dict(
        weights_pool=s * jax.random.normal(ks[0], (embed_dim, link_len, dim_in_g, dim_out_g), jnp.float32),
        bias_pool=s * jax.random.normal(ks[1], (embed_dim, dim_out_g), jnp.float32),
        weights_window=s * jax.random.normal(ks[2], (embed_dim, window_len, dim_in_g), jnp.float32),
        weights_hodge=s * jax.random.normal(ks[3], (dim_in_g,), jnp.float32),
    )


if __name__ == "__main__":
    B, N, E = 2, 16, 24
    dim_in, hidden = 2, 8
    window_len, link_len, embed_dim = 4, 3, 8
    P = 8  # ZFC filtration-image resolution

    key = jax.random.PRNGKey(0)
    keys = jax.random.split(key, 16)

    params = {
        "gate": init_gcn_params(keys[0], dim_in + hidden, 2 * hidden,
                                window_len, link_len, embed_dim),
        "update": init_gcn_params(keys[1], dim_in + hidden, hidden,
                                  window_len, link_len, embed_dim),
        "zfc_conv_w": 0.1 * jax.random.normal(keys[2], (3, 3), jnp.float32),
    }

    x = jax.random.normal(keys[3], (B, N, dim_in), jnp.float32)
    state = 0.1 * jax.random.normal(keys[4], (B, N, hidden), jnp.float32)
    x_full = jax.random.normal(keys[5], (B, window_len, N, dim_in + hidden), jnp.float32)
    node_embeddings = jax.random.normal(keys[6], (N, embed_dim), jnp.float32)
    fixed_adj = jax.nn.softmax(jax.random.normal(keys[7], (N, N), jnp.float32), axis=1)
    adj = jax.nn.softmax(jax.random.normal(keys[8], (N, N), jnp.float32), axis=1)
    stay_cost = jnp.float32(0.7)
    jump_cost = jnp.float32(0.3)
    ZFC = jax.random.uniform(keys[9], (P, P), jnp.float32)
    hodge_Laplacian = 0.1 * jax.random.normal(keys[10], (E, E), jnp.float32)
    x_e_window = jax.random.normal(keys[11], (B, window_len, E), jnp.float32)
    incidence_matrix = jnp.sign(jax.random.normal(keys[12], (N, E), jnp.float32))

    args = (params, x, state, x_full, node_embeddings, fixed_adj, adj,
            stay_cost, jump_cost, ZFC, hodge_Laplacian, x_e_window, incidence_matrix)

    fwd = jax.jit(functools.partial(zfcshgcn_cnn_cell_forward, link_len=link_len))
    h = fwd(*args)
    jax.block_until_ready(h)
    assert h.shape == (B, N, hidden) and h.dtype == jnp.float32

    # validate the fused kernel against the plain-JAX reference of the same math
    href = jax.jit(functools.partial(_reference_forward, link_len=link_len))(*args)
    err = float(jnp.max(jnp.abs(h - href)))
    assert err < 5e-2, f"kernel vs reference mismatch: {err}"

    print("KERNEL_OK")
</pallas_src>

<mosaic_0001>
module attributes {stable_mosaic.version = 11 : i64} {
  func.func @_fused_cell_kernel(%arg0: memref<2x10x16xf32, #tpu.memory_space<vmem>>, %arg1: memref<2x2x16xf32, #tpu.memory_space<vmem>>, %arg2: memref<2x8x16xf32, #tpu.memory_space<vmem>>, %arg3: memref<2x8x16xf32, #tpu.memory_space<vmem>>, %arg4: memref<3x16x16xf32, #tpu.memory_space<vmem>>, %arg5: memref<3x128x10xf32, #tpu.memory_space<vmem>>, %arg6: memref<16x16xf32, #tpu.memory_space<vmem>>, %arg7: memref<3x64x2xf32, #tpu.memory_space<vmem>>, %arg8: memref<3x64x8xf32, #tpu.memory_space<vmem>>, %arg9: memref<8x16xf32, #tpu.memory_space<vmem>>, %arg10: memref<8x16xf32, #tpu.memory_space<vmem>>, %arg11: memref<2x8x16xf32, #tpu.memory_space<vmem>>) attributes {dimension_semantics = [], scalar_prefetch = 0 : i64, scratch_operands = 0 : i64, tpu.core_type = #tpu.core_type<tc>} {
    %c0 = arith.constant 0 : index
    %c0_0 = arith.constant 0 : index
    %0 = vector.load %arg10[%c0, %c0_0] : memref<8x16xf32, #tpu.memory_space<vmem>>, vector<8x16xf32>
    %1 = vector.shape_cast %0 : vector<8x16xf32> to vector<8x1x16xf32>
    %c0_1 = arith.constant 0 : index
    %c0_2 = arith.constant 0 : index
    %2 = vector.load %arg6[%c0_1, %c0_2] : memref<16x16xf32, #tpu.memory_space<vmem>>, vector<16x16xf32>
    %c0_3 = arith.constant 0 : index
    %c0_4 = arith.constant 0 : index
    %3 = vector.load %arg9[%c0_3, %c0_4] : memref<8x16xf32, #tpu.memory_space<vmem>>, vector<8x16xf32>
    %c0_5 = arith.constant 0 : index
    %c0_6 = arith.constant 0 : index
    %c0_7 = arith.constant 0 : index
    %4 = vector.load %arg0[%c0_5, %c0_6, %c0_7] : memref<2x10x16xf32, #tpu.memory_space<vmem>>, vector<1x10x16xf32>
    %5 = vector.shape_cast %4 : vector<1x10x16xf32> to vector<10x16xf32>
    %cst = arith.constant 0.000000e+00 : f32
    %6 = vector.broadcast %cst : f32 to vector<128x16xf32>
    %c0_8 = arith.constant 0 : index
    %c0_9 = arith.constant 0 : index
    %c0_10 = arith.constant 0 : index
    %7 = vector.load %arg4[%c0_8, %c0_9, %c0_10] : memref<3x16x16xf32, #tpu.memory_space<vmem>>, vector<1x16x16xf32>
    %8 = vector.shape_cast %7 : vector<1x16x16xf32> to vector<16x16xf32>
    %cst_11 = arith.constant dense<0.000000e+00> : vector<10x16xf32>
    %9 = tpu.matmul %5, %8, %cst_11 {dimension_numbers = #tpu.dot_dimension_numbers<[1], [0], [0], [1], [0, 0, 1, 1], [], []>} : vector<10x16xf32>, vector<16x16xf32>, vector<10x16xf32> -> vector<10x16xf32>
    %c0_12 = arith.constant 0 : index
    %c0_13 = arith.constant 0 : index
    %c0_14 = arith.constant 0 : index
    %10 = vector.load %arg5[%c0_12, %c0_13, %c0_14] : memref<3x128x10xf32, #tpu.memory_space<vmem>>, vector<1x128x10xf32>
    %11 = vector.shape_cast %10 : vector<1x128x10xf32> to vector<128x10xf32>
    %cst_15 = arith.constant dense<0.000000e+00> : vector<128x16xf32>
    %12 = tpu.matmul %11, %9, %cst_15 {dimension_numbers = #tpu.dot_dimension_numbers<[1], [0], [0], [1], [0, 0, 1, 1], [], []>} : vector<128x10xf32>, vector<10x16xf32>, vector<128x16xf32> -> vector<128x16xf32>
    %13 = arith.addf %6, %12 : vector<128x16xf32>
    %c1 = arith.constant 1 : index
    %c0_16 = arith.constant 0 : index
    %c0_17 = arith.constant 0 : index
    %14 = vector.load %arg4[%c1, %c0_16, %c0_17] : memref<3x16x16xf32, #tpu.memory_space<vmem>>, vector<1x16x16xf32>
    %15 = vector.shape_cast %14 : vector<1x16x16xf32> to vector<16x16xf32>
    %cst_18 = arith.constant dense<0.000000e+00> : vector<10x16xf32>
    %16 = tpu.matmul %5, %15, %cst_18 {dimension_numbers = #tpu.dot_dimension_numbers<[1], [0], [0], [1], [0, 0, 1, 1], [], []>} : vector<10x16xf32>, vector<16x16xf32>, vector<10x16xf32> -> vector<10x16xf32>
    %c1_19 = arith.constant 1 : index
    %c0_20 = arith.constant 0 : index
    %c0_21 = arith.constant 0 : index
    %17 = vector.load %arg5[%c1_19, %c0_20, %c0_21] : memref<3x128x10xf32, #tpu.memory_space<vmem>>, vector<1x128x10xf32>
    %18 = vector.shape_cast %17 : vector<1x128x10xf32> to vector<128x10xf32>
    %cst_22 = arith.constant dense<0.000000e+00> : vector<128x16xf32>
    %19 = tpu.matmul %18, %16, %cst_22 {dimension_numbers = #tpu.dot_dimension_numbers<[1], [0], [0], [1], [0, 0, 1, 1], [], []>} : vector<128x10xf32>, vector<10x16xf32>, vector<128x16xf32> -> vector<128x16xf32>
    %20 = arith.addf %13, %19 : vector<128x16xf32>
    %c2 = arith.constant 2 : index
    %c0_23 = arith.constant 0 : index
    %c0_24 = arith.constant 0 : index
    %21 = vector.load %arg4[%c2, %c0_23, %c0_24] : memref<3x16x16xf32, #tpu.memory_space<vmem>>, vector<1x16x16xf32>
    %22 = vector.shape_cast %21 : vector<1x16x16xf32> to vector<16x16xf32>
    %cst_25 = arith.constant dense<0.000000e+00> : vector<10x16xf32>
    %23 = tpu.matmul %5, %22, %cst_25 {dimension_numbers = #tpu.dot_dimension_numbers<[1], [0], [0], [1], [0, 0, 1, 1], [], []>} : vector<10x16xf32>, vector<16x16xf32>, vector<10x16xf32> -> vector<10x16xf32>
    %c2_26 = arith.constant 2 : index
    %c0_27 = arith.constant 0 : index
    %c0_28 = arith.constant 0 : index
    %24 = vector.load %arg5[%c2_26, %c0_27, %c0_28] : memref<3x128x10xf32, #tpu.memory_space<vmem>>, vector<1x128x10xf32>
    %25 = vector.shape_cast %24 : vector<1x128x10xf32> to vector<128x10xf32>
    %cst_29 = arith.constant dense<0.000000e+00> : vector<128x16xf32>
    %26 = tpu.matmul %25, %23, %cst_29 {dimension_numbers = #tpu.dot_dimension_numbers<[1], [0], [0], [1], [0, 0, 1, 1], [], []>} : vector<128x10xf32>, vector<10x16xf32>, vector<128x16xf32> -> vector<128x16xf32>
    %27 = arith.addf %20, %26 : vector<128x16xf32>
    %28 = vector.shape_cast %27 : vector<128x16xf32> to vector<8x16x16xf32>
    %29 = vector.broadcast %1 : vector<8x1x16xf32> to vector<8x16x16xf32>
    %30 = arith.mulf %28, %29 : vector<8x16x16xf32>
    %cst_30 = arith.constant dense<0.000000e+00> : vector<16x16xf32>
    %31 = vector.multi_reduction <add>, %30, %cst_30 [0] : vector<8x16x16xf32> to vector<16x16xf32>
    %32 = arith.addf %31, %2 : vector<16x16xf32>
    %33 = arith.negf %32 : vector<16x16xf32>
    %34 = math.exp %33 : vector<16x16xf32>
    %cst_31 = arith.constant 1.000000e+00 : f32
    %35 = vector.broadcast %cst_31 : f32 to vector<16x16xf32>
    %36 = arith.addf %35, %34 : vector<16x16xf32>
    %37 = arith.divf %35, %36 : vector<16x16xf32>
    %38 = vector.extract_strided_slice %37 {offsets = [0, 0], sizes = [8, 16], strides = [1, 1]} : vector<16x16xf32> to vector<8x16xf32>
    %39 = vector.extract_strided_slice %37 {offsets = [8, 0], sizes = [8, 16], strides = [1, 1]} : vector<16x16xf32> to vector<8x16xf32>
    %c0_32 = arith.constant 0 : index
    %c0_33 = arith.constant 0 : index
    %c0_34 = arith.constant 0 : index
    %40 = vector.load %arg3[%c0_32, %c0_33, %c0_34] : memref<2x8x16xf32, #tpu.memory_space<vmem>>, vector<1x8x16xf32>
    %41 = vector.shape_cast %40 : vector<1x8x16xf32> to vector<8x16xf32>
    %42 = arith.mulf %38, %41 : vector<8x16xf32>
    %c0_35 = arith.constant 0 : index
    %c0_36 = arith.constant 0 : index
    %c0_37 = arith.constant 0 : index
    %43 = vector.load %arg2[%c0_35, %c0_36, %c0_37] : memref<2x8x16xf32, #tpu.memory_space<vmem>>, vector<1x8x16xf32>
    %44 = vector.shape_cast %43 : vector<1x8x16xf32> to vector<8x16xf32>
    %45 = arith.addf %42, %44 : vector<8x16xf32>
    %c0_38 = arith.constant 0 : index
    %c0_39 = arith.constant 0 : index
    %c0_40 = arith.constant 0 : index
    %46 = vector.load %arg1[%c0_38, %c0_39, %c0_40] : memref<2x2x16xf32, #tpu.memory_space<vmem>>, vector<1x2x16xf32>
    %47 = vector.shape_cast %46 : vector<1x2x16xf32> to vector<2x16xf32>
    %cst_41 = arith.constant 0.000000e+00 : f32
    %48 = vector.broadcast %cst_41 : f32 to vector<64x16xf32>
    %c0_42 = arith.constant 0 : index
    %c0_43 = arith.constant 0 : index
    %c0_44 = arith.constant 0 : index
    %49 = vector.load %arg4[%c0_42, %c0_43, %c0_44] : memref<3x16x16xf32, #tpu.memory_space<vmem>>, vector<1x16x16xf32>
    %50 = vector.shape_cast %49 : vector<1x16x16xf32> to vector<16x16xf32>
    %cst_45 = arith.constant dense<0.000000e+00> : vector<2x16xf32>
    %51 = tpu.matmul %47, %50, %cst_45 {dimension_numbers = #tpu.dot_dimension_numbers<[1], [0], [0], [1], [0, 0, 1, 1], [], []>} : vector<2x16xf32>, vector<16x16xf32>, vector<2x16xf32> -> vector<2x16xf32>
    %c0_46 = arith.constant 0 : index
    %c0_47 = arith.constant 0 : index
    %c0_48 = arith.constant 0 : index
    %52 = vector.load %arg4[%c0_46, %c0_47, %c0_48] : memref<3x16x16xf32, #tpu.memory_space<vmem>>, vector<1x16x16xf32>
    %53 = vector.shape_cast %52 : vector<1x16x16xf32> to vector<16x16xf32>
    %cst_49 = arith.constant dense<0.000000e+00> : vector<8x16xf32>
    %54 = tpu.matmul %45, %53, %cst_49 {dimension_numbers = #tpu.dot_dimension_numbers<[1], [0], [0], [1], [0, 0, 1, 1], [], []>} : vector<8x16xf32>, vector<16x16xf32>, vector<8x16xf32> -> vector<8x16xf32>
    %c0_50 = arith.constant 0 : index
    %c0_51 = arith.constant 0 : index
    %c0_52 = arith.constant 0 : index
    %55 = vector.load %arg7[%c0_50, %c0_51, %c0_52] : memref<3x64x2xf32, #tpu.memory_space<vmem>>, vector<1x64x2xf32>
    %56 = vector.shape_cast %55 : vector<1x64x2xf32> to vector<64x2xf32>
    %cst_53 = arith.constant dense<0.000000e+00> : vector<64x16xf32>
    %57 = tpu.matmul %56, %51, %cst_53 {dimension_numbers = #tpu.dot_dimension_numbers<[1], [0], [0], [1], [0, 0, 1, 1], [], []>} : vector<64x2xf32>, vector<2x16xf32>, vector<64x16xf32> -> vector<64x16xf32>
    %58 = arith.addf %48, %57 : vector<64x16xf32>
    %c0_54 = arith.constant 0 : index
    %c0_55 = arith.constant 0 : index
    %c0_56 = arith.constant 0 : index
    %59 = vector.load %arg8[%c0_54, %c0_55, %c0_56] : memref<3x64x8xf32, #tpu.memory_space<vmem>>, vector<1x64x8xf32>
    %60 = vector.shape_cast %59 : vector<1x64x8xf32> to vector<64x8xf32>
    %cst_57 = arith.constant dense<0.000000e+00> : vector<64x16xf32>
    %61 = tpu.matmul %60, %54, %cst_57 {dimension_numbers = #tpu.dot_dimension_numbers<[1], [0], [0], [1], [0, 0, 1, 1], [], []>} : vector<64x8xf32>, vector<8x16xf32>, vector<64x16xf32> -> vector<64x16xf32>
    %62 = arith.addf %58, %61 : vector<64x16xf32>
    %c1_58 = arith.constant 1 : index
    %c0_59 = arith.constant 0 : index
    %c0_60 = arith.constant 0 : index
    %63 = vector.load %arg4[%c1_58, %c0_59, %c0_60] : memref<3x16x16xf32, #tpu.memory_space<vmem>>, vector<1x16x16xf32>
    %64 = vector.shape_cast %63 : vector<1x16x16xf32> to vector<16x16xf32>
    %cst_61 = arith.constant dense<0.000000e+00> : vector<2x16xf32>
    %65 = tpu.matmul %47, %64, %cst_61 {dimension_numbers = #tpu.dot_dimension_numbers<[1], [0], [0], [1], [0, 0, 1, 1], [], []>} : vector<2x16xf32>, vector<16x16xf32>, vector<2x16xf32> -> vector<2x16xf32>
    %c1_62 = arith.constant 1 : index
    %c0_63 = arith.constant 0 : index
    %c0_64 = arith.constant 0 : index
    %66 = vector.load %arg4[%c1_62, %c0_63, %c0_64] : memref<3x16x16xf32, #tpu.memory_space<vmem>>, vector<1x16x16xf32>
    %67 = vector.shape_cast %66 : vector<1x16x16xf32> to vector<16x16xf32>
    %cst_65 = arith.constant dense<0.000000e+00> : vector<8x16xf32>
    %68 = tpu.matmul %45, %67, %cst_65 {dimension_numbers = #tpu.dot_dimension_numbers<[1], [0], [0], [1], [0, 0, 1, 1], [], []>} : vector<8x16xf32>, vector<16x16xf32>, vector<8x16xf32> -> vector<8x16xf32>
    %c1_66 = arith.constant 1 : index
    %c0_67 = arith.constant 0 : index
    %c0_68 = arith.constant 0 : index
    %69 = vector.load %arg7[%c1_66, %c0_67, %c0_68] : memref<3x64x2xf32, #tpu.memory_space<vmem>>, vector<1x64x2xf32>
    %70 = vector.shape_cast %69 : vector<1x64x2xf32> to vector<64x2xf32>
    %cst_69 = arith.constant dense<0.000000e+00> : vector<64x16xf32>
    %71 = tpu.matmul %70, %65, %cst_69 {dimension_numbers = #tpu.dot_dimension_numbers<[1], [0], [0], [1], [0, 0, 1, 1], [], []>} : vector<64x2xf32>, vector<2x16xf32>, vector<64x16xf32> -> vector<64x16xf32>
    %72 = arith.addf %62, %71 : vector<64x16xf32>
    %c1_70 = arith.constant 1 : index
    %c0_71 = arith.constant 0 : index
    %c0_72 = arith.constant 0 : index
    %73 = vector.load %arg8[%c1_70, %c0_71, %c0_72] : memref<3x64x8xf32, #tpu.memory_space<vmem>>, vector<1x64x8xf32>
    %74 = vector.shape_cast %73 : vector<1x64x8xf32> to vector<64x8xf32>
    %cst_73 = arith.constant dense<0.000000e+00> : vector<64x16xf32>
    %75 = tpu.matmul %74, %68, %cst_73 {dimension_numbers = #tpu.dot_dimension_numbers<[1], [0], [0], [1], [0, 0, 1, 1], [], []>} : vector<64x8xf32>, vector<8x16xf32>, vector<64x16xf32> -> vector<64x16xf32>
    %76 = arith.addf %72, %75 : vector<64x16xf32>
    %c2_74 = arith.constant 2 : index
    %c0_75 = arith.constant 0 : index
    %c0_76 = arith.constant 0 : index
    %77 = vector.load %arg4[%c2_74, %c0_75, %c0_76] : memref<3x16x16xf32, #tpu.memory_space<vmem>>, vector<1x16x16xf32>
    %78 = vector.shape_cast %77 : vector<1x16x16xf32> to vector<16x16xf32>
    %cst_77 = arith.constant dense<0.000000e+00> : vector<2x16xf32>
    %79 = tpu.matmul %47, %78, %cst_77 {dimension_numbers = #tpu.dot_dimension_numbers<[1], [0], [0], [1], [0, 0, 1, 1], [], []>} : vector<2x16xf32>, vector<16x16xf32>, vector<2x16xf32> -> vector<2x16xf32>
    %c2_78 = arith.constant 2 : index
    %c0_79 = arith.constant 0 : index
    %c0_80 = arith.constant 0 : index
    %80 = vector.load %arg4[%c2_78, %c0_79, %c0_80] : memref<3x16x16xf32, #tpu.memory_space<vmem>>, vector<1x16x16xf32>
    %81 = vector.shape_cast %80 : vector<1x16x16xf32> to vector<16x16xf32>
    %cst_81 = arith.constant dense<0.000000e+00> : vector<8x16xf32>
    %82 = tpu.matmul %45, %81, %cst_81 {dimension_numbers = #tpu.dot_dimension_numbers<[1], [0], [0], [1], [0, 0, 1, 1], [], []>} : vector<8x16xf32>, vector<16x16xf32>, vector<8x16xf32> -> vector<8x16xf32>
    %c2_82 = arith.constant 2 : index
    %c0_83 = arith.constant 0 : index
    %c0_84 = arith.constant 0 : index
    %83 = vector.load %arg7[%c2_82, %c0_83, %c0_84] : memref<3x64x2xf32, #tpu.memory_space<vmem>>, vector<1x64x2xf32>
    %84 = vector.shape_cast %83 : vector<1x64x2xf32> to vector<64x2xf32>
    %cst_85 = arith.constant dense<0.000000e+00> : vector<64x16xf32>
    %85 = tpu.matmul %84, %79, %cst_85 {dimension_numbers = #tpu.dot_dimension_numbers<[1], [0], [0], [1], [0, 0, 1, 1], [], []>} : vector<64x2xf32>, vector<2x16xf32>, vector<64x16xf32> -> vector<64x16xf32>
    %86 = arith.addf %76, %85 : vector<64x16xf32>
    %c2_86 = arith.constant 2 : index
    %c0_87 = arith.constant 0 : index
    %c0_88 = arith.constant 0 : index
    %87 = vector.load %arg8[%c2_86, %c0_87, %c0_88] : memref<3x64x8xf32, #tpu.memory_space<vmem>>, vector<1x64x8xf32>
    %88 = vector.shape_cast %87 : vector<1x64x8xf32> to vector<64x8xf32>
    %cst_89 = arith.constant dense<0.000000e+00> : vector<64x16xf32>
    %89 = tpu.matmul %88, %82, %cst_89 {dimension_numbers = #tpu.dot_dimension_numbers<[1], [0], [0], [1], [0, 0, 1, 1], [], []>} : vector<64x8xf32>, vector<8x16xf32>, vector<64x16xf32> -> vector<64x16xf32>
    %90 = arith.addf %86, %89 : vector<64x16xf32>
    %91 = vector.shape_cast %90 : vector<64x16xf32> to vector<8x8x16xf32>
    %92 = vector.broadcast %1 : vector<8x1x16xf32> to vector<8x8x16xf32>
    %93 = arith.mulf %91, %92 : vector<8x8x16xf32>
    %cst_90 = arith.constant dense<0.000000e+00> : vector<8x16xf32>
    %94 = vector.multi_reduction <add>, %93, %cst_90 [0] : vector<8x8x16xf32> to vector<8x16xf32>
    %95 = arith.addf %94, %3 : vector<8x16xf32>
    %96 = math.tanh %95 : vector<8x16xf32>
    %97 = arith.mulf %39, %41 : vector<8x16xf32>
    %cst_91 = arith.constant 1.000000e+00 : f32
    %98 = vector.broadcast %cst_91 : f32 to vector<8x16xf32>
    %99 = arith.subf %98, %39 : vector<8x16xf32>
    %100 = arith.mulf %99, %96 : vector<8x16xf32>
    %101 = arith.addf %97, %100 : vector<8x16xf32>
    %c0_92 = arith.constant 0 : index
    %c0_93 = arith.constant 0 : index
    %c0_94 = arith.constant 0 : index
    %102 = vector.load %arg11[%c0_92, %c0_93, %c0_94] : memref<2x8x16xf32, #tpu.memory_space<vmem>>, vector<1x8x16xf32>
    %103 = vector.shape_cast %102 : vector<1x8x16xf32> to vector<8x16xf32>
    %104 = vector.shape_cast %101 : vector<8x16xf32> to vector<1x8x16xf32>
    tpu.vector_store %arg11[%c0_92, %c0_93, %c0_94], %104 {strides = array<i32>} : memref<2x8x16xf32, #tpu.memory_space<vmem>>, vector<1x8x16xf32>,
    %c1_95 = arith.constant 1 : index
    %c0_96 = arith.constant 0 : index
    %c0_97 = arith.constant 0 : index
    %105 = vector.load %arg0[%c1_95, %c0_96, %c0_97] : memref<2x10x16xf32, #tpu.memory_space<vmem>>, vector<1x10x16xf32>
    %106 = vector.shape_cast %105 : vector<1x10x16xf32> to vector<10x16xf32>
    %cst_98 = arith.constant 0.000000e+00 : f32
    %107 = vector.broadcast %cst_98 : f32 to vector<128x16xf32>
    %c0_99 = arith.constant 0 : index
    %c0_100 = arith.constant 0 : index
    %c0_101 = arith.constant 0 : index
    %108 = vector.load %arg4[%c0_99, %c0_100, %c0_101] : memref<3x16x16xf32, #tpu.memory_space<vmem>>, vector<1x16x16xf32>
    %109 = vector.shape_cast %108 : vector<1x16x16xf32> to vector<16x16xf32>
    %cst_102 = arith.constant dense<0.000000e+00> : vector<10x16xf32>
    %110 = tpu.matmul %106, %109, %cst_102 {dimension_numbers = #tpu.dot_dimension_numbers<[1], [0], [0], [1], [0, 0, 1, 1], [], []>} : vector<10x16xf32>, vector<16x16xf32>, vector<10x16xf32> -> vector<10x16xf32>
    %c0_103 = arith.constant 0 : index
    %c0_104 = arith.constant 0 : index
    %c0_105 = arith.constant 0 : index
    %111 = vector.load %arg5[%c0_103, %c0_104, %c0_105] : memref<3x128x10xf32, #tpu.memory_space<vmem>>, vector<1x128x10xf32>
    %112 = vector.shape_cast %111 : vector<1x128x10xf32> to vector<128x10xf32>
    %cst_106 = arith.constant dense<0.000000e+00> : vector<128x16xf32>
    %113 = tpu.matmul %112, %110, %cst_106 {dimension_numbers = #tpu.dot_dimension_numbers<[1], [0], [0], [1], [0, 0, 1, 1], [], []>} : vector<128x10xf32>, vector<10x16xf32>, vector<128x16xf32> -> vector<128x16xf32>
    %114 = arith.addf %107, %113 : vector<128x16xf32>
    %c1_107 = arith.constant 1 : index
    %c0_108 = arith.constant 0 : index
    %c0_109 = arith.constant 0 : index
    %115 = vector.load %arg4[%c1_107, %c0_108, %c0_109] : memref<3x16x16xf32, #tpu.memory_space<vmem>>, vector<1x16x16xf32>
    %116 = vector.shape_cast %115 : vector<1x16x16xf32> to vector<16x16xf32>
    %cst_110 = arith.constant dense<0.000000e+00> : vector<10x16xf32>
    %117 = tpu.matmul %106, %116, %cst_110 {dimension_numbers = #tpu.dot_dimension_numbers<[1], [0], [0], [1], [0, 0, 1, 1], [], []>} : vector<10x16xf32>, vector<16x16xf32>, vector<10x16xf32> -> vector<10x16xf32>
    %c1_111 = arith.constant 1 : index
    %c0_112 = arith.constant 0 : index
    %c0_113 = arith.constant 0 : index
    %118 = vector.load %arg5[%c1_111, %c0_112, %c0_113] : memref<3x128x10xf32, #tpu.memory_space<vmem>>, vector<1x128x10xf32>
    %119 = vector.shape_cast %118 : vector<1x128x10xf32> to vector<128x10xf32>
    %cst_114 = arith.constant dense<0.000000e+00> : vector<128x16xf32>
    %120 = tpu.matmul %119, %117, %cst_114 {dimension_numbers = #tpu.dot_dimension_numbers<[1], [0], [0], [1], [0, 0, 1, 1], [], []>} : vector<128x10xf32>, vector<10x16xf32>, vector<128x16xf32> -> vector<128x16xf32>
    %121 = arith.addf %114, %120 : vector<128x16xf32>
    %c2_115 = arith.constant 2 : index
    %c0_116 = arith.constant 0 : index
    %c0_117 = arith.constant 0 : index
    %122 = vector.load %arg4[%c2_115, %c0_116, %c0_117] : memref<3x16x16xf32, #tpu.memory_space<vmem>>, vector<1x16x16xf32>
    %123 = vector.shape_cast %122 : vector<1x16x16xf32> to vector<16x16xf32>
    %cst_118 = arith.constant dense<0.000000e+00> : vector<10x16xf32>
    %124 = tpu.matmul %106, %123, %cst_118 {dimension_numbers = #tpu.dot_dimension_numbers<[1], [0], [0], [1], [0, 0, 1, 1], [], []>} : vector<10x16xf32>, vector<16x16xf32>, vector<10x16xf32> -> vector<10x16xf32>
    %c2_119 = arith.constant 2 : index
    %c0_120 = arith.constant 0 : index
    %c0_121 = arith.constant 0 : index
    %125 = vector.load %arg5[%c2_119, %c0_120, %c0_121] : memref<3x128x10xf32, #tpu.memory_space<vmem>>, vector<1x128x10xf32>
    %126 = vector.shape_cast %125 : vector<1x128x10xf32> to vector<128x10xf32>
    %cst_122 = arith.constant dense<0.000000e+00> : vector<128x16xf32>
    %127 = tpu.matmul %126, %124, %cst_122 {dimension_numbers = #tpu.dot_dimension_numbers<[1], [0], [0], [1], [0, 0, 1, 1], [], []>} : vector<128x10xf32>, vector<10x16xf32>, vector<128x16xf32> -> vector<128x16xf32>
    %128 = arith.addf %121, %127 : vector<128x16xf32>
    %129 = vector.shape_cast %128 : vector<128x16xf32> to vector<8x16x16xf32>
    %130 = vector.broadcast %1 : vector<8x1x16xf32> to vector<8x16x16xf32>
    %131 = arith.mulf %129, %130 : vector<8x16x16xf32>
    %cst_123 = arith.constant dense<0.000000e+00> : vector<16x16xf32>
    %132 = vector.multi_reduction <add>, %131, %cst_123 [0] : vector<8x16x16xf32> to vector<16x16xf32>
    %133 = arith.addf %132, %2 : vector<16x16xf32>
    %134 = arith.negf %133 : vector<16x16xf32>
    %135 = math.exp %134 : vector<16x16xf32>
    %cst_124 = arith.constant 1.000000e+00 : f32
    %136 = vector.broadcast %cst_124 : f32 to vector<16x16xf32>
    %137 = arith.addf %136, %135 : vector<16x16xf32>
    %138 = arith.divf %136, %137 : vector<16x16xf32>
    %139 = vector.extract_strided_slice %138 {offsets = [0, 0], sizes = [8, 16], strides = [1, 1]} : vector<16x16xf32> to vector<8x16xf32>
    %140 = vector.extract_strided_slice %138 {offsets = [8, 0], sizes = [8, 16], strides = [1, 1]} : vector<16x16xf32> to vector<8x16xf32>
    %c1_125 = arith.constant 1 : index
    %c0_126 = arith.constant 0 : index
    %c0_127 = arith.constant 0 : index
    %141 = vector.load %arg3[%c1_125, %c0_126, %c0_127] : memref<2x8x16xf32, #tpu.memory_space<vmem>>, vector<1x8x16xf32>
    %142 = vector.shape_cast %141 : vector<1x8x16xf32> to vector<8x16xf32>
    %143 = arith.mulf %139, %142 : vector<8x16xf32>
    %c1_128 = arith.constant 1 : index
    %c0_129 = arith.constant 0 : index
    %c0_130 = arith.constant 0 : index
    %144 = vector.load %arg2[%c1_128, %c0_129, %c0_130] : memref<2x8x16xf32, #tpu.memory_space<vmem>>, vector<1x8x16xf32>
    %145 = vector.shape_cast %144 : vector<1x8x16xf32> to vector<8x16xf32>
    %146 = arith.addf %143, %145 : vector<8x16xf32>
    %c1_131 = arith.constant 1 : index
    %c0_132 = arith.constant 0 : index
    %c0_133 = arith.constant 0 : index
    %147 = vector.load %arg1[%c1_131, %c0_132, %c0_133] : memref<2x2x16xf32, #tpu.memory_space<vmem>>, vector<1x2x16xf32>
    %148 = vector.shape_cast %147 : vector<1x2x16xf32> to vector<2x16xf32>
    %cst_134 = arith.constant 0.000000e+00 : f32
    %149 = vector.broadcast %cst_134 : f32 to vector<64x16xf32>
    %c0_135 = arith.constant 0 : index
    %c0_136 = arith.constant 0 : index
    %c0_137 = arith.constant 0 : index
    %150 = vector.load %arg4[%c0_135, %c0_136, %c0_137] : memref<3x16x16xf32, #tpu.memory_space<vmem>>, vector<1x16x16xf32>
    %151 = vector.shape_cast %150 : vector<1x16x16xf32> to vector<16x16xf32>
    %cst_138 = arith.constant dense<0.000000e+00> : vector<2x16xf32>
    %152 = tpu.matmul %148, %151, %cst_138 {dimension_numbers = #tpu.dot_dimension_numbers<[1], [0], [0], [1], [0, 0, 1, 1], [], []>} : vector<2x16xf32>, vector<16x16xf32>, vector<2x16xf32> -> vector<2x16xf32>
    %c0_139 = arith.constant 0 : index
    %c0_140 = arith.constant 0 : index
    %c0_141 = arith.constant 0 : index
    %153 = vector.load %arg4[%c0_139, %c0_140, %c0_141] : memref<3x16x16xf32, #tpu.memory_space<vmem>>, vector<1x16x16xf32>
    %154 = vector.shape_cast %153 : vector<1x16x16xf32> to vector<16x16xf32>
    %cst_142 = arith.constant dense<0.000000e+00> : vector<8x16xf32>
    %155 = tpu.matmul %146, %154, %cst_142 {dimension_numbers = #tpu.dot_dimension_numbers<[1], [0], [0], [1], [0, 0, 1, 1], [], []>} : vector<8x16xf32>, vector<16x16xf32>, vector<8x16xf32> -> vector<8x16xf32>
    %c0_143 = arith.constant 0 : index
    %c0_144 = arith.constant 0 : index
    %c0_145 = arith.constant 0 : index
    %156 = vector.load %arg7[%c0_143, %c0_144, %c0_145] : memref<3x64x2xf32, #tpu.memory_space<vmem>>, vector<1x64x2xf32>
    %157 = vector.shape_cast %156 : vector<1x64x2xf32> to vector<64x2xf32>
    %cst_146 = arith.constant dense<0.000000e+00> : vector<64x16xf32>
    %158 = tpu.matmul %157, %152, %cst_146 {dimension_numbers = #tpu.dot_dimension_numbers<[1], [0], [0], [1], [0, 0, 1, 1], [], []>} : vector<64x2xf32>, vector<2x16xf32>, vector<64x16xf32> -> vector<64x16xf32>
    %159 = arith.addf %149, %158 : vector<64x16xf32>
    %c0_147 = arith.constant 0 : index
    %c0_148 = arith.constant 0 : index
    %c0_149 = arith.constant 0 : index
    %160 = vector.load %arg8[%c0_147, %c0_148, %c0_149] : memref<3x64x8xf32, #tpu.memory_space<vmem>>, vector<1x64x8xf32>
    %161 = vector.shape_cast %160 : vector<1x64x8xf32> to vector<64x8xf32>
    %cst_150 = arith.constant dense<0.000000e+00> : vector<64x16xf32>
    %162 = tpu.matmul %161, %155, %cst_150 {dimension_numbers = #tpu.dot_dimension_numbers<[1], [0], [0], [1], [0, 0, 1, 1], [], []>} : vector<64x8xf32>, vector<8x16xf32>, vector<64x16xf32> -> vector<64x16xf32>
    %163 = arith.addf %159, %162 : vector<64x16xf32>
    %c1_151 = arith.constant 1 : index
    %c0_152 = arith.constant 0 : index
    %c0_153 = arith.constant 0 : index
    %164 = vector.load %arg4[%c1_151, %c0_152, %c0_153] : memref<3x16x16xf32, #tpu.memory_space<vmem>>, vector<1x16x16xf32>
    %165 = vector.shape_cast %164 : vector<1x16x16xf32> to vector<16x16xf32>
    %cst_154 = arith.constant dense<0.000000e+00> : vector<2x16xf32>
    %166 = tpu.matmul %148, %165, %cst_154 {dimension_numbers = #tpu.dot_dimension_numbers<[1], [0], [0], [1], [0, 0, 1, 1], [], []>} : vector<2x16xf32>, vector<16x16xf32>, vector<2x16xf32> -> vector<2x16xf32>
    %c1_155 = arith.constant 1 : index
    %c0_156 = arith.constant 0 : index
    %c0_157 = arith.constant 0 : index
    %167 = vector.load %arg4[%c1_155, %c0_156, %c0_157] : memref<3x16x16xf32, #tpu.memory_space<vmem>>, vector<1x16x16xf32>
    %168 = vector.shape_cast %167 : vector<1x16x16xf32> to vector<16x16xf32>
    %cst_158 = arith.constant dense<0.000000e+00> : vector<8x16xf32>
    %169 = tpu.matmul %146, %168, %cst_158 {dimension_numbers = #tpu.dot_dimension_numbers<[1], [0], [0], [1], [0, 0, 1, 1], [], []>} : vector<8x16xf32>, vector<16x16xf32>, vector<8x16xf32> -> vector<8x16xf32>
    %c1_159 = arith.constant 1 : index
    %c0_160 = arith.constant 0 : index
    %c0_161 = arith.constant 0 : index
    %170 = vector.load %arg7[%c1_159, %c0_160, %c0_161] : memref<3x64x2xf32, #tpu.memory_space<vmem>>, vector<1x64x2xf32>
    %171 = vector.shape_cast %170 : vector<1x64x2xf32> to vector<64x2xf32>
    %cst_162 = arith.constant dense<0.000000e+00> : vector<64x16xf32>
    %172 = tpu.matmul %171, %166, %cst_162 {dimension_numbers = #tpu.dot_dimension_numbers<[1], [0], [0], [1], [0, 0, 1, 1], [], []>} : vector<64x2xf32>, vector<2x16xf32>, vector<64x16xf32> -> vector<64x16xf32>
    %173 = arith.addf %163, %172 : vector<64x16xf32>
    %c1_163 = arith.constant 1 : index
    %c0_164 = arith.constant 0 : index
    %c0_165 = arith.constant 0 : index
    %174 = vector.load %arg8[%c1_163, %c0_164, %c0_165] : memref<3x64x8xf32, #tpu.memory_space<vmem>>, vector<1x64x8xf32>
    %175 = vector.shape_cast %174 : vector<1x64x8xf32> to vector<64x8xf32>
    %cst_166 = arith.constant dense<0.000000e+00> : vector<64x16xf32>
    %176 = tpu.matmul %175, %169, %cst_166 {dimension_numbers = #tpu.dot_dimension_numbers<[1], [0], [0], [1], [0, 0, 1, 1], [], []>} : vector<64x8xf32>, vector<8x16xf32>, vector<64x16xf32> -> vector<64x16xf32>
    %177 = arith.addf %173, %176 : vector<64x16xf32>
    %c2_167 = arith.constant 2 : index
    %c0_168 = arith.constant 0 : index
    %c0_169 = arith.constant 0 : index
    %178 = vector.load %arg4[%c2_167, %c0_168, %c0_169] : memref<3x16x16xf32, #tpu.memory_space<vmem>>, vector<1x16x16xf32>
    %179 = vector.shape_cast %178 : vector<1x16x16xf32> to vector<16x16xf32>
    %cst_170 = arith.constant dense<0.000000e+00> : vector<2x16xf32>
    %180 = tpu.matmul %148, %179, %cst_170 {dimension_numbers = #tpu.dot_dimension_numbers<[1], [0], [0], [1], [0, 0, 1, 1], [], []>} : vector<2x16xf32>, vector<16x16xf32>, vector<2x16xf32> -> vector<2x16xf32>
    %c2_171 = arith.constant 2 : index
    %c0_172 = arith.constant 0 : index
    %c0_173 = arith.constant 0 : index
    %181 = vector.load %arg4[%c2_171, %c0_172, %c0_173] : memref<3x16x16xf32, #tpu.memory_space<vmem>>, vector<1x16x16xf32>
    %182 = vector.shape_cast %181 : vector<1x16x16xf32> to vector<16x16xf32>
    %cst_174 = arith.constant dense<0.000000e+00> : vector<8x16xf32>
    %183 = tpu.matmul %146, %182, %cst_174 {dimension_numbers = #tpu.dot_dimension_numbers<[1], [0], [0], [1], [0, 0, 1, 1], [], []>} : vector<8x16xf32>, vector<16x16xf32>, vector<8x16xf32> -> vector<8x16xf32>
    %c2_175 = arith.constant 2 : index
    %c0_176 = arith.constant 0 : index
    %c0_177 = arith.constant 0 : index
    %184 = vector.load %arg7[%c2_175, %c0_176, %c0_177] : memref<3x64x2xf32, #tpu.memory_space<vmem>>, vector<1x64x2xf32>
    %185 = vector.shape_cast %184 : vector<1x64x2xf32> to vector<64x2xf32>
    %cst_178 = arith.constant dense<0.000000e+00> : vector<64x16xf32>
    %186 = tpu.matmul %185, %180, %cst_178 {dimension_numbers = #tpu.dot_dimension_numbers<[1], [0], [0], [1], [0, 0, 1, 1], [], []>} : vector<64x2xf32>, vector<2x16xf32>, vector<64x16xf32> -> vector<64x16xf32>
    %187 = arith.addf %177, %186 : vector<64x16xf32>
    %c2_179 = arith.constant 2 : index
    %c0_180 = arith.constant 0 : index
    %c0_181 = arith.constant 0 : index
    %188 = vector.load %arg8[%c2_179, %c0_180, %c0_181] : memref<3x64x8xf32, #tpu.memory_space<vmem>>, vector<1x64x8xf32>
    %189 = vector.shape_cast %188 : vector<1x64x8xf32> to vector<64x8xf32>
    %cst_182 = arith.constant dense<0.000000e+00> : vector<64x16xf32>
    %190 = tpu.matmul %189, %183, %cst_182 {dimension_numbers = #tpu.dot_dimension_numbers<[1], [0], [0], [1], [0, 0, 1, 1], [], []>} : vector<64x8xf32>, vector<8x16xf32>, vector<64x16xf32> -> vector<64x16xf32>
    %191 = arith.addf %187, %190 : vector<64x16xf32>
    %192 = vector.shape_cast %191 : vector<64x16xf32> to vector<8x8x16xf32>
    %193 = vector.broadcast %1 : vector<8x1x16xf32> to vector<8x8x16xf32>
    %194 = arith.mulf %192, %193 : vector<8x8x16xf32>
    %cst_183 = arith.constant dense<0.000000e+00> : vector<8x16xf32>
    %195 = vector.multi_reduction <add>, %194, %cst_183 [0] : vector<8x8x16xf32> to vector<8x16xf32>
    %196 = arith.addf %195, %3 : vector<8x16xf32>
    %197 = math.tanh %196 : vector<8x16xf32>
    %198 = arith.mulf %140, %142 : vector<8x16xf32>
    %cst_184 = arith.constant 1.000000e+00 : f32
    %199 = vector.broadcast %cst_184 : f32 to vector<8x16xf32>
    %200 = arith.subf %199, %140 : vector<8x16xf32>
    %201 = arith.mulf %200, %197 : vector<8x16xf32>
    %202 = arith.addf %198, %201 : vector<8x16xf32>
    %c1_185 = arith.constant 1 : index
    %c0_186 = arith.constant 0 : index
    %c0_187 = arith.constant 0 : index
    %203 = vector.load %arg11[%c1_185, %c0_186, %c0_187] : memref<2x8x16xf32, #tpu.memory_space<vmem>>, vector<1x8x16xf32>
    %204 = vector.shape_cast %203 : vector<1x8x16xf32> to vector<8x16xf32>
    %205 = vector.shape_cast %202 : vector<8x16xf32> to vector<1x8x16xf32>
    tpu.vector_store %arg11[%c1_185, %c0_186, %c0_187], %205 {strides = array<i32>} : memref<2x8x16xf32, #tpu.memory_space<vmem>>, vector<1x8x16xf32>,
    return
  }
}

</mosaic_0001>

<llo_original>
// kernel: zfcshgcn_cnn_cell_forward.1
$region0: #{zfcshgcn_cnn_cell_forward.1}
  #allocation0 [shape = 'u32[]', space=smem, size = 0x4, offset = 0x4, fixed_abs, tag = 'smem constant byte address 0x4 - core index']
  #allocation1 [shape = 'u32[144,128]{1,0:T(1,128)}', space=vmem, size = 0x12000, scoped, tag = 'internal scratch']
  %s0 = inlined_call_operand.vmem [shape: f32[2,10,16], index: 0, kind: input, shape index: {}]
  %s1 = inlined_call_operand.vmem [shape: f32[2,2,16], index: 1, kind: input, shape index: {}]
  %s2 = inlined_call_operand.vmem [shape: f32[2,8,16], index: 2, kind: input, shape index: {}]
  %s3 = inlined_call_operand.vmem [shape: f32[2,8,16], index: 3, kind: input, shape index: {}]
  %s4 = inlined_call_operand.vmem [shape: f32[3,16,16], index: 4, kind: input, shape index: {}]
  %s5 = inlined_call_operand.vmem [shape: f32[3,128,10], index: 5, kind: input, shape index: {}]
  %s6 = inlined_call_operand.vmem [shape: f32[16,16], index: 6, kind: input, shape index: {}]
  %s7 = inlined_call_operand.vmem [shape: f32[3,64,2], index: 7, kind: input, shape index: {}]
  %s8 = inlined_call_operand.vmem [shape: f32[3,64,8], index: 8, kind: input, shape index: {}]
  %s9 = inlined_call_operand.vmem [shape: f32[8,16], index: 9, kind: input, shape index: {}]
  %s10 = inlined_call_operand.vmem [shape: f32[8,16], index: 10, kind: input, shape index: {}]
  %s11 = inlined_call_operand.hbm [shape: f32[2,8,16], index: 11, kind: output, shape index: {}]
  %s12 = sld [smem:[#allocation0]]
  $region54: #{zfcshgcn_cnn_cell_forward.1} parent=0
    _
  %s14 = ssub.s32 1, %s12
  %s15 = scalar_select 0, %s14, %s12
  $region1: #{zfcshgcn_cnn_cell_forward.1} parent=0
    #allocation2 [shape = 'u8[8192]{0}', space=vmem, size = 0x2000, scoped, tag = 'output window, operand 0, single buffered']
    #allocation3 [shape = 's32[1]{0}', space=sflag, size = 0x4, scoped, tag = 'scoped memory for zfcshgcn_cnn_cell_forward.1']
    %16 = vsyncpa [#allocation3], 0
    // Predicated region
    $region2: #{zfcshgcn_cnn_cell_forward.1} parent=1 // pred_check
      _
    $region3: #{zfcshgcn_cnn_cell_forward.1} parent=1 // pred_check_branch
      %18 = sbr.rel (0) target = $region5
    $region4: #{zfcshgcn_cnn_cell_forward.1} parent=1 // pred_region
      _
    $region5: #{zfcshgcn_cnn_cell_forward.1} parent=1 // pred_fallthru
      _
    // Predicated region
    $region6: #{zfcshgcn_cnn_cell_forward.1} parent=1 // pred_check
      _
    $region7: #{zfcshgcn_cnn_cell_forward.1} parent=1 // pred_check_branch
      %20 = sbr.rel (0) target = $region9
    $region8: #{zfcshgcn_cnn_cell_forward.1} parent=1 // pred_region
      _
    $region9: #{zfcshgcn_cnn_cell_forward.1} parent=1 // pred_fallthru
      _
    // Predicated region
    $region10: #{zfcshgcn_cnn_cell_forward.1} parent=1 // pred_check
      _
    $region11: #{zfcshgcn_cnn_cell_forward.1} parent=1 // pred_check_branch
      %22 = sbr.rel (0) target = $region13
    $region12: #{zfcshgcn_cnn_cell_forward.1} parent=1 // pred_region
      _
    $region13: #{zfcshgcn_cnn_cell_forward.1} parent=1 // pred_fallthru
      _
    // Predicated region
    $region14: #{zfcshgcn_cnn_cell_forward.1} parent=1 // pred_check
      _
    $region15: #{zfcshgcn_cnn_cell_forward.1} parent=1 // pred_check_branch
      %24 = sbr.rel (0) target = $region17
    $region16: #{zfcshgcn_cnn_cell_forward.1} parent=1 // pred_region
      _
    $region17: #{zfcshgcn_cnn_cell_forward.1} parent=1 // pred_fallthru
      _
    // Predicated region
    $region18: #{zfcshgcn_cnn_cell_forward.1} parent=1 // pred_check
      _
    $region19: #{zfcshgcn_cnn_cell_forward.1} parent=1 // pred_check_branch
      %26 = sbr.rel (0) target = $region21
    $region20: #{zfcshgcn_cnn_cell_forward.1} parent=1 // pred_region
      _
    $region21: #{zfcshgcn_cnn_cell_forward.1} parent=1 // pred_fallthru
      _
    // Predicated region
    $region22: #{zfcshgcn_cnn_cell_forward.1} parent=1 // pred_check
      _
    $region23: #{zfcshgcn_cnn_cell_forward.1} parent=1 // pred_check_branch
      %28 = sbr.rel (0) target = $region25
    $region24: #{zfcshgcn_cnn_cell_forward.1} parent=1 // pred_region
      _
    $region25: #{zfcshgcn_cnn_cell_forward.1} parent=1 // pred_fallthru
      _
    // Predicated region
    $region26: #{zfcshgcn_cnn_cell_forward.1} parent=1 // pred_check
      _
    $region27: #{zfcshgcn_cnn_cell_forward.1} parent=1 // pred_check_branch
      %30 = sbr.rel (0) target = $region29
    $region28: #{zfcshgcn_cnn_cell_forward.1} parent=1 // pred_region
      _
    $region29: #{zfcshgcn_cnn_cell_forward.1} parent=1 // pred_fallthru
      _
    // Predicated region
    $region30: #{zfcshgcn_cnn_cell_forward.1} parent=1 // pred_check
      _
    $region31: #{zfcshgcn_cnn_cell_forward.1} parent=1 // pred_check_branch
      %32 = sbr.rel (0) target = $region33
    $region32: #{zfcshgcn_cnn_cell_forward.1} parent=1 // pred_region
      _
    $region33: #{zfcshgcn_cnn_cell_forward.1} parent=1 // pred_fallthru
      _
    // Predicated region
    $region34: #{zfcshgcn_cnn_cell_forward.1} parent=1 // pred_check
      _
    $region35: #{zfcshgcn_cnn_cell_forward.1} parent=1 // pred_check_branch
      %34 = sbr.rel (0) target = $region37
    $region36: #{zfcshgcn_cnn_cell_forward.1} parent=1 // pred_region
      _
    $region37: #{zfcshgcn_cnn_cell_forward.1} parent=1 // pred_fallthru
      _
    // Predicated region
    $region38: #{zfcshgcn_cnn_cell_forward.1} parent=1 // pred_check
      _
    $region39: #{zfcshgcn_cnn_cell_forward.1} parent=1 // pred_check_branch
      %36 = sbr.rel (0) target = $region41
    $region40: #{zfcshgcn_cnn_cell_forward.1} parent=1 // pred_region
      _
    $region41: #{zfcshgcn_cnn_cell_forward.1} parent=1 // pred_fallthru
      _
    // Predicated region
    $region42: #{zfcshgcn_cnn_cell_forward.1} parent=1 // pred_check
      _
    $region43: #{zfcshgcn_cnn_cell_forward.1} parent=1 // pred_check_branch
      %38 = sbr.rel (0) target = $region45
    $region44: #{zfcshgcn_cnn_cell_forward.1} parent=1 // pred_region
      _
    $region45: #{zfcshgcn_cnn_cell_forward.1} parent=1 // pred_fallthru
      _
    %v39 = vld [vmem:[%s10] sm:$0xff]
    %v41 = vcombine.high %v39, %v39
    %v43 = vunpack.c.l.s4 1966171168
    %v44 = vunpack.c.0.s8 %v43
    %v45 = vlaneseq
    %v46 = vshrl.u32 %v45, 7
    %v47 = vsub.s32 %v44, %v46
    %v48 = vrot.slane %v39, %v47
    %v50 = vunpack.c.l.s4 1966171168
    %v51 = vunpack.c.0.s8 %v50
    %v52 = vlaneseq
    %v53 = vshrl.u32 %v52, 7
    %v54 = vsub.s32 %v51, %v53
    %v55 = vrot.slane %v41, %v54
    %v56 = vcombine.high %v48, %v48
    %v57 = vcombine.high %v55, %v55
    %v59 = vunpack.c.l.s4 1966171168
    %v60 = vunpack.c.0.s8 %v59
    %v61 = vlaneseq
    %v62 = vshrl.u32 %v61, 7
    %v63 = vsub.s32 %v60, %v62
    %v64 = vrot.slane %v48, %v63
    %v66 = vunpack.c.l.s4 1966171168
    %v67 = vunpack.c.0.s8 %v66
    %v68 = vlaneseq
    %v69 = vshrl.u32 %v68, 7
    %v70 = vsub.s32 %v67, %v69
    %v71 = vrot.slane %v55, %v70
    %v73 = vunpack.c.l.s4 1966171168
    %v74 = vunpack.c.0.s8 %v73
    %v75 = vlaneseq
    %v76 = vshrl.u32 %v75, 7
    %v77 = vsub.s32 %v74, %v76
    %v78 = vrot.slane %v56, %v77
    %v80 = vunpack.c.l.s4 1966171168
    %v81 = vunpack.c.0.s8 %v80
    %v82 = vlaneseq
    %v83 = vshrl.u32 %v82, 7
    %v84 = vsub.s32 %v81, %v83
    %v85 = vrot.slane %v57, %v84
    %v86 = vcombine.high %v64, %v64
    %v87 = vcombine.high %v71, %v71
    %v88 = vcombine.high %v78, %v78
    %v89 = vcombine.high %v85, %v85
    %v90 = vld [vmem:[%s6] sm:$0xff]
    %v91 = vld [vmem:[%s6 + $0x8] sm:$0xff]
    %v92 = vld [vmem:[%s9] sm:$0xff]
    %v93 = vld [vmem:[%s0] sm:$0xff]
    %v94 = vld [vmem:[%s0 + $0x8] sm:$0x3]
    %v95 = vld [vmem:[%s4] sm:$0xff]
    %v96 = vld [vmem:[%s4 + $0x8] sm:$0xff]
    %vm97 = vcmask 130048
    %v99 = vsel %vm97, %v93, 0
    %v102 = vsel %vm97, %v94, 0
    %104 = vmatprep.subr.mxu0 0.0
    %105 = vmatpush1.msra.mxu0 %v95
    %106 = vmatprep.subr.mxu0 0.0
    %107 = vmatpush1.msra.mxu0 %v96
    %108 = vmatprep.subr.mxu0 0.0
    %109 = vmatpush1.msra.mxu0 0.0
    %110 = vmatprep.subr.mxu0 0.0
    %111 = vmatpush1.msra.mxu0 0.0
    %112 = vmatprep.subr.mxu0 0.0
    %113 = vmatpush1.msra.mxu0 0.0
    %114 = vmatprep.subr.mxu0 0.0
    %115 = vmatpush1.msra.mxu0 0.0
    %116 = vmatprep.subr.mxu0 0.0
    %117 = vmatpush1.msra.mxu0 0.0
    %118 = vmatprep.subr.mxu0 0.0
    %119 = vmatpush1.msra.mxu0 0.0
    %120 = vmatprep.subr.mxu0 0.0
    %121 = vmatpush1.msra.mxu0 0.0
    %122 = vmatprep.subr.mxu0 0.0
    %123 = vmatpush1.msra.mxu0 0.0
    %124 = vmatprep.subr.mxu0 0.0
    %125 = vmatpush1.msra.mxu0 0.0
    %126 = vmatprep.subr.mxu0 0.0
    %127 = vmatpush1.msra.mxu0 0.0
    %128 = vmatprep.subr.mxu0 0.0
    %129 = vmatpush1.msra.mxu0 0.0
    %130 = vmatprep.subr.mxu0 0.0
    %131 = vmatpush1.msra.mxu0 0.0
    %132 = vmatprep.subr.mxu0 0.0
    %133 = vmatpush1.msra.mxu0 0.0
    %134 = vmatprep.subr.mxu0 0.0
    %135 = vmatpush1.msra.mxu0 0.0
    %136 = vmatprep.subr.mxu0 0.0
    %137 = vmatpush1.msra.mxu0 0.0
    %138 = vmatprep.subr.mxu0 0.0
    %139 = vmatpush1.msra.mxu0 0.0
    %140 = vmatprep.subr.mxu0 0.0
    %141 = vmatpush1.msra.mxu0 0.0
    %142 = vmatprep.subr.mxu0 0.0
    %143 = vmatpush1.msra.mxu0 0.0
    %144 = vmatprep.subr.mxu0 0.0
    %145 = vmatpush1.msra.mxu0 0.0
    %146 = vmatprep.subr.mxu0 0.0
    %147 = vmatpush1.msra.mxu0 0.0
    %148 = vmatprep.subr.mxu0 0.0
    %149 = vmatpush1.msra.mxu0 0.0
    %150 = vmatprep.subr.mxu0 0.0
    %151 = vmatpush1.msra.mxu0 0.0
    %152 = vmatprep.subr.mxu0 0.0
    %153 = vmatpush1.msra.mxu0 0.0
    %154 = vmatprep.subr.mxu0 0.0
    %155 = vmatpush1.msra.mxu0 0.0
    %156 = vmatprep.subr.mxu0 0.0
    %157 = vmatpush1.msra.mxu0 0.0
    %158 = vmatprep.subr.mxu0 0.0
    %159 = vmatpush1.msra.mxu0 0.0
    %160 = vmatprep.subr.mxu0 0.0
    %161 = vmatpush1.msra.mxu0 0.0
    %162 = vmatprep.subr.mxu0 0.0
    %163 = vmatpush1.msra.mxu0 0.0
    %164 = vmatprep.subr.mxu0 0.0
    %165 = vmatpush1.msra.mxu0 0.0
    %166 = vmatprep.subr.mxu0 0.0
    %167 = vmatpush1.msra.mxu0 0.0
    %168 = vmatprep.mubr.f32.mxu0 0.0
    %169 = vmatmul.mubr.f32.gmra.mrb[0].mxu0 %v99
    %v170 = vpop.f32.mrb[0].mxu0
    %v171 = vadd.f32 0.0, %v170
    %v172 = vpop.f32.mrb[0].mxu0
    %173 = vmatprep.mubr.f32.mxu0 0.0
    %174 = vmatmul.mubr.f32.gmra.mrb[0].mxu0 %v102
    %v175 = vpop.f32.mrb[0].mxu0
    %v176 = vadd.f32 0.0, %v175
    %v177 = vpop.f32.mrb[0].mxu0
    %178 = vdwg.mxu0
    %v179 = vld [vmem:[%s5] sm:$0xff]
    %v180 = vld [vmem:[%s5 + $0x8] sm:$0xff]
    %v181 = vld [vmem:[%s5 + $0x10] sm:$0xff]
    %v182 = vld [vmem:[%s5 + $0x18] sm:$0xff]
    %v183 = vld [vmem:[%s5 + $0x20] sm:$0xff]
    %v184 = vld [vmem:[%s5 + $0x28] sm:$0xff]
    %v185 = vld [vmem:[%s5 + $0x30] sm:$0xff]
    %v186 = vld [vmem:[%s5 + $0x38] sm:$0xff]
    %v187 = vld [vmem:[%s5 + $0x40] sm:$0xff]
    %v188 = vld [vmem:[%s5 + $0x48] sm:$0xff]
    %v189 = vld [vmem:[%s5 + $0x50] sm:$0xff]
    %v190 = vld [vmem:[%s5 + $0x58] sm:$0xff]
    %v191 = vld [vmem:[%s5 + $0x60] sm:$0xff]
    %v192 = vld [vmem:[%s5 + $0x68] sm:$0xff]
    %v193 = vld [vmem:[%s5 + $0x70] sm:$0xff]
    %v194 = vld [vmem:[%s5 + $0x78] sm:$0xff]
    %s195 = scalar_lea.vmem %s4, 16
    %v196 = vld [vmem:[%s195] sm:$0xff]
    %v197 = vld [vmem:[%s195 + $0x8] sm:$0xff]
    %198 = vmatprep.subr.mxu0 0.0
    %199 = vmatpush1.msra.mxu0 %v196
    %200 = vmatprep.subr.mxu0 0.0
    %201 = vmatpush1.msra.mxu0 %v197
    %202 = vmatprep.subr.mxu0 0.0
    %203 = vmatpush1.msra.mxu0 0.0
    %204 = vmatprep.subr.mxu0 0.0
    %205 = vmatpush1.msra.mxu0 0.0
    %206 = vmatprep.subr.mxu0 0.0
    %207 = vmatpush1.msra.mxu0 0.0
    %208 = vmatprep.subr.mxu0 0.0
    %209 = vmatpush1.msra.mxu0 0.0
    %210 = vmatprep.subr.mxu0 0.0
    %211 = vmatpush1.msra.mxu0 0.0
    %212 = vmatprep.subr.mxu0 0.0
    %213 = vmatpush1.msra.mxu0 0.0
    %214 = vmatprep.subr.mxu0 0.0
    %215 = vmatpush1.msra.mxu0 0.0
    %216 = vmatprep.subr.mxu0 0.0
    %217 = vmatpush1.msra.mxu0 0.0
    %218 = vmatprep.subr.mxu0 0.0
    %219 = vmatpush1.msra.mxu0 0.0
    %220 = vmatprep.subr.mxu0 0.0
    %221 = vmatpush1.msra.mxu0 0.0
    %222 = vmatprep.subr.mxu0 0.0
    %223 = vmatpush1.msra.mxu0 0.0
    %224 = vmatprep.subr.mxu0 0.0
    %225 = vmatpush1.msra.mxu0 0.0
    %226 = vmatprep.subr.mxu0 0.0
    %227 = vmatpush1.msra.mxu0 0.0
    %228 = vmatprep.subr.mxu0 0.0
    %229 = vmatpush1.msra.mxu0 0.0
    %230 = vmatprep.subr.mxu0 0.0
    %231 = vmatpush1.msra.mxu0 0.0
    %232 = vmatprep.subr.mxu0 0.0
    %233 = vmatpush1.msra.mxu0 0.0
    %234 = vmatprep.subr.mxu0 0.0
    %235 = vmatpush1.msra.mxu0 0.0
    %236 = vmatprep.subr.mxu0 0.0
    %237 = vmatpush1.msra.mxu0 0.0
    %238 = vmatprep.subr.mxu0 0.0
    %239 = vmatpush1.msra.mxu0 0.0
    %240 = vmatprep.subr.mxu0 0.0
    %241 = vmatpush1.msra.mxu0 0.0
    %242 = vmatprep.subr.mxu0 0.0
    %243 = vmatpush1.msra.mxu0 0.0
    %244 = vmatprep.subr.mxu0 0.0
    %245 = vmatpush1.msra.mxu0 0.0
    %246 = vmatprep.subr.mxu0 0.0
    %247 = vmatpush1.msra.mxu0 0.0
    %248 = vmatprep.subr.mxu0 0.0
    %249 = vmatpush1.msra.mxu0 0.0
    %250 = vmatprep.subr.mxu0 0.0
    %251 = vmatpush1.msra.mxu0 0.0
    %252 = vmatprep.subr.mxu0 0.0
    %253 = vmatpush1.msra.mxu0 0.0
    %254 = vmatprep.subr.mxu0 0.0
    %255 = vmatpush1.msra.mxu0 0.0
    %256 = vmatprep.subr.mxu0 0.0
    %257 = vmatpush1.msra.mxu0 0.0
    %258 = vmatprep.subr.mxu0 0.0
    %259 = vmatpush1.msra.mxu0 0.0
    %260 = vmatprep.subr.mxu0 0.0
    %261 = vmatpush1.msra.mxu0 0.0
    %262 = vmatprep.mubr.f32.mxu0 0.0
    %263 = vmatmul.mubr.f32.gmra.mrb[0].mxu0 %v99
    %v264 = vpop.f32.mrb[0].mxu0
    %v265 = vadd.f32 0.0, %v264
    %v266 = vpop.f32.mrb[0].mxu0
    %267 = vmatprep.mubr.f32.mxu0 0.0
    %268 = vmatmul.mubr.f32.gmra.mrb[0].mxu0 %v102
    %v269 = vpop.f32.mrb[0].mxu0
    %v270 = vadd.f32 0.0, %v269
    %v271 = vpop.f32.mrb[0].mxu0
    %272 = vdwg.mxu0
    %s273 = scalar_lea.vmem %s5, 128
    %v274 = vld [vmem:[%s273] sm:$0xff]
    %v275 = vld [vmem:[%s273 + $0x8] sm:$0xff]
    %v276 = vld [vmem:[%s273 + $0x10] sm:$0xff]
    %v277 = vld [vmem:[%s273 + $0x18] sm:$0xff]
    %v278 = vld [vmem:[%s273 + $0x20] sm:$0xff]
    %v279 = vld [vmem:[%s273 + $0x28] sm:$0xff]
    %v280 = vld [vmem:[%s273 + $0x30] sm:$0xff]
    %v281 = vld [vmem:[%s273 + $0x38] sm:$0xff]
    %v282 = vld [vmem:[%s273 + $0x40] sm:$0xff]
    %v283 = vld [vmem:[%s273 + $0x48] sm:$0xff]
    %v284 = vld [vmem:[%s273 + $0x50] sm:$0xff]
    %v285 = vld [vmem:[%s273 + $0x58] sm:$0xff]
    %v286 = vld [vmem:[%s273 + $0x60] sm:$0xff]
    %v287 = vld [vmem:[%s273 + $0x68] sm:$0xff]
    %v288 = vld [vmem:[%s273 + $0x70] sm:$0xff]
    %v289 = vld [vmem:[%s273 + $0x78] sm:$0xff]
    %vm290 = vcmask 80896
    %v292 = vsel %vm290, %v274, 0
    %v295 = vsel %vm290, %v275, 0
    %v298 = vsel %vm290, %v276, 0
    %v301 = vsel %vm290, %v277, 0
    %v304 = vsel %vm290, %v278, 0
    %v307 = vsel %vm290, %v279, 0
    %v310 = vsel %vm290, %v280, 0
    %v313 = vsel %vm290, %v281, 0
    %v316 = vsel %vm290, %v282, 0
    %v319 = vsel %vm290, %v283, 0
    %v322 = vsel %vm290, %v284, 0
    %v325 = vsel %vm290, %v285, 0
    %v328 = vsel %vm290, %v286, 0
    %v331 = vsel %vm290, %v287, 0
    %v334 = vsel %vm290, %v288, 0
    %v337 = vsel %vm290, %v289, 0
    %vm339 = vcmask 1041408
    %v341 = vsel %vm339, %v270, 0
    %343 = vmatprep.subr.mxu0 0.0
    %344 = vmatpush1.msra.mxu0 %v265
    %345 = vmatprep.subr.mxu0 0.0
    %346 = vmatpush1.msra.mxu0 %v341
    %347 = vmatprep.subr.mxu0 0.0
    %348 = vmatpush1.msra.mxu0 0.0
    %349 = vmatprep.subr.mxu0 0.0
    %350 = vmatpush1.msra.mxu0 0.0
    %351 = vmatprep.subr.mxu0 0.0
    %352 = vmatpush1.msra.mxu0 0.0
    %353 = vmatprep.subr.mxu0 0.0
    %354 = vmatpush1.msra.mxu0 0.0
    %355 = vmatprep.subr.mxu0 0.0
    %356 = vmatpush1.msra.mxu0 0.0
    %357 = vmatprep.subr.mxu0 0.0
    %358 = vmatpush1.msra.mxu0 0.0
    %359 = vmatprep.subr.mxu0 0.0
    %360 = vmatpush1.msra.mxu0 0.0
    %361 = vmatprep.subr.mxu0 0.0
    %362 = vmatpush1.msra.mxu0 0.0
    %363 = vmatprep.subr.mxu0 0.0
    %364 = vmatpush1.msra.mxu0 0.0
    %365 = vmatprep.subr.mxu0 0.0
    %366 = vmatpush1.msra.mxu0 0.0
    %367 = vmatprep.subr.mxu0 0.0
    %368 = vmatpush1.msra.mxu0 0.0
    %369 = vmatprep.subr.mxu0 0.0
    %370 = vmatpush1.msra.mxu0 0.0
    %371 = vmatprep.subr.mxu0 0.0
    %372 = vmatpush1.msra.mxu0 0.0
    %373 = vmatprep.subr.mxu0 0.0
    %374 = vmatpush1.msra.mxu0 0.0
    %375 = vmatprep.subr.mxu0 0.0
    %376 = vmatpush1.msra.mxu0 0.0
    %377 = vmatprep.subr.mxu0 0.0
    %378 = vmatpush1.msra.mxu0 0.0
    %379 = vmatprep.subr.mxu0 0.0
    %380 = vmatpush1.msra.mxu0 0.0
    %381 = vmatprep.subr.mxu0 0.0
    %382 = vmatpush1.msra.mxu0 0.0
    %383 = vmatprep.subr.mxu0 0.0
    %384 = vmatpush1.msra.mxu0 0.0
    %385 = vmatprep.subr.mxu0 0.0
    %386 = vmatpush1.msra.mxu0 0.0
    %387 = vmatprep.subr.mxu0 0.0
    %388 = vmatpush1.msra.mxu0 0.0
    %389 = vmatprep.subr.mxu0 0.0
    %390 = vmatpush1.msra.mxu0 0.0
    %391 = vmatprep.subr.mxu0 0.0
    %392 = vmatpush1.msra.mxu0 0.0
    %393 = vmatprep.subr.mxu0 0.0
    %394 = vmatpush1.msra.mxu0 0.0
    %395 = vmatprep.subr.mxu0 0.0
    %396 = vmatpush1.msra.mxu0 0.0
    %397 = vmatprep.subr.mxu0 0.0
    %398 = vmatpush1.msra.mxu0 0.0
    %399 = vmatprep.subr.mxu0 0.0
    %400 = vmatpush1.msra.mxu0 0.0
    %401 = vmatprep.subr.mxu0 0.0
    %402 = vmatpush1.msra.mxu0 0.0
    %403 = vmatprep.subr.mxu0 0.0
    %404 = vmatpush1.msra.mxu0 0.0
    %405 = vmatprep.subr.mxu0 0.0
    %406 = vmatpush1.msra.mxu0 0.0
    %407 = vmatprep.mubr.f32.mxu0 0.0
    %408 = vmatmul.mubr.f32.gmra.mrb[0].mxu0 %v292
    %v409 = vpop.f32.mrb[0].mxu0
    %v410 = vadd.f32 0.0, %v409
    %v411 = vpop.f32.mrb[0].mxu0
    %412 = vmatprep.mubr.f32.mxu0 0.0
    %413 = vmatmul.mubr.f32.gmra.mrb[0].mxu0 %v295
    %v414 = vpop.f32.mrb[0].mxu0
    %v415 = vadd.f32 0.0, %v414
    %v416 = vpop.f32.mrb[0].mxu0
    %417 = vmatprep.mubr.f32.mxu0 0.0
    %418 = vmatmul.mubr.f32.gmra.mrb[0].mxu0 %v298
    %v419 = vpop.f32.mrb[0].mxu0
    %v420 = vadd.f32 0.0, %v419
    %v421 = vpop.f32.mrb[0].mxu0
    %422 = vmatprep.mubr.f32.mxu0 0.0
    %423 = vmatmul.mubr.f32.gmra.mrb[0].mxu0 %v301
    %v424 = vpop.f32.mrb[0].mxu0
    %v425 = vadd.f32 0.0, %v424
    %v426 = vpop.f32.mrb[0].mxu0
    %427 = vmatprep.mubr.f32.mxu0 0.0
    %428 = vmatmul.mubr.f32.gmra.mrb[0].mxu0 %v304
    %v429 = vpop.f32.mrb[0].mxu0
    %v430 = vadd.f32 0.0, %v429
    %v431 = vpop.f32.mrb[0].mxu0
    %432 = vmatprep.mubr.f32.mxu0 0.0
    %433 = vmatmul.mubr.f32.gmra.mrb[0].mxu0 %v307
    %v434 = vpop.f32.mrb[0].mxu0
    %v435 = vadd.f32 0.0, %v434
    %v436 = vpop.f32.mrb[0].mxu0
    %437 = vmatprep.mubr.f32.mxu0 0.0
    %438 = vmatmul.mubr.f32.gmra.mrb[0].mxu0 %v310
    %v439 = vpop.f32.mrb[0].mxu0
    %v440 = vadd.f32 0.0, %v439
    %v441 = vpop.f32.mrb[0].mxu0
    %442 = vmatprep.mubr.f32.mxu0 0.0
    %443 = vmatmul.mubr.f32.gmra.mrb[0].mxu0 %v313
    %v444 = vpop.f32.mrb[0].mxu0
    %v445 = vadd.f32 0.0, %v444
    %v446 = vpop.f32.mrb[0].mxu0
    %447 = vmatprep.mubr.f32.mxu0 0.0
    %448 = vmatmul.mubr.f32.gmra.mrb[0].mxu0 %v316
    %v449 = vpop.f32.mrb[0].mxu0
    %v450 = vadd.f32 0.0, %v449
    %v451 = vpop.f32.mrb[0].mxu0
    %452 = vmatprep.mubr.f32.mxu0 0.0
    %453 = vmatmul.mubr.f32.gmra.mrb[0].mxu0 %v319
    %v454 = vpop.f32.mrb[0].mxu0
    %v455 = vadd.f32 0.0, %v454
    %v456 = vpop.f32.mrb[0].mxu0
    %457 = vmatprep.mubr.f32.mxu0 0.0
    %458 = vmatmul.mubr.f32.gmra.mrb[0].mxu0 %v322
    %v459 = vpop.f32.mrb[0].mxu0
    %v460 = vadd.f32 0.0, %v459
    %v461 = vpop.f32.mrb[0].mxu0
    %462 = vmatprep.mubr.f32.mxu0 0.0
    %463 = vmatmul.mubr.f32.gmra.mrb[0].mxu0 %v325
    %v464 = vpop.f32.mrb[0].mxu0
    %v465 = vadd.f32 0.0, %v464
    %v466 = vpop.f32.mrb[0].mxu0
    %467 = vmatprep.mubr.f32.mxu0 0.0
    %468 = vmatmul.mubr.f32.gmra.mrb[0].mxu0 %v328
    %v469 = vpop.f32.mrb[0].mxu0
    %v470 = vadd.f32 0.0, %v469
    %v471 = vpop.f32.mrb[0].mxu0
    %472 = vmatprep.mubr.f32.mxu0 0.0
    %473 = vmatmul.mubr.f32.gmra.mrb[0].mxu0 %v331
    %v474 = vpop.f32.mrb[0].mxu0
    %v475 = vadd.f32 0.0, %v474
    %v476 = vpop.f32.mrb[0].mxu0
    %477 = vmatprep.mubr.f32.mxu0 0.0
    %478 = vmatmul.mubr.f32.gmra.mrb[0].mxu0 %v334
    %v479 = vpop.f32.mrb[0].mxu0
    %v480 = vadd.f32 0.0, %v479
    %v481 = vpop.f32.mrb[0].mxu0
    %482 = vmatprep.mubr.f32.mxu0 0.0
    %483 = vmatmul.mubr.f32.gmra.mrb[0].mxu0 %v337
    %v484 = vpop.f32.mrb[0].mxu0
    %v485 = vadd.f32 0.0, %v484
    %v486 = vpop.f32.mrb[0].mxu0
    %487 = vdwg.mxu0
    %v489 = vsel %vm290, %v179, 0
    %v492 = vsel %vm290, %v180, 0
    %v495 = vsel %vm290, %v181, 0
    %v498 = vsel %vm290, %v182, 0
    %v501 = vsel %vm290, %v183, 0
    %v504 = vsel %vm290, %v184, 0
    %v507 = vsel %vm290, %v185, 0
    %v510 = vsel %vm290, %v186, 0
    %v513 = vsel %vm290, %v187, 0
    %v516 = vsel %vm290, %v188, 0
    %v519 = vsel %vm290, %v189, 0
    %v522 = vsel %vm290, %v190, 0
    %v525 = vsel %vm290, %v191, 0
    %v528 = vsel %vm290, %v192, 0
    %v531 = vsel %vm290, %v193, 0
    %v534 = vsel %vm290, %v194, 0
    %v537 = vsel %vm339, %v176, 0
    %539 = vmatprep.subr.mxu0 0.0
    %540 = vmatpush1.msra.mxu0 %v171
    %541 = vmatprep.subr.mxu0 0.0
    %542 = vmatpush1.msra.mxu0 %v537
    %543 = vmatprep.subr.mxu0 0.0
    %544 = vmatpush1.msra.mxu0 0.0
    %545 = vmatprep.subr.mxu0 0.0
    %546 = vmatpush1.msra.mxu0 0.0
    %547 = vmatprep.subr.mxu0 0.0
    %548 = vmatpush1.msra.mxu0 0.0
    %549 = vmatprep.subr.mxu0 0.0
    %550 = vmatpush1.msra.mxu0 0.0
    %551 = vmatprep.subr.mxu0 0.0
    %552 = vmatpush1.msra.mxu0 0.0
    %553 = vmatprep.subr.mxu0 0.0
    %554 = vmatpush1.msra.mxu0 0.0
    %555 = vmatprep.subr.mxu0 0.0
    %556 = vmatpush1.msra.mxu0 0.0
    %557 = vmatprep.subr.mxu0 0.0
    %558 = vmatpush1.msra.mxu0 0.0
    %559 = vmatprep.subr.mxu0 0.0
    %560 = vmatpush1.msra.mxu0 0.0
    %561 = vmatprep.subr.mxu0 0.0
    %562 = vmatpush1.msra.mxu0 0.0
    %563 = vmatprep.subr.mxu0 0.0
    %564 = vmatpush1.msra.mxu0 0.0
    %565 = vmatprep.subr.mxu0 0.0
    %566 = vmatpush1.msra.mxu0 0.0
    %567 = vmatprep.subr.mxu0 0.0
    %568 = vmatpush1.msra.mxu0 0.0
    %569 = vmatprep.subr.mxu0 0.0
    %570 = vmatpush1.msra.mxu0 0.0
    %571 = vmatprep.subr.mxu0 0.0
    %572 = vmatpush1.msra.mxu0 0.0
    %573 = vmatprep.subr.mxu0 0.0
    %574 = vmatpush1.msra.mxu0 0.0
    %575 = vmatprep.subr.mxu0 0.0
    %576 = vmatpush1.msra.mxu0 0.0
    %577 = vmatprep.subr.mxu0 0.0
    %578 = vmatpush1.msra.mxu0 0.0
    %579 = vmatprep.subr.mxu0 0.0
    %580 = vmatpush1.msra.mxu0 0.0
    %581 = vmatprep.subr.mxu0 0.0
    %582 = vmatpush1.msra.mxu0 0.0
    %583 = vmatprep.subr.mxu0 0.0
    %584 = vmatpush1.msra.mxu0 0.0
    %585 = vmatprep.subr.mxu0 0.0
    %586 = vmatpush1.msra.mxu0 0.0
    %587 = vmatprep.subr.mxu0 0.0
    %588 = vmatpush1.msra.mxu0 0.0
    %589 = vmatprep.subr.mxu0 0.0
    %590 = vmatpush1.msra.mxu0 0.0
    %591 = vmatprep.subr.mxu0 0.0
    %592 = vmatpush1.msra.mxu0 0.0
    %593 = vmatprep.subr.mxu0 0.0
    %594 = vmatpush1.msra.mxu0 0.0
    %595 = vmatprep.subr.mxu0 0.0
    %596 = vmatpush1.msra.mxu0 0.0
    %597 = vmatprep.subr.mxu0 0.0
    %598 = vmatpush1.msra.mxu0 0.0
    %599 = vmatprep.subr.mxu0 0.0
    %600 = vmatpush1.msra.mxu0 0.0
    %601 = vmatprep.subr.mxu0 0.0
    %602 = vmatpush1.msra.mxu0 0.0
    %603 = vmatprep.mubr.f32.mxu0 0.0
    %604 = vmatmul.mubr.f32.gmra.mrb[0].mxu0 %v489
    %v605 = vpop.f32.mrb[0].mxu0
    %v606 = vadd.f32 %v410, %v605
    %v607 = vpop.f32.mrb[0].mxu0
    %608 = vmatprep.mubr.f32.mxu0 0.0
    %609 = vmatmul.mubr.f32.gmra.mrb[0].mxu0 %v492
    %v610 = vpop.f32.mrb[0].mxu0
    %v611 = vadd.f32 %v415, %v610
    %v612 = vpop.f32.mrb[0].mxu0
    %613 = vmatprep.mubr.f32.mxu0 0.0
    %614 = vmatmul.mubr.f32.gmra.mrb[0].mxu0 %v495
    %v615 = vpop.f32.mrb[0].mxu0
    %v616 = vadd.f32 %v420, %v615
    %v617 = vpop.f32.mrb[0].mxu0
    %618 = vmatprep.mubr.f32.mxu0 0.0
    %619 = vmatmul.mubr.f32.gmra.mrb[0].mxu0 %v498
    %v620 = vpop.f32.mrb[0].mxu0
    %v621 = vadd.f32 %v425, %v620
    %v622 = vpop.f32.mrb[0].mxu0
    %623 = vmatprep.mubr.f32.mxu0 0.0
    %624 = vmatmul.mubr.f32.gmra.mrb[0].mxu0 %v501
    %v625 = vpop.f32.mrb[0].mxu0
    %v626 = vadd.f32 %v430, %v625
    %v627 = vpop.f32.mrb[0].mxu0
    %628 = vmatprep.mubr.f32.mxu0 0.0
    %629 = vmatmul.mubr.f32.gmra.mrb[0].mxu0 %v504
    %v630 = vpop.f32.mrb[0].mxu0
    %v631 = vadd.f32 %v435, %v630
    %v632 = vpop.f32.mrb[0].mxu0
    %633 = vmatprep.mubr.f32.mxu0 0.0
    %634 = vmatmul.mubr.f32.gmra.mrb[0].mxu0 %v507
    %v635 = vpop.f32.mrb[0].mxu0
    %v636 = vadd.f32 %v440, %v635
    %v637 = vpop.f32.mrb[0].mxu0
    %638 = vmatprep.mubr.f32.mxu0 0.0
    %639 = vmatmul.mubr.f32.gmra.mrb[0].mxu0 %v510
    %v640 = vpop.f32.mrb[0].mxu0
    %v641 = vadd.f32 %v445, %v640
    %v642 = vpop.f32.mrb[0].mxu0
    %643 = vmatprep.mubr.f32.mxu0 0.0
    %644 = vmatmul.mubr.f32.gmra.mrb[0].mxu0 %v513
    %v645 = vpop.f32.mrb[0].mxu0
    %v646 = vadd.f32 %v450, %v645
    %v647 = vpop.f32.mrb[0].mxu0
    %648 = vmatprep.mubr.f32.mxu0 0.0
    %649 = vmatmul.mubr.f32.gmra.mrb[0].mxu0 %v516
    %v650 = vpop.f32.mrb[0].mxu0
    %v651 = vadd.f32 %v455, %v650
    %v652 = vpop.f32.mrb[0].mxu0
    %653 = vmatprep.mubr.f32.mxu0 0.0
    %654 = vmatmul.mubr.f32.gmra.mrb[0].mxu0 %v519
    %v655 = vpop.f32.mrb[0].mxu0
    %v656 = vadd.f32 %v460, %v655
    %v657 = vpop.f32.mrb[0].mxu0
    %658 = vmatprep.mubr.f32.mxu0 0.0
    %659 = vmatmul.mubr.f32.gmra.mrb[0].mxu0 %v522
    %v660 = vpop.f32.mrb[0].mxu0
    %v661 = vadd.f32 %v465, %v660
    %v662 = vpop.f32.mrb[0].mxu0
    %663 = vmatprep.mubr.f32.mxu0 0.0
    %664 = vmatmul.mubr.f32.gmra.mrb[0].mxu0 %v525
    %v665 = vpop.f32.mrb[0].mxu0
    %v666 = vadd.f32 %v470, %v665
    %v667 = vpop.f32.mrb[0].mxu0
    %668 = vmatprep.mubr.f32.mxu0 0.0
    %669 = vmatmul.mubr.f32.gmra.mrb[0].mxu0 %v528
    %v670 = vpop.f32.mrb[0].mxu0
    %v671 = vadd.f32 %v475, %v670
    %v672 = vpop.f32.mrb[0].mxu0
    %673 = vmatprep.mubr.f32.mxu0 0.0
    %674 = vmatmul.mubr.f32.gmra.mrb[0].mxu0 %v531
    %v675 = vpop.f32.mrb[0].mxu0
    %v676 = vadd.f32 %v480, %v675
    %v677 = vpop.f32.mrb[0].mxu0
    %678 = vmatprep.mubr.f32.mxu0 0.0
    %679 = vmatmul.mubr.f32.gmra.mrb[0].mxu0 %v534
    %v680 = vpop.f32.mrb[0].mxu0
    %v681 = vadd.f32 %v485, %v680
    %v682 = vpop.f32.mrb[0].mxu0
    %683 = vdwg.mxu0
    %s684 = scalar_lea.vmem %s4, 32
    %v685 = vld [vmem:[%s684] sm:$0xff]
    %v686 = vld [vmem:[%s684 + $0x8] sm:$0xff]
    %687 = vmatprep.subr.mxu0 0.0
    %688 = vmatpush1.msra.mxu0 %v685
    %689 = vmatprep.subr.mxu0 0.0
    %690 = vmatpush1.msra.mxu0 %v686
    %691 = vmatprep.subr.mxu0 0.0
    %692 = vmatpush1.msra.mxu0 0.0
    %693 = vmatprep.subr.mxu0 0.0
    %694 = vmatpush1.msra.mxu0 0.0
    %695 = vmatprep.subr.mxu0 0.0
    %696 = vmatpush1.msra.mxu0 0.0
    %697 = vmatprep.subr.mxu0 0.0
    %698 = vmatpush1.msra.mxu0 0.0
    %699 = vmatprep.subr.mxu0 0.0
    %700 = vmatpush1.msra.mxu0 0.0
    %701 = vmatprep.subr.mxu0 0.0
    %702 = vmatpush1.msra.mxu0 0.0
    %703 = vmatprep.subr.mxu0 0.0
    %704 = vmatpush1.msra.mxu0 0.0
    %705 = vmatprep.subr.mxu0 0.0
    %706 = vmatpush1.msra.mxu0 0.0
    %707 = vmatprep.subr.mxu0 0.0
    %708 = vmatpush1.msra.mxu0 0.0
    %709 = vmatprep.subr.mxu0 0.0
    %710 = vmatpush1.msra.mxu0 0.0
    %711 = vmatprep.subr.mxu0 0.0
    %712 = vmatpush1.msra.mxu0 0.0
    %713 = vmatprep.subr.mxu0 0.0
    %714 = vmatpush1.msra.mxu0 0.0
    %715 = vmatprep.subr.mxu0 0.0
    %716 = vmatpush1.msra.mxu0 0.0
    %717 = vmatprep.subr.mxu0 0.0
    %718 = vmatpush1.msra.mxu0 0.0
    %719 = vmatprep.subr.mxu0 0.0
    %720 = vmatpush1.msra.mxu0 0.0
    %721 = vmatprep.subr.mxu0 0.0
    %722 = vmatpush1.msra.mxu0 0.0
    %723 = vmatprep.subr.mxu0 0.0
    %724 = vmatpush1.msra.mxu0 0.0
    %725 = vmatprep.subr.mxu0 0.0
    %726 = vmatpush1.msra.mxu0 0.0
    %727 = vmatprep.subr.mxu0 0.0
    %728 = vmatpush1.msra.mxu0 0.0
    %729 = vmatprep.subr.mxu0 0.0
    %730 = vmatpush1.msra.mxu0 0.0
    %731 = vmatprep.subr.mxu0 0.0
    %732 = vmatpush1.msra.mxu0 0.0
    %733 = vmatprep.subr.mxu0 0.0
    %734 = vmatpush1.msra.mxu0 0.0
    %735 = vmatprep.subr.mxu0 0.0
    %736 = vmatpush1.msra.mxu0 0.0
    %737 = vmatprep.subr.mxu0 0.0
    %738 = vmatpush1.msra.mxu0 0.0
    %739 = vmatprep.subr.mxu0 0.0
    %740 = vmatpush1.msra.mxu0 0.0
    %741 = vmatprep.subr.mxu0 0.0
    %742 = vmatpush1.msra.mxu0 0.0
    %743 = vmatprep.subr.mxu0 0.0
    %744 = vmatpush1.msra.mxu0 0.0
    %745 = vmatprep.subr.mxu0 0.0
    %746 = vmatpush1.msra.mxu0 0.0
    %747 = vmatprep.subr.mxu0 0.0
    %748 = vmatpush1.msra.mxu0 0.0
    %749 = vmatprep.subr.mxu0 0.0
    %750 = vmatpush1.msra.mxu0 0.0
    %751 = vmatprep.mubr.f32.mxu0 0.0
    %752 = vmatmul.mubr.f32.gmra.mrb[0].mxu0 %v99
    %v753 = vpop.f32.mrb[0].mxu0
    %v754 = vadd.f32 0.0, %v753
    %v755 = vpop.f32.mrb[0].mxu0
    %756 = vmatprep.mubr.f32.mxu0 0.0
    %757 = vmatmul.mubr.f32.gmra.mrb[0].mxu0 %v102
    %v758 = vpop.f32.mrb[0].mxu0
    %v759 = vadd.f32 0.0, %v758
    %v760 = vpop.f32.mrb[0].mxu0
    %761 = vdwg.mxu0
    %s762 = scalar_lea.vmem %s5, 256
    %v763 = vld [vmem:[%s762] sm:$0xff]
    %v764 = vld [vmem:[%s762 + $0x8] sm:$0xff]
    %v765 = vld [vmem:[%s762 + $0x10] sm:$0xff]
    %v766 = vld [vmem:[%s762 + $0x18] sm:$0xff]
    %v767 = vld [vmem:[%s762 + $0x20] sm:$0xff]
    %v768 = vld [vmem:[%s762 + $0x28] sm:$0xff]
    %v769 = vld [vmem:[%s762 + $0x30] sm:$0xff]
    %v770 = vld [vmem:[%s762 + $0x38] sm:$0xff]
    %v771 = vld [vmem:[%s762 + $0x40] sm:$0xff]
    %v772 = vld [vmem:[%s762 + $0x48] sm:$0xff]
    %v773 = vld [vmem:[%s762 + $0x50] sm:$0xff]
    %v774 = vld [vmem:[%s762 + $0x58] sm:$0xff]
    %v775 = vld [vmem:[%s762 + $0x60] sm:$0xff]
    %v776 = vld [vmem:[%s762 + $0x68] sm:$0xff]
    %v777 = vld [vmem:[%s762 + $0x70] sm:$0xff]
    %v778 = vld [vmem:[%s762 + $0x78] sm:$0xff]
    %v780 = vsel %vm290, %v763, 0
    %v783 = vsel %vm290, %v764, 0
    %v786 = vsel %vm290, %v765, 0
    %v789 = vsel %vm290, %v766, 0
    %v792 = vsel %vm290, %v767, 0
    %v795 = vsel %vm290, %v768, 0
    %v798 = vsel %vm290, %v769, 0
    %v801 = vsel %vm290, %v770, 0
    %v804 = vsel %vm290, %v771, 0
    %v807 = vsel %vm290, %v772, 0
    %v810 = vsel %vm290, %v773, 0
    %v813 = vsel %vm290, %v774, 0
    %v816 = vsel %vm290, %v775, 0
    %v819 = vsel %vm290, %v776, 0
    %v822 = vsel %vm290, %v777, 0
    %v825 = vsel %vm290, %v778, 0
    %v828 = vsel %vm339, %v759, 0
    %830 = vmatprep.subr.mxu0 0.0
    %831 = vmatpush1.msra.mxu0 %v754
    %832 = vmatprep.subr.mxu0 0.0
    %833 = vmatpush1.msra.mxu0 %v828
    %834 = vmatprep.subr.mxu0 0.0
    %835 = vmatpush1.msra.mxu0 0.0
    %836 = vmatprep.subr.mxu0 0.0
    %837 = vmatpush1.msra.mxu0 0.0
    %838 = vmatprep.subr.mxu0 0.0
    %839 = vmatpush1.msra.mxu0 0.0
    %840 = vmatprep.subr.mxu0 0.0
    %841 = vmatpush1.msra.mxu0 0.0
    %842 = vmatprep.subr.mxu0 0.0
    %843 = vmatpush1.msra.mxu0 0.0
    %844 = vmatprep.subr.mxu0 0.0
    %845 = vmatpush1.msra.mxu0 0.0
    %846 = vmatprep.subr.mxu0 0.0
    %847 = vmatpush1.msra.mxu0 0.0
    %848 = vmatprep.subr.mxu0 0.0
    %849 = vmatpush1.msra.mxu0 0.0
    %850 = vmatprep.subr.mxu0 0.0
    %851 = vmatpush1.msra.mxu0 0.0
    %852 = vmatprep.subr.mxu0 0.0
    %853 = vmatpush1.msra.mxu0 0.0
    %854 = vmatprep.subr.mxu0 0.0
    %855 = vmatpush1.msra.mxu0 0.0
    %856 = vmatprep.subr.mxu0 0.0
    %857 = vmatpush1.msra.mxu0 0.0
    %858 = vmatprep.subr.mxu0 0.0
    %859 = vmatpush1.msra.mxu0 0.0
    %860 = vmatprep.subr.mxu0 0.0
    %861 = vmatpush1.msra.mxu0 0.0
    %862 = vmatprep.subr.mxu0 0.0
    %863 = vmatpush1.msra.mxu0 0.0
    %864 = vmatprep.subr.mxu0 0.0
    %865 = vmatpush1.msra.mxu0 0.0
    %866 = vmatprep.subr.mxu0 0.0
    %867 = vmatpush1.msra.mxu0 0.0
    %868 = vmatprep.subr.mxu0 0.0
    %869 = vmatpush1.msra.mxu0 0.0
    %870 = vmatprep.subr.mxu0 0.0
    %871 = vmatpush1.msra.mxu0 0.0
    %872 = vmatprep.subr.mxu0 0.0
    %873 = vmatpush1.msra.mxu0 0.0
    %874 = vmatprep.subr.mxu0 0.0
    %875 = vmatpush1.msra.mxu0 0.0
    %876 = vmatprep.subr.mxu0 0.0
    %877 = vmatpush1.msra.mxu0 0.0
    %878 = vmatprep.subr.mxu0 0.0
    %879 = vmatpush1.msra.mxu0 0.0
    %880 = vmatprep.subr.mxu0 0.0
    %881 = vmatpush1.msra.mxu0 0.0
    %882 = vmatprep.subr.mxu0 0.0
    %883 = vmatpush1.msra.mxu0 0.0
    %884 = vmatprep.subr.mxu0 0.0
    %885 = vmatpush1.msra.mxu0 0.0
    %886 = vmatprep.subr.mxu0 0.0
    %887 = vmatpush1.msra.mxu0 0.0
    %888 = vmatprep.subr.mxu0 0.0
    %889 = vmatpush1.msra.mxu0 0.0
    %890 = vmatprep.subr.mxu0 0.0
    %891 = vmatpush1.msra.mxu0 0.0
    %892 = vmatprep.subr.mxu0 0.0
    %893 = vmatpush1.msra.mxu0 0.0
    %894 = vmatprep.mubr.f32.mxu0 0.0
    %895 = vmatmul.mubr.f32.gmra.mrb[0].mxu0 %v780
    %v896 = vpop.f32.mrb[0].mxu0
    %v897 = vadd.f32 0.0, %v896
    %v898 = vpop.f32.mrb[0].mxu0
    %899 = vmatprep.mubr.f32.mxu0 0.0
    %900 = vmatmul.mubr.f32.gmra.mrb[0].mxu0 %v783
    %v901 = vpop.f32.mrb[0].mxu0
    %v902 = vadd.f32 0.0, %v901
    %v903 = vpop.f32.mrb[0].mxu0
    %904 = vmatprep.mubr.f32.mxu0 0.0
    %905 = vmatmul.mubr.f32.gmra.mrb[0].mxu0 %v786
    %v906 = vpop.f32.mrb[0].mxu0
    %v907 = vadd.f32 0.0, %v906
    %v908 = vpop.f32.mrb[0].mxu0
    %909 = vmatprep.mubr.f32.mxu0 0.0
    %910 = vmatmul.mubr.f32.gmra.mrb[0].mxu0 %v789
    %v911 = vpop.f32.mrb[0].mxu0
    %v912 = vadd.f32 0.0, %v911
    %v913 = vpop.f32.mrb[0].mxu0
    %914 = vmatprep.mubr.f32.mxu0 0.0
    %915 = vmatmul.mubr.f32.gmra.mrb[0].mxu0 %v792
    %v916 = vpop.f32.mrb[0].mxu0
    %v917 = vadd.f32 0.0, %v916
    %v918 = vpop.f32.mrb[0].mxu0
    %919 = vmatprep.mubr.f32.mxu0 0.0
    %920 = vmatmul.mubr.f32.gmra.mrb[0].mxu0 %v795
    %v921 = vpop.f32.mrb[0].mxu0
    %v922 = vadd.f32 0.0, %v921
    %v923 = vpop.f32.mrb[0].mxu0
    %924 = vmatprep.mubr.f32.mxu0 0.0
    %925 = vmatmul.mubr.f32.gmra.mrb[0].mxu0 %v798
    %v926 = vpop.f32.mrb[0].mxu0
    %v927 = vadd.f32 0.0, %v926
    %v928 = vpop.f32.mrb[0].mxu0
    %929 = vmatprep.mubr.f32.mxu0 0.0
    %930 = vmatmul.mubr.f32.gmra.mrb[0].mxu0 %v801
    %v931 = vpop.f32.mrb[0].mxu0
    %v932 = vadd.f32 0.0, %v931
    %v933 = vpop.f32.mrb[0].mxu0
    %934 = vmatprep.mubr.f32.mxu0 0.0
    %935 = vmatmul.mubr.f32.gmra.mrb[0].mxu0 %v804
    %v936 = vpop.f32.mrb[0].mxu0
    %v937 = vadd.f32 0.0, %v936
    %v938 = vpop.f32.mrb[0].mxu0
    %939 = vmatprep.mubr.f32.mxu0 0.0
    %940 = vmatmul.mubr.f32.gmra.mrb[0].mxu0 %v807
    %v941 = vpop.f32.mrb[0].mxu0
    %v942 = vadd.f32 0.0, %v941
    %v943 = vpop.f32.mrb[0].mxu0
    %944 = vmatprep.mubr.f32.mxu0 0.0
    %945 = vmatmul.mubr.f32.gmra.mrb[0].mxu0 %v810
    %v946 = vpop.f32.mrb[0].mxu0
    %v947 = vadd.f32 0.0, %v946
    %v948 = vpop.f32.mrb[0].mxu0
    %949 = vmatprep.mubr.f32.mxu0 0.0
    %950 = vmatmul.mubr.f32.gmra.mrb[0].mxu0 %v813
    %v951 = vpop.f32.mrb[0].mxu0
    %v952 = vadd.f32 0.0, %v951
    %v953 = vpop.f32.mrb[0].mxu0
    %954 = vmatprep.mubr.f32.mxu0 0.0
    %955 = vmatmul.mubr.f32.gmra.mrb[0].mxu0 %v816
    %v956 = vpop.f32.mrb[0].mxu0
    %v957 = vadd.f32 0.0, %v956
    %v958 = vpop.f32.mrb[0].mxu0
    %959 = vmatprep.mubr.f32.mxu0 0.0
    %960 = vmatmul.mubr.f32.gmra.mrb[0].mxu0 %v819
    %v961 = vpop.f32.mrb[0].mxu0
    %v962 = vadd.f32 0.0, %v961
    %v963 = vpop.f32.mrb[0].mxu0
    %964 = vmatprep.mubr.f32.mxu0 0.0
    %965 = vmatmul.mubr.f32.gmra.mrb[0].mxu0 %v822
    %v966 = vpop.f32.mrb[0].mxu0
    %v967 = vadd.f32 0.0, %v966
    %v968 = vpop.f32.mrb[0].mxu0
    %969 = vmatprep.mubr.f32.mxu0 0.0
    %970 = vmatmul.mubr.f32.gmra.mrb[0].mxu0 %v825
    %v971 = vpop.f32.mrb[0].mxu0
    %v972 = vadd.f32 0.0, %v971
    %v973 = vpop.f32.mrb[0].mxu0
    %974 = vdwg.mxu0
    %v975 = vadd.f32 %v606, %v897
    %v976 = vadd.f32 %v611, %v902
    %v977 = vadd.f32 %v616, %v907
    %v978 = vadd.f32 %v621, %v912
    %v979 = vadd.f32 %v626, %v917
    %v980 = vadd.f32 %v631, %v922
    %v981 = vadd.f32 %v636, %v927
    %v982 = vadd.f32 %v641, %v932
    %v983 = vadd.f32 %v646, %v937
    %v984 = vadd.f32 %v651, %v942
    %v985 = vadd.f32 %v656, %v947
    %v986 = vadd.f32 %v661, %v952
    %v987 = vadd.f32 %v666, %v957
    %v988 = vadd.f32 %v671, %v962
    %v989 = vadd.f32 %v676, %v967
    %v990 = vadd.f32 %v681, %v972
    %v991 = vlaneseq
    %v992 = vshrl.u32 %v991, 7
    %v993 = vsub.s32 0, %v992
    %v994 = vrot.slane %v64, %v993
    %v995 = vlaneseq
    %v996 = vshrl.u32 %v995, 7
    %v997 = vsub.s32 0, %v996
    %v998 = vrot.slane %v78, %v997
    %v999 = vlaneseq
    %v1000 = vshrl.u32 %v999, 7
    %v1001 = vsub.s32 0, %v1000
    %v1002 = vrot.slane %v86, %v1001
    %v1003 = vlaneseq
    %v1004 = vshrl.u32 %v1003, 7
    %v1005 = vsub.s32 0, %v1004
    %v1006 = vrot.slane %v88, %v1005
    %v1007 = vlaneseq
    %v1008 = vshrl.u32 %v1007, 7
    %v1009 = vsub.s32 0, %v1008
    %v1010 = vrot.slane %v71, %v1009
    %v1011 = vlaneseq
    %v1012 = vshrl.u32 %v1011, 7
    %v1013 = vsub.s32 0, %v1012
    %v1014 = vrot.slane %v85, %v1013
    %v1015 = vlaneseq
    %v1016 = vshrl.u32 %v1015, 7
    %v1017 = vsub.s32 0, %v1016
    %v1018 = vrot.slane %v87, %v1017
    %v1019 = vlaneseq
    %v1020 = vshrl.u32 %v1019, 7
    %v1021 = vsub.s32 0, %v1020
    %v1022 = vrot.slane %v89, %v1021
    %v1031 = vmul.f32 %v975, %v994
    %v1032 = vmul.f32 %v976, %v994
    %v1033 = vmul.f32 %v977, %v998
    %v1034 = vmul.f32 %v978, %v998
    %v1035 = vmul.f32 %v979, %v1002
    %v1036 = vmul.f32 %v980, %v1002
    %v1037 = vmul.f32 %v981, %v1006
    %v1038 = vmul.f32 %v982, %v1006
    %v1039 = vmul.f32 %v983, %v1010
    %v1040 = vmul.f32 %v984, %v1010
    %v1041 = vmul.f32 %v985, %v1014
    %v1042 = vmul.f32 %v986, %v1014
    %v1043 = vmul.f32 %v987, %v1018
    %v1044 = vmul.f32 %v988, %v1018
    %v1045 = vmul.f32 %v989, %v1022
    %v1046 = vmul.f32 %v990, %v1022
    %v1047 = vsel %vm97, %v1031, 0.0
    %v1048 = vsel %vm97, %v1033, 0.0
    %v1049 = vadd.f32 %v1047, %v1048
    %v1050 = vsel %vm97, %v1035, 0.0
    %v1051 = vadd.f32 %v1049, %v1050
    %v1052 = vsel %vm97, %v1037, 0.0
    %v1053 = vadd.f32 %v1051, %v1052
    %v1054 = vsel %vm97, %v1039, 0.0
    %v1055 = vadd.f32 %v1053, %v1054
    %v1056 = vsel %vm97, %v1041, 0.0
    %v1057 = vadd.f32 %v1055, %v1056
    %v1058 = vsel %vm97, %v1043, 0.0
    %v1059 = vadd.f32 %v1057, %v1058
    %v1060 = vsel %vm97, %v1045, 0.0
    %v1061 = vadd.f32 %v1059, %v1060
    %v1062 = vsel %vm97, %v1032, 0.0
    %v1063 = vsel %vm97, %v1034, 0.0
    %v1064 = vadd.f32 %v1062, %v1063
    %v1065 = vsel %vm97, %v1036, 0.0
    %v1066 = vadd.f32 %v1064, %v1065
    %v1067 = vsel %vm97, %v1038, 0.0
    %v1068 = vadd.f32 %v1066, %v1067
    %v1069 = vsel %vm97, %v1040, 0.0
    %v1070 = vadd.f32 %v1068, %v1069
    %v1071 = vsel %vm97, %v1042, 0.0
    %v1072 = vadd.f32 %v1070, %v1071
    %v1073 = vsel %vm97, %v1044, 0.0
    %v1074 = vadd.f32 %v1072, %v1073
    %v1075 = vsel %vm97, %v1046, 0.0
    %v1076 = vadd.f32 %v1074, %v1075
    %v1077 = vadd.f32 %v1061, %v90
    %v1078 = vadd.f32 %v1076, %v91
    %v1079 = vxor.u32 %v1077, 2147483648
    %v1080 = vxor.u32 %v1078, 2147483648
    %v1081 = vmul.f32 %v1079, 1.442695
    %v1082 = vpow.pop %v1081
    %v1083 = vmul.f32 %v1080, 1.442695
    %v1084 = vpow.pop %v1083
    %v1085 = vadd.f32 %v1082, 1.0
    %v1086 = vadd.f32 %v1084, 1.0
    %v1087 = vrcp.pop %v1085
    %v1088 = vmul.f32 1.0, %v1087
    %v1089 = vrcp.pop %v1086
    %v1090 = vmul.f32 1.0, %v1089
    %v1091 = vld [vmem:[%s3] sm:$0xff]
    %v1092 = vmul.f32 %v1088, %v1091
    %v1093 = vld [vmem:[%s2] sm:$0xff]
    %v1094 = vadd.f32 %v1092, %v1093
    %v1095 = vld [vmem:[%s1] sm:$0x3]
    %v1097 = vsel %vm97, %v1095, 0
    %1099 = vmatprep.subr.mxu0 0.0
    %1100 = vmatpush1.msra.mxu0 %v95
    %1101 = vmatprep.subr.mxu0 0.0
    %1102 = vmatpush1.msra.mxu0 %v96
    %1103 = vmatprep.subr.mxu0 0.0
    %1104 = vmatpush1.msra.mxu0 0.0
    %1105 = vmatprep.subr.mxu0 0.0
    %1106 = vmatpush1.msra.mxu0 0.0
    %1107 = vmatprep.subr.mxu0 0.0
    %1108 = vmatpush1.msra.mxu0 0.0
    %1109 = vmatprep.subr.mxu0 0.0
    %1110 = vmatpush1.msra.mxu0 0.0
    %1111 = vmatprep.subr.mxu0 0.0
    %1112 = vmatpush1.msra.mxu0 0.0
    %1113 = vmatprep.subr.mxu0 0.0
    %1114 = vmatpush1.msra.mxu0 0.0
    %1115 = vmatprep.subr.mxu0 0.0
    %1116 = vmatpush1.msra.mxu0 0.0
    %1117 = vmatprep.subr.mxu0 0.0
    %1118 = vmatpush1.msra.mxu0 0.0
    %1119 = vmatprep.subr.mxu0 0.0
    %1120 = vmatpush1.msra.mxu0 0.0
    %1121 = vmatprep.subr.mxu0 0.0
    %1122 = vmatpush1.msra.mxu0 0.0
    %1123 = vmatprep.subr.mxu0 0.0
    %1124 = vmatpush1.msra.mxu0 0.0
    %1125 = vmatprep.subr.mxu0 0.0
    %1126 = vmatpush1.msra.mxu0 0.0
    %1127 = vmatprep.subr.mxu0 0.0
    %1128 = vmatpush1.msra.mxu0 0.0
    %1129 = vmatprep.subr.mxu0 0.0
    %1130 = vmatpush1.msra.mxu0 0.0
    %1131 = vmatprep.subr.mxu0 0.0
    %1132 = vmatpush1.msra.mxu0 0.0
    %1133 = vmatprep.subr.mxu0 0.0
    %1134 = vmatpush1.msra.mxu0 0.0
    %1135 = vmatprep.subr.mxu0 0.0
    %1136 = vmatpush1.msra.mxu0 0.0
    %1137 = vmatprep.subr.mxu0 0.0
    %1138 = vmatpush1.msra.mxu0 0.0
    %1139 = vmatprep.subr.mxu0 0.0
    %1140 = vmatpush1.msra.mxu0 0.0
    %1141 = vmatprep.subr.mxu0 0.0
    %1142 = vmatpush1.msra.mxu0 0.0
    %1143 = vmatprep.subr.mxu0 0.0
    %1144 = vmatpush1.msra.mxu0 0.0
    %1145 = vmatprep.subr.mxu0 0.0
    %1146 = vmatpush1.msra.mxu0 0.0
    %1147 = vmatprep.subr.mxu0 0.0
    %1148 = vmatpush1.msra.mxu0 0.0
    %1149 = vmatprep.subr.mxu0 0.0
    %1150 = vmatpush1.msra.mxu0 0.0
    %1151 = vmatprep.subr.mxu0 0.0
    %1152 = vmatpush1.msra.mxu0 0.0
    %1153 = vmatprep.subr.mxu0 0.0
    %1154 = vmatpush1.msra.mxu0 0.0
    %1155 = vmatprep.subr.mxu0 0.0
    %1156 = vmatpush1.msra.mxu0 0.0
    %1157 = vmatprep.subr.mxu0 0.0
    %1158 = vmatpush1.msra.mxu0 0.0
    %1159 = vmatprep.subr.mxu0 0.0
    %1160 = vmatpush1.msra.mxu0 0.0
    %1161 = vmatprep.subr.mxu0 0.0
    %1162 = vmatpush1.msra.mxu0 0.0
    %1163 = vmatprep.mubr.f32.mxu0 0.0
    %1164 = vmatmul.mubr.f32.gmra.mrb[0].mxu0 %v1097
    %v1165 = vpop.f32.mrb[0].mxu0
    %v1166 = vadd.f32 0.0, %v1165
    %v1167 = vpop.f32.mrb[0].mxu0
    %1168 = vdwg.mxu0
    %v1170 = vsel %vm97, %v1094, 0
    %1172 = vmatprep.subr.mxu0 0.0
    %1173 = vmatpush1.msra.mxu0 %v95
    %1174 = vmatprep.subr.mxu0 0.0
    %1175 = vmatpush1.msra.mxu0 %v96
    %1176 = vmatprep.subr.mxu0 0.0
    %1177 = vmatpush1.msra.mxu0 0.0
    %1178 = vmatprep.subr.mxu0 0.0
    %1179 = vmatpush1.msra.mxu0 0.0
    %1180 = vmatprep.subr.mxu0 0.0
    %1181 = vmatpush1.msra.mxu0 0.0
    %1182 = vmatprep.subr.mxu0 0.0
    %1183 = vmatpush1.msra.mxu0 0.0
    %1184 = vmatprep.subr.mxu0 0.0
    %1185 = vmatpush1.msra.mxu0 0.0
    %1186 = vmatprep.subr.mxu0 0.0
    %1187 = vmatpush1.msra.mxu0 0.0
    %1188 = vmatprep.subr.mxu0 0.0
    %1189 = vmatpush1.msra.mxu0 0.0
    %1190 = vmatprep.subr.mxu0 0.0
    %1191 = vmatpush1.msra.mxu0 0.0
    %1192 = vmatprep.subr.mxu0 0.0
    %1193 = vmatpush1.msra.mxu0 0.0
    %1194 = vmatprep.subr.mxu0 0.0
    %1195 = vmatpush1.msra.mxu0 0.0
    %1196 = vmatprep.subr.mxu0 0.0
    %1197 = vmatpush1.msra.mxu0 0.0
    %1198 = vmatprep.subr.mxu0 0.0
    %1199 = vmatpush1.msra.mxu0 0.0
    %1200 = vmatprep.subr.mxu0 0.0
    %1201 = vmatpush1.msra.mxu0 0.0
    %1202 = vmatprep.subr.mxu0 0.0
    %1203 = vmatpush1.msra.mxu0 0.0
    %1204 = vmatprep.subr.mxu0 0.0
    %1205 = vmatpush1.msra.mxu0 0.0
    %1206 = vmatprep.subr.mxu0 0.0
    %1207 = vmatpush1.msra.mxu0 0.0
    %1208 = vmatprep.subr.mxu0 0.0
    %1209 = vmatpush1.msra.mxu0 0.0
    %1210 = vmatprep.subr.mxu0 0.0
    %1211 = vmatpush1.msra.mxu0 0.0
    %1212 = vmatprep.subr.mxu0 0.0
    %1213 = vmatpush1.msra.mxu0 0.0
    %1214 = vmatprep.subr.mxu0 0.0
    %1215 = vmatpush1.msra.mxu0 0.0
    %1216 = vmatprep.subr.mxu0 0.0
    %1217 = vmatpush1.msra.mxu0 0.0
    %1218 = vmatprep.subr.mxu0 0.0
    %1219 = vmatpush1.msra.mxu0 0.0
    %1220 = vmatprep.subr.mxu0 0.0
    %1221 = vmatpush1.msra.mxu0 0.0
    %1222 = vmatprep.subr.mxu0 0.0
    %1223 = vmatpush1.msra.mxu0 0.0
    %1224 = vmatprep.subr.mxu0 0.0
    %1225 = vmatpush1.msra.mxu0 0.0
    %1226 = vmatprep.subr.mxu0 0.0
    %1227 = vmatpush1.msra.mxu0 0.0
    %1228 = vmatprep.subr.mxu0 0.0
    %1229 = vmatpush1.msra.mxu0 0.0
    %1230 = vmatprep.subr.mxu0 0.0
    %1231 = vmatpush1.msra.mxu0 0.0
    %1232 = vmatprep.subr.mxu0 0.0
    %1233 = vmatpush1.msra.mxu0 0.0
    %1234 = vmatprep.subr.mxu0 0.0
    %1235 = vmatpush1.msra.mxu0 0.0
    %1236 = vmatprep.mubr.f32.mxu0 0.0
    %1237 = vmatmul.mubr.f32.gmra.mrb[0].mxu0 %v1170
    %v1238 = vpop.f32.mrb[0].mxu0
    %v1239 = vadd.f32 0.0, %v1238
    %v1240 = vpop.f32.mrb[0].mxu0
    %1241 = vdwg.mxu0
    %v1242 = vld [vmem:[%s7] sm:$0xff]
    %v1243 = vld [vmem:[%s7 + $0x8] sm:$0xff]
    %v1244 = vld [vmem:[%s7 + $0x10] sm:$0xff]
    %v1245 = vld [vmem:[%s7 + $0x18] sm:$0xff]
    %v1246 = vld [vmem:[%s7 + $0x20] sm:$0xff]
    %v1247 = vld [vmem:[%s7 + $0x28] sm:$0xff]
    %v1248 = vld [vmem:[%s7 + $0x30] sm:$0xff]
    %v1249 = vld [vmem:[%s7 + $0x38] sm:$0xff]
    %v1250 = vld [vmem:[%s8] sm:$0xff]
    %v1251 = vld [vmem:[%s8 + $0x8] sm:$0xff]
    %v1252 = vld [vmem:[%s8 + $0x10] sm:$0xff]
    %v1253 = vld [vmem:[%s8 + $0x18] sm:$0xff]
    %v1254 = vld [vmem:[%s8 + $0x20] sm:$0xff]
    %v1255 = vld [vmem:[%s8 + $0x28] sm:$0xff]
    %v1256 = vld [vmem:[%s8 + $0x30] sm:$0xff]
    %v1257 = vld [vmem:[%s8 + $0x38] sm:$0xff]
    %vm1258 = vcmask 64512
    %v1260 = vsel %vm1258, %v1250, 0
    %v1263 = vsel %vm1258, %v1251, 0
    %v1266 = vsel %vm1258, %v1252, 0
    %v1269 = vsel %vm1258, %v1253, 0
    %v1272 = vsel %vm1258, %v1254, 0
    %v1275 = vsel %vm1258, %v1255, 0
    %v1278 = vsel %vm1258, %v1256, 0
    %v1281 = vsel %vm1258, %v1257, 0
    %1283 = vmatprep.subr.mxu0 0.0
    %1284 = vmatpush1.msra.mxu0 %v1239
    %1285 = vmatprep.subr.mxu0 0.0
    %1286 = vmatpush1.msra.mxu0 0.0
    %1287 = vmatprep.subr.mxu0 0.0
    %1288 = vmatpush1.msra.mxu0 0.0
    %1289 = vmatprep.subr.mxu0 0.0
    %1290 = vmatpush1.msra.mxu0 0.0
    %1291 = vmatprep.subr.mxu0 0.0
    %1292 = vmatpush1.msra.mxu0 0.0
    %1293 = vmatprep.subr.mxu0 0.0
    %1294 = vmatpush1.msra.mxu0 0.0
    %1295 = vmatprep.subr.mxu0 0.0
    %1296 = vmatpush1.msra.mxu0 0.0
    %1297 = vmatprep.subr.mxu0 0.0
    %1298 = vmatpush1.msra.mxu0 0.0
    %1299 = vmatprep.subr.mxu0 0.0
    %1300 = vmatpush1.msra.mxu0 0.0
    %1301 = vmatprep.subr.mxu0 0.0
    %1302 = vmatpush1.msra.mxu0 0.0
    %1303 = vmatprep.subr.mxu0 0.0
    %1304 = vmatpush1.msra.mxu0 0.0
    %1305 = vmatprep.subr.mxu0 0.0
    %1306 = vmatpush1.msra.mxu0 0.0
    %1307 = vmatprep.subr.mxu0 0.0
    %1308 = vmatpush1.msra.mxu0 0.0
    %1309 = vmatprep.subr.mxu0 0.0
    %1310 = vmatpush1.msra.mxu0 0.0
    %1311 = vmatprep.subr.mxu0 0.0
    %1312 = vmatpush1.msra.mxu0 0.0
    %1313 = vmatprep.subr.mxu0 0.0
    %1314 = vmatpush1.msra.mxu0 0.0
    %1315 = vmatprep.subr.mxu0 0.0
    %1316 = vmatpush1.msra.mxu0 0.0
    %1317 = vmatprep.subr.mxu0 0.0
    %1318 = vmatpush1.msra.mxu0 0.0
    %1319 = vmatprep.subr.mxu0 0.0
    %1320 = vmatpush1.msra.mxu0 0.0
    %1321 = vmatprep.subr.mxu0 0.0
    %1322 = vmatpush1.msra.mxu0 0.0
    %1323 = vmatprep.subr.mxu0 0.0
    %1324 = vmatpush1.msra.mxu0 0.0
    %1325 = vmatprep.subr.mxu0 0.0
    %1326 = vmatpush1.msra.mxu0 0.0
    %1327 = vmatprep.subr.mxu0 0.0
    %1328 = vmatpush1.msra.mxu0 0.0
    %1329 = vmatprep.subr.mxu0 0.0
    %1330 = vmatpush1.msra.mxu0 0.0
    %1331 = vmatprep.subr.mxu0 0.0
    %1332 = vmatpush1.msra.mxu0 0.0
    %1333 = vmatprep.subr.mxu0 0.0
    %1334 = vmatpush1.msra.mxu0 0.0
    %1335 = vmatprep.subr.mxu0 0.0
    %1336 = vmatpush1.msra.mxu0 0.0
    %1337 = vmatprep.subr.mxu0 0.0
    %1338 = vmatpush1.msra.mxu0 0.0
    %1339 = vmatprep.subr.mxu0 0.0
    %1340 = vmatpush1.msra.mxu0 0.0
    %1341 = vmatprep.subr.mxu0 0.0
    %1342 = vmatpush1.msra.mxu0 0.0
    %1343 = vmatprep.subr.mxu0 0.0
    %1344 = vmatpush1.msra.mxu0 0.0
    %1345 = vmatprep.subr.mxu0 0.0
    %1346 = vmatpush1.msra.mxu0 0.0
    %1347 = vmatprep.mubr.f32.mxu0 0.0
    %1348 = vmatmul.mubr.f32.gmra.mrb[0].mxu0 %v1260
    %v1349 = vpop.f32.mrb[0].mxu0
    %v1350 = vadd.f32 0.0, %v1349
    %v1351 = vpop.f32.mrb[0].mxu0
    %1352 = vmatprep.mubr.f32.mxu0 0.0
    %1353 = vmatmul.mubr.f32.gmra.mrb[0].mxu0 %v1263
    %v1354 = vpop.f32.mrb[0].mxu0
    %v1355 = vadd.f32 0.0, %v1354
    %v1356 = vpop.f32.mrb[0].mxu0
    %1357 = vmatprep.mubr.f32.mxu0 0.0
    %1358 = vmatmul.mubr.f32.gmra.mrb[0].mxu0 %v1266
    %v1359 = vpop.f32.mrb[0].mxu0
    %v1360 = vadd.f32 0.0, %v1359
    %v1361 = vpop.f32.mrb[0].mxu0
    %1362 = vmatprep.mubr.f32.mxu0 0.0
    %1363 = vmatmul.mubr.f32.gmra.mrb[0].mxu0 %v1269
    %v1364 = vpop.f32.mrb[0].mxu0
    %v1365 = vadd.f32 0.0, %v1364
    %v1366 = vpop.f32.mrb[0].mxu0
    %1367 = vmatprep.mubr.f32.mxu0 0.0
    %1368 = vmatmul.mubr.f32.gmra.mrb[0].mxu0 %v1272
    %v1369 = vpop.f32.mrb[0].mxu0
    %v1370 = vadd.f32 0.0, %v1369
    %v1371 = vpop.f32.mrb[0].mxu0
    %1372 = vmatprep.mubr.f32.mxu0 0.0
    %1373 = vmatmul.mubr.f32.gmra.mrb[0].mxu0 %v1275
    %v1374 = vpop.f32.mrb[0].mxu0
    %v1375 = vadd.f32 0.0, %v1374
    %v1376 = vpop.f32.mrb[0].mxu0
    %1377 = vmatprep.mubr.f32.mxu0 0.0
    %1378 = vmatmul.mubr.f32.gmra.mrb[0].mxu0 %v1278
    %v1379 = vpop.f32.mrb[0].mxu0
    %v1380 = vadd.f32 0.0, %v1379
    %v1381 = vpop.f32.mrb[0].mxu0
    %1382 = vmatprep.mubr.f32.mxu0 0.0
    %1383 = vmatmul.mubr.f32.gmra.mrb[0].mxu0 %v1281
    %v1384 = vpop.f32.mrb[0].mxu0
    %v1385 = vadd.f32 0.0, %v1384
    %v1386 = vpop.f32.mrb[0].mxu0
    %1387 = vdwg.mxu0
    %vm1388 = vcmask 15360
    %v1390 = vsel %vm1388, %v1242, 0
    %v1393 = vsel %vm1388, %v1243, 0
    %v1396 = vsel %vm1388, %v1244, 0
    %v1399 = vsel %vm1388, %v1245, 0
    %v1402 = vsel %vm1388, %v1246, 0
    %v1405 = vsel %vm1388, %v1247, 0
    %v1408 = vsel %vm1388, %v1248, 0
    %v1411 = vsel %vm1388, %v1249, 0
    %v1414 = vsel %vm339, %v1166, 0
    %1416 = vmatprep.subr.mxu0 0.0
    %1417 = vmatpush1.msra.mxu0 %v1414
    %1418 = vmatprep.subr.mxu0 0.0
    %1419 = vmatpush1.msra.mxu0 0.0
    %1420 = vmatprep.subr.mxu0 0.0
    %1421 = vmatpush1.msra.mxu0 0.0
    %1422 = vmatprep.subr.mxu0 0.0
    %1423 = vmatpush1.msra.mxu0 0.0
    %1424 = vmatprep.subr.mxu0 0.0
    %1425 = vmatpush1.msra.mxu0 0.0
    %1426 = vmatprep.subr.mxu0 0.0
    %1427 = vmatpush1.msra.mxu0 0.0
    %1428 = vmatprep.subr.mxu0 0.0
    %1429 = vmatpush1.msra.mxu0 0.0
    %1430 = vmatprep.subr.mxu0 0.0
    %1431 = vmatpush1.msra.mxu0 0.0
    %1432 = vmatprep.subr.mxu0 0.0
    %1433 = vmatpush1.msra.mxu0 0.0
    %1434 = vmatprep.subr.mxu0 0.0
    %1435 = vmatpush1.msra.mxu0 0.0
    %1436 = vmatprep.subr.mxu0 0.0
    %1437 = vmatpush1.msra.mxu0 0.0
    %1438 = vmatprep.subr.mxu0 0.0
    %1439 = vmatpush1.msra.mxu0 0.0
    %1440 = vmatprep.subr.mxu0 0.0
    %1441 = vmatpush1.msra.mxu0 0.0
    %1442 = vmatprep.subr.mxu0 0.0
    %1443 = vmatpush1.msra.mxu0 0.0
    %1444 = vmatprep.subr.mxu0 0.0
    %1445 = vmatpush1.msra.mxu0 0.0
    %1446 = vmatprep.subr.mxu0 0.0
    %1447 = vmatpush1.msra.mxu0 0.0
    %1448 = vmatprep.subr.mxu0 0.0
    %1449 = vmatpush1.msra.mxu0 0.0
    %1450 = vmatprep.subr.mxu0 0.0
    %1451 = vmatpush1.msra.mxu0 0.0
    %1452 = vmatprep.subr.mxu0 0.0
    %1453 = vmatpush1.msra.mxu0 0.0
    %1454 = vmatprep.subr.mxu0 0.0
    %1455 = vmatpush1.msra.mxu0 0.0
    %1456 = vmatprep.subr.mxu0 0.0
    %1457 = vmatpush1.msra.mxu0 0.0
    %1458 = vmatprep.subr.mxu0 0.0
    %1459 = vmatpush1.msra.mxu0 0.0
    %1460 = vmatprep.subr.mxu0 0.0
    %1461 = vmatpush1.msra.mxu0 0.0
    %1462 = vmatprep.subr.mxu0 0.0
    %1463 = vmatpush1.msra.mxu0 0.0
    %1464 = vmatprep.subr.mxu0 0.0
    %1465 = vmatpush1.msra.mxu0 0.0
    %1466 = vmatprep.subr.mxu0 0.0
    %1467 = vmatpush1.msra.mxu0 0.0
    %1468 = vmatprep.subr.mxu0 0.0
    %1469 = vmatpush1.msra.mxu0 0.0
    %1470 = vmatprep.subr.mxu0 0.0
    %1471 = vmatpush1.msra.mxu0 0.0
    %1472 = vmatprep.subr.mxu0 0.0
    %1473 = vmatpush1.msra.mxu0 0.0
    %1474 = vmatprep.subr.mxu0 0.0
    %1475 = vmatpush1.msra.mxu0 0.0
    %1476 = vmatprep.subr.mxu0 0.0
    %1477 = vmatpush1.msra.mxu0 0.0
    %1478 = vmatprep.subr.mxu0 0.0
    %1479 = vmatpush1.msra.mxu0 0.0
    %1480 = vmatprep.mubr.f32.mxu0 0.0
    %1481 = vmatmul.mubr.f32.gmra.mrb[0].mxu0 %v1390
    %v1482 = vpop.f32.mrb[0].mxu0
    %v1483 = vadd.f32 %v1350, %v1482
    %v1484 = vpop.f32.mrb[0].mxu0
    %1485 = vmatprep.mubr.f32.mxu0 0.0
    %1486 = vmatmul.mubr.f32.gmra.mrb[0].mxu0 %v1393
    %v1487 = vpop.f32.mrb[0].mxu0
    %v1488 = vadd.f32 %v1355, %v1487
    %v1489 = vpop.f32.mrb[0].mxu0
    %1490 = vmatprep.mubr.f32.mxu0 0.0
    %1491 = vmatmul.mubr.f32.gmra.mrb[0].mxu0 %v1396
    %v1492 = vpop.f32.mrb[0].mxu0
    %v1493 = vadd.f32 %v1360, %v1492
    %v1494 = vpop.f32.mrb[0].mxu0
    %1495 = vmatprep.mubr.f32.mxu0 0.0
    %1496 = vmatmul.mubr.f32.gmra.mrb[0].mxu0 %v1399
    %v1497 = vpop.f32.mrb[0].mxu0
    %v1498 = vadd.f32 %v1365, %v1497
    %v1499 = vpop.f32.mrb[0].mxu0
    %1500 = vmatprep.mubr.f32.mxu0 0.0
    %1501 = vmatmul.mubr.f32.gmra.mrb[0].mxu0 %v1402
    %v1502 = vpop.f32.mrb[0].mxu0
    %v1503 = vadd.f32 %v1370, %v1502
    %v1504 = vpop.f32.mrb[0].mxu0
    %1505 = vmatprep.mubr.f32.mxu0 0.0
    %1506 = vmatmul.mubr.f32.gmra.mrb[0].mxu0 %v1405
    %v1507 = vpop.f32.mrb[0].mxu0
    %v1508 = vadd.f32 %v1375, %v1507
    %v1509 = vpop.f32.mrb[0].mxu0
    %1510 = vmatprep.mubr.f32.mxu0 0.0
    %1511 = vmatmul.mubr.f32.gmra.mrb[0].mxu0 %v1408
    %v1512 = vpop.f32.mrb[0].mxu0
    %v1513 = vadd.f32 %v1380, %v1512
    %v1514 = vpop.f32.mrb[0].mxu0
    %1515 = vmatprep.mubr.f32.mxu0 0.0
    %1516 = vmatmul.mubr.f32.gmra.mrb[0].mxu0 %v1411
    %v1517 = vpop.f32.mrb[0].mxu0
    %v1518 = vadd.f32 %v1385, %v1517
    %v1519 = vpop.f32.mrb[0].mxu0
    %1520 = vdwg.mxu0
    %1521 = vmatprep.subr.mxu0 0.0
    %1522 = vmatpush1.msra.mxu0 %v196
    %1523 = vmatprep.subr.mxu0 0.0
    %1524 = vmatpush1.msra.mxu0 %v197
    %1525 = vmatprep.subr.mxu0 0.0
    %1526 = vmatpush1.msra.mxu0 0.0
    %1527 = vmatprep.subr.mxu0 0.0
    %1528 = vmatpush1.msra.mxu0 0.0
    %1529 = vmatprep.subr.mxu0 0.0
    %1530 = vmatpush1.msra.mxu0 0.0
    %1531 = vmatprep.subr.mxu0 0.0
    %1532 = vmatpush1.msra.mxu0 0.0
    %1533 = vmatprep.subr.mxu0 0.0
    %1534 = vmatpush1.msra.mxu0 0.0
    %1535 = vmatprep.subr.mxu0 0.0
    %1536 = vmatpush1.msra.mxu0 0.0
    %1537 = vmatprep.subr.mxu0 0.0
    %1538 = vmatpush1.msra.mxu0 0.0
    %1539 = vmatprep.subr.mxu0 0.0
    %1540 = vmatpush1.msra.mxu0 0.0
    %1541 = vmatprep.subr.mxu0 0.0
    %1542 = vmatpush1.msra.mxu0 0.0
    %1543 = vmatprep.subr.mxu0 0.0
    %1544 = vmatpush1.msra.mxu0 0.0
    %1545 = vmatprep.subr.mxu0 0.0
    %1546 = vmatpush1.msra.mxu0 0.0
    %1547 = vmatprep.subr.mxu0 0.0
    %1548 = vmatpush1.msra.mxu0 0.0
    %1549 = vmatprep.subr.mxu0 0.0
    %1550 = vmatpush1.msra.mxu0 0.0
    %1551 = vmatprep.subr.mxu0 0.0
    %1552 = vmatpush1.msra.mxu0 0.0
    %1553 = vmatprep.subr.mxu0 0.0
    %1554 = vmatpush1.msra.mxu0 0.0
    %1555 = vmatprep.subr.mxu0 0.0
    %1556 = vmatpush1.msra.mxu0 0.0
    %1557 = vmatprep.subr.mxu0 0.0
    %1558 = vmatpush1.msra.mxu0 0.0
    %1559 = vmatprep.subr.mxu0 0.0
    %1560 = vmatpush1.msra.mxu0 0.0
    %1561 = vmatprep.subr.mxu0 0.0
    %1562 = vmatpush1.msra.mxu0 0.0
    %1563 = vmatprep.subr.mxu0 0.0
    %1564 = vmatpush1.msra.mxu0 0.0
    %1565 = vmatprep.subr.mxu0 0.0
    %1566 = vmatpush1.msra.mxu0 0.0
    %1567 = vmatprep.subr.mxu0 0.0
    %1568 = vmatpush1.msra.mxu0 0.0
    %1569 = vmatprep.subr.mxu0 0.0
    %1570 = vmatpush1.msra.mxu0 0.0
    %1571 = vmatprep.subr.mxu0 0.0
    %1572 = vmatpush1.msra.mxu0 0.0
    %1573 = vmatprep.subr.mxu0 0.0
    %1574 = vmatpush1.msra.mxu0 0.0
    %1575 = vmatprep.subr.mxu0 0.0
    %1576 = vmatpush1.msra.mxu0 0.0
    %1577 = vmatprep.subr.mxu0 0.0
    %1578 = vmatpush1.msra.mxu0 0.0
    %1579 = vmatprep.subr.mxu0 0.0
    %1580 = vmatpush1.msra.mxu0 0.0
    %1581 = vmatprep.subr.mxu0 0.0
    %1582 = vmatpush1.msra.mxu0 0.0
    %1583 = vmatprep.subr.mxu0 0.0
    %1584 = vmatpush1.msra.mxu0 0.0
    %1585 = vmatprep.mubr.f32.mxu0 0.0
    %1586 = vmatmul.mubr.f32.gmra.mrb[0].mxu0 %v1097
    %v1587 = vpop.f32.mrb[0].mxu0
    %v1588 = vadd.f32 0.0, %v1587
    %v1589 = vpop.f32.mrb[0].mxu0
    %1590 = vdwg.mxu0
    %1591 = vmatprep.subr.mxu0 0.0
    %1592 = vmatpush1.msra.mxu0 %v196
    %1593 = vmatprep.subr.mxu0 0.0
    %1594 = vmatpush1.msra.mxu0 %v197
    %1595 = vmatprep.subr.mxu0 0.0
    %1596 = vmatpush1.msra.mxu0 0.0
    %1597 = vmatprep.subr.mxu0 0.0
    %1598 = vmatpush1.msra.mxu0 0.0
    %1599 = vmatprep.subr.mxu0 0.0
    %1600 = vmatpush1.msra.mxu0 0.0
    %1601 = vmatprep.subr.mxu0 0.0
    %1602 = vmatpush1.msra.mxu0 0.0
    %1603 = vmatprep.subr.mxu0 0.0
    %1604 = vmatpush1.msra.mxu0 0.0
    %1605 = vmatprep.subr.mxu0 0.0
    %1606 = vmatpush1.msra.mxu0 0.0
    %1607 = vmatprep.subr.mxu0 0.0
    %1608 = vmatpush1.msra.mxu0 0.0
    %1609 = vmatprep.subr.mxu0 0.0
    %1610 = vmatpush1.msra.mxu0 0.0
    %1611 = vmatprep.subr.mxu0 0.0
    %1612 = vmatpush1.msra.mxu0 0.0
    %1613 = vmatprep.subr.mxu0 0.0
    %1614 = vmatpush1.msra.mxu0 0.0
    %1615 = vmatprep.subr.mxu0 0.0
    %1616 = vmatpush1.msra.mxu0 0.0
    %1617 = vmatprep.subr.mxu0 0.0
    %1618 = vmatpush1.msra.mxu0 0.0
    %1619 = vmatprep.subr.mxu0 0.0
    %1620 = vmatpush1.msra.mxu0 0.0
    %1621 = vmatprep.subr.mxu0 0.0
    %1622 = vmatpush1.msra.mxu0 0.0
    %1623 = vmatprep.subr.mxu0 0.0
    %1624 = vmatpush1.msra.mxu0 0.0
    %1625 = vmatprep.subr.mxu0 0.0
    %1626 = vmatpush1.msra.mxu0 0.0
    %1627 = vmatprep.subr.mxu0 0.0
    %1628 = vmatpush1.msra.mxu0 0.0
    %1629 = vmatprep.subr.mxu0 0.0
    %1630 = vmatpush1.msra.mxu0 0.0
    %1631 = vmatprep.subr.mxu0 0.0
    %1632 = vmatpush1.msra.mxu0 0.0
    %1633 = vmatprep.subr.mxu0 0.0
    %1634 = vmatpush1.msra.mxu0 0.0
    %1635 = vmatprep.subr.mxu0 0.0
    %1636 = vmatpush1.msra.mxu0 0.0
    %1637 = vmatprep.subr.mxu0 0.0
    %1638 = vmatpush1.msra.mxu0 0.0
    %1639 = vmatprep.subr.mxu0 0.0
    %1640 = vmatpush1.msra.mxu0 0.0
    %1641 = vmatprep.subr.mxu0 0.0
    %1642 = vmatpush1.msra.mxu0 0.0
    %1643 = vmatprep.subr.mxu0 0.0
    %1644 = vmatpush1.msra.mxu0 0.0
    %1645 = vmatprep.subr.mxu0 0.0
    %1646 = vmatpush1.msra.mxu0 0.0
    %1647 = vmatprep.subr.mxu0 0.0
    %1648 = vmatpush1.msra.mxu0 0.0
    %1649 = vmatprep.subr.mxu0 0.0
    %1650 = vmatpush1.msra.mxu0 0.0
    %1651 = vmatprep.subr.mxu0 0.0
    %1652 = vmatpush1.msra.mxu0 0.0
    %1653 = vmatprep.subr.mxu0 0.0
    %1654 = vmatpush1.msra.mxu0 0.0
    %1655 = vmatprep.mubr.f32.mxu0 0.0
    %1656 = vmatmul.mubr.f32.gmra.mrb[0].mxu0 %v1170
    %v1657 = vpop.f32.mrb[0].mxu0
    %v1658 = vadd.f32 0.0, %v1657
    %v1659 = vpop.f32.mrb[0].mxu0
    %1660 = vdwg.mxu0
    %s1661 = scalar_lea.vmem %s7, 64
    %v1662 = vld [vmem:[%s1661] sm:$0xff]
    %v1663 = vld [vmem:[%s1661 + $0x8] sm:$0xff]
    %v1664 = vld [vmem:[%s1661 + $0x10] sm:$0xff]
    %v1665 = vld [vmem:[%s1661 + $0x18] sm:$0xff]
    %v1666 = vld [vmem:[%s1661 + $0x20] sm:$0xff]
    %v1667 = vld [vmem:[%s1661 + $0x28] sm:$0xff]
    %v1668 = vld [vmem:[%s1661 + $0x30] sm:$0xff]
    %v1669 = vld [vmem:[%s1661 + $0x38] sm:$0xff]
    %v1671 = vsel %vm1388, %v1662, 0
    %v1674 = vsel %vm1388, %v1663, 0
    %v1677 = vsel %vm1388, %v1664, 0
    %v1680 = vsel %vm1388, %v1665, 0
    %v1683 = vsel %vm1388, %v1666, 0
    %v1686 = vsel %vm1388, %v1667, 0
    %v1689 = vsel %vm1388, %v1668, 0
    %v1692 = vsel %vm1388, %v1669, 0
    %v1695 = vsel %vm339, %v1588, 0
    %1697 = vmatprep.subr.mxu0 0.0
    %1698 = vmatpush1.msra.mxu0 %v1695
    %1699 = vmatprep.subr.mxu0 0.0
    %1700 = vmatpush1.msra.mxu0 0.0
    %1701 = vmatprep.subr.mxu0 0.0
    %1702 = vmatpush1.msra.mxu0 0.0
    %1703 = vmatprep.subr.mxu0 0.0
    %1704 = vmatpush1.msra.mxu0 0.0
    %1705 = vmatprep.subr.mxu0 0.0
    %1706 = vmatpush1.msra.mxu0 0.0
    %1707 = vmatprep.subr.mxu0 0.0
    %1708 = vmatpush1.msra.mxu0 0.0
    %1709 = vmatprep.subr.mxu0 0.0
    %1710 = vmatpush1.msra.mxu0 0.0
    %1711 = vmatprep.subr.mxu0 0.0
    %1712 = vmatpush1.msra.mxu0 0.0
    %1713 = vmatprep.subr.mxu0 0.0
    %1714 = vmatpush1.msra.mxu0 0.0
    %1715 = vmatprep.subr.mxu0 0.0
    %1716 = vmatpush1.msra.mxu0 0.0
    %1717 = vmatprep.subr.mxu0 0.0
    %1718 = vmatpush1.msra.mxu0 0.0
    %1719 = vmatprep.subr.mxu0 0.0
    %1720 = vmatpush1.msra.mxu0 0.0
    %1721 = vmatprep.subr.mxu0 0.0
    %1722 = vmatpush1.msra.mxu0 0.0
    %1723 = vmatprep.subr.mxu0 0.0
    %1724 = vmatpush1.msra.mxu0 0.0
    %1725 = vmatprep.subr.mxu0 0.0
    %1726 = vmatpush1.msra.mxu0 0.0
    %1727 = vmatprep.subr.mxu0 0.0
    %1728 = vmatpush1.msra.mxu0 0.0
    %1729 = vmatprep.subr.mxu0 0.0
    %1730 = vmatpush1.msra.mxu0 0.0
    %1731 = vmatprep.subr.mxu0 0.0
    %1732 = vmatpush1.msra.mxu0 0.0
    %1733 = vmatprep.subr.mxu0 0.0
    %1734 = vmatpush1.msra.mxu0 0.0
    %1735 = vmatprep.subr.mxu0 0.0
    %1736 = vmatpush1.msra.mxu0 0.0
    %1737 = vmatprep.subr.mxu0 0.0
    %1738 = vmatpush1.msra.mxu0 0.0
    %1739 = vmatprep.subr.mxu0 0.0
    %1740 = vmatpush1.msra.mxu0 0.0
    %1741 = vmatprep.subr.mxu0 0.0
    %1742 = vmatpush1.msra.mxu0 0.0
    %1743 = vmatprep.subr.mxu0 0.0
    %1744 = vmatpush1.msra.mxu0 0.0
    %1745 = vmatprep.subr.mxu0 0.0
    %1746 = vmatpush1.msra.mxu0 0.0
    %1747 = vmatprep.subr.mxu0 0.0
    %1748 = vmatpush1.msra.mxu0 0.0
    %1749 = vmatprep.subr.mxu0 0.0
    %1750 = vmatpush1.msra.mxu0 0.0
    %1751 = vmatprep.subr.mxu0 0.0
    %1752 = vmatpush1.msra.mxu0 0.0
    %1753 = vmatprep.subr.mxu0 0.0
    %1754 = vmatpush1.msra.mxu0 0.0
    %1755 = vmatprep.subr.mxu0 0.0
    %1756 = vmatpush1.msra.mxu0 0.0
    %1757 = vmatprep.subr.mxu0 0.0
    %1758 = vmatpush1.msra.mxu0 0.0
    %1759 = vmatprep.subr.mxu0 0.0
    %1760 = vmatpush1.msra.mxu0 0.0
    %1761 = vmatprep.mubr.f32.mxu0 0.0
    %1762 = vmatmul.mubr.f32.gmra.mrb[0].mxu0 %v1671
    %v1763 = vpop.f32.mrb[0].mxu0
    %v1764 = vadd.f32 0.0, %v1763
    %v1765 = vpop.f32.mrb[0].mxu0
    %1766 = vmatprep.mubr.f32.mxu0 0.0
    %1767 = vmatmul.mubr.f32.gmra.mrb[0].mxu0 %v1674
    %v1768 = vpop.f32.mrb[0].mxu0
    %v1769 = vadd.f32 0.0, %v1768
    %v1770 = vpop.f32.mrb[0].mxu0
    %1771 = vmatprep.mubr.f32.mxu0 0.0
    %1772 = vmatmul.mubr.f32.gmra.mrb[0].mxu0 %v1677
    %v1773 = vpop.f32.mrb[0].mxu0
    %v1774 = vadd.f32 0.0, %v1773
    %v1775 = vpop.f32.mrb[0].mxu0
    %1776 = vmatprep.mubr.f32.mxu0 0.0
    %1777 = vmatmul.mubr.f32.gmra.mrb[0].mxu0 %v1680
    %v1778 = vpop.f32.mrb[0].mxu0
    %v1779 = vadd.f32 0.0, %v1778
    %v1780 = vpop.f32.mrb[0].mxu0
    %1781 = vmatprep.mubr.f32.mxu0 0.0
    %1782 = vmatmul.mubr.f32.gmra.mrb[0].mxu0 %v1683
    %v1783 = vpop.f32.mrb[0].mxu0
    %v1784 = vadd.f32 0.0, %v1783
    %v1785 = vpop.f32.mrb[0].mxu0
    %1786 = vmatprep.mubr.f32.mxu0 0.0
    %1787 = vmatmul.mubr.f32.gmra.mrb[0].mxu0 %v1686
    %v1788 = vpop.f32.mrb[0].mxu0
    %v1789 = vadd.f32 0.0, %v1788
    %v1790 = vpop.f32.mrb[0].mxu0
    %1791 = vmatprep.mubr.f32.mxu0 0.0
    %1792 = vmatmul.mubr.f32.gmra.mrb[0].mxu0 %v1689
    %v1793 = vpop.f32.mrb[0].mxu0
    %v1794 = vadd.f32 0.0, %v1793
    %v1795 = vpop.f32.mrb[0].mxu0
    %1796 = vmatprep.mubr.f32.mxu0 0.0
    %1797 = vmatmul.mubr.f32.gmra.mrb[0].mxu0 %v1692
    %v1798 = vpop.f32.mrb[0].mxu0
    %v1799 = vadd.f32 0.0, %v1798
    %v1800 = vpop.f32.mrb[0].mxu0
    %1801 = vdwg.mxu0
    %v1802 = vadd.f32 %v1483, %v1764
    %v1803 = vadd.f32 %v1488, %v1769
    %v1804 = vadd.f32 %v1493, %v1774
    %v1805 = vadd.f32 %v1498, %v1779
    %v1806 = vadd.f32 %v1503, %v1784
    %v1807 = vadd.f32 %v1508, %v1789
    %v1808 = vadd.f32 %v1513, %v1794
    %v1809 = vadd.f32 %v1518, %v1799
    %s1810 = scalar_lea.vmem %s8, 64
    %v1811 = vld [vmem:[%s1810] sm:$0xff]
    %v1812 = vld [vmem:[%s1810 + $0x8] sm:$0xff]
    %v1813 = vld [vmem:[%s1810 + $0x10] sm:$0xff]
    %v1814 = vld [vmem:[%s1810 + $0x18] sm:$0xff]
    %v1815 = vld [vmem:[%s1810 + $0x20] sm:$0xff]
    %v1816 = vld [vmem:[%s1810 + $0x28] sm:$0xff]
    %v1817 = vld [vmem:[%s1810 + $0x30] sm:$0xff]
    %v1818 = vld [vmem:[%s1810 + $0x38] sm:$0xff]
    %v1820 = vsel %vm1258, %v1811, 0
    %v1823 = vsel %vm1258, %v1812, 0
    %v1826 = vsel %vm1258, %v1813, 0
    %v1829 = vsel %vm1258, %v1814, 0
    %v1832 = vsel %vm1258, %v1815, 0
    %v1835 = vsel %vm1258, %v1816, 0
    %v1838 = vsel %vm1258, %v1817, 0
    %v1841 = vsel %vm1258, %v1818, 0
    %1843 = vmatprep.subr.mxu0 0.0
    %1844 = vmatpush1.msra.mxu0 %v1658
    %1845 = vmatprep.subr.mxu0 0.0
    %1846 = vmatpush1.msra.mxu0 0.0
    %1847 = vmatprep.subr.mxu0 0.0
    %1848 = vmatpush1.msra.mxu0 0.0
    %1849 = vmatprep.subr.mxu0 0.0
    %1850 = vmatpush1.msra.mxu0 0.0
    %1851 = vmatprep.subr.mxu0 0.0
    %1852 = vmatpush1.msra.mxu0 0.0
    %1853 = vmatprep.subr.mxu0 0.0
    %1854 = vmatpush1.msra.mxu0 0.0
    %1855 = vmatprep.subr.mxu0 0.0
    %1856 = vmatpush1.msra.mxu0 0.0
    %1857 = vmatprep.subr.mxu0 0.0
    %1858 = vmatpush1.msra.mxu0 0.0
    %1859 = vmatprep.subr.mxu0 0.0
    %1860 = vmatpush1.msra.mxu0 0.0
    %1861 = vmatprep.subr.mxu0 0.0
    %1862 = vmatpush1.msra.mxu0 0.0
    %1863 = vmatprep.subr.mxu0 0.0
    %1864 = vmatpush1.msra.mxu0 0.0
    %1865 = vmatprep.subr.mxu0 0.0
    %1866 = vmatpush1.msra.mxu0 0.0
    %1867 = vmatprep.subr.mxu0 0.0
    %1868 = vmatpush1.msra.mxu0 0.0
    %1869 = vmatprep.subr.mxu0 0.0
    %1870 = vmatpush1.msra.mxu0 0.0
    %1871 = vmatprep.subr.mxu0 0.0
    %1872 = vmatpush1.msra.mxu0 0.0
    %1873 = vmatprep.subr.mxu0 0.0
    %1874 = vmatpush1.msra.mxu0 0.0
    %1875 = vmatprep.subr.mxu0 0.0
    %1876 = vmatpush1.msra.mxu0 0.0
    %1877 = vmatprep.subr.mxu0 0.0
    %1878 = vmatpush1.msra.mxu0 0.0
    %1879 = vmatprep.subr.mxu0 0.0
    %1880 = vmatpush1.msra.mxu0 0.0
    %1881 = vmatprep.subr.mxu0 0.0
    %1882 = vmatpush1.msra.mxu0 0.0
    %1883 = vmatprep.subr.mxu0 0.0
    %1884 = vmatpush1.msra.mxu0 0.0
    %1885 = vmatprep.subr.mxu0 0.0
    %1886 = vmatpush1.msra.mxu0 0.0
    %1887 = vmatprep.subr.mxu0 0.0
    %1888 = vmatpush1.msra.mxu0 0.0
    %1889 = vmatprep.subr.mxu0 0.0
    %1890 = vmatpush1.msra.mxu0 0.0
    %1891 = vmatprep.subr.mxu0 0.0
    %1892 = vmatpush1.msra.mxu0 0.0
    %1893 = vmatprep.subr.mxu0 0.0
    %1894 = vmatpush1.msra.mxu0 0.0
    %1895 = vmatprep.subr.mxu0 0.0
    %1896 = vmatpush1.msra.mxu0 0.0
    %1897 = vmatprep.subr.mxu0 0.0
    %1898 = vmatpush1.msra.mxu0 0.0
    %1899 = vmatprep.subr.mxu0 0.0
    %1900 = vmatpush1.msra.mxu0 0.0
    %1901 = vmatprep.subr.mxu0 0.0
    %1902 = vmatpush1.msra.mxu0 0.0
    %1903 = vmatprep.subr.mxu0 0.0
    %1904 = vmatpush1.msra.mxu0 0.0
    %1905 = vmatprep.subr.mxu0 0.0
    %1906 = vmatpush1.msra.mxu0 0.0
    %1907 = vmatprep.mubr.f32.mxu0 0.0
    %1908 = vmatmul.mubr.f32.gmra.mrb[0].mxu0 %v1820
    %v1909 = vpop.f32.mrb[0].mxu0
    %v1910 = vadd.f32 0.0, %v1909
    %v1911 = vpop.f32.mrb[0].mxu0
    %1912 = vmatprep.mubr.f32.mxu0 0.0
    %1913 = vmatmul.mubr.f32.gmra.mrb[0].mxu0 %v1823
    %v1914 = vpop.f32.mrb[0].mxu0
    %v1915 = vadd.f32 0.0, %v1914
    %v1916 = vpop.f32.mrb[0].mxu0
    %1917 = vmatprep.mubr.f32.mxu0 0.0
    %1918 = vmatmul.mubr.f32.gmra.mrb[0].mxu0 %v1826
    %v1919 = vpop.f32.mrb[0].mxu0
    %v1920 = vadd.f32 0.0, %v1919
    %v1921 = vpop.f32.mrb[0].mxu0
    %1922 = vmatprep.mubr.f32.mxu0 0.0
    %1923 = vmatmul.mubr.f32.gmra.mrb[0].mxu0 %v1829
    %v1924 = vpop.f32.mrb[0].mxu0
    %v1925 = vadd.f32 0.0, %v1924
    %v1926 = vpop.f32.mrb[0].mxu0
    %1927 = vmatprep.mubr.f32.mxu0 0.0
    %1928 = vmatmul.mubr.f32.gmra.mrb[0].mxu0 %v1832
    %v1929 = vpop.f32.mrb[0].mxu0
    %v1930 = vadd.f32 0.0, %v1929
    %v1931 = vpop.f32.mrb[0].mxu0
    %1932 = vmatprep.mubr.f32.mxu0 0.0
    %1933 = vmatmul.mubr.f32.gmra.mrb[0].mxu0 %v1835
    %v1934 = vpop.f32.mrb[0].mxu0
    %v1935 = vadd.f32 0.0, %v1934
    %v1936 = vpop.f32.mrb[0].mxu0
    %1937 = vmatprep.mubr.f32.mxu0 0.0
    %1938 = vmatmul.mubr.f32.gmra.mrb[0].mxu0 %v1838
    %v1939 = vpop.f32.mrb[0].mxu0
    %v1940 = vadd.f32 0.0, %v1939
    %v1941 = vpop.f32.mrb[0].mxu0
    %1942 = vmatprep.mubr.f32.mxu0 0.0
    %1943 = vmatmul.mubr.f32.gmra.mrb[0].mxu0 %v1841
    %v1944 = vpop.f32.mrb[0].mxu0
    %v1945 = vadd.f32 0.0, %v1944
    %v1946 = vpop.f32.mrb[0].mxu0
    %1947 = vdwg.mxu0
    %v1948 = vadd.f32 %v1802, %v1910
    %v1949 = vadd.f32 %v1803, %v1915
    %v1950 = vadd.f32 %v1804, %v1920
    %v1951 = vadd.f32 %v1805, %v1925
    %v1952 = vadd.f32 %v1806, %v1930
    %v1953 = vadd.f32 %v1807, %v1935
    %v1954 = vadd.f32 %v1808, %v1940
    %v1955 = vadd.f32 %v1809, %v1945
    %1956 = vmatprep.subr.mxu0 0.0
    %1957 = vmatpush1.msra.mxu0 %v685
    %1958 = vmatprep.subr.mxu0 0.0
    %1959 = vmatpush1.msra.mxu0 %v686
    %1960 = vmatprep.subr.mxu0 0.0
    %1961 = vmatpush1.msra.mxu0 0.0
    %1962 = vmatprep.subr.mxu0 0.0
    %1963 = vmatpush1.msra.mxu0 0.0
    %1964 = vmatprep.subr.mxu0 0.0
    %1965 = vmatpush1.msra.mxu0 0.0
    %1966 = vmatprep.subr.mxu0 0.0
    %1967 = vmatpush1.msra.mxu0 0.0
    %1968 = vmatprep.subr.mxu0 0.0
    %1969 = vmatpush1.msra.mxu0 0.0
    %1970 = vmatprep.subr.mxu0 0.0
    %1971 = vmatpush1.msra.mxu0 0.0
    %1972 = vmatprep.subr.mxu0 0.0
    %1973 = vmatpush1.msra.mxu0 0.0
    %1974 = vmatprep.subr.mxu0 0.0
    %1975 = vmatpush1.msra.mxu0 0.0
    %1976 = vmatprep.subr.mxu0 0.0
    %1977 = vmatpush1.msra.mxu0 0.0
    %1978 = vmatprep.subr.mxu0 0.0
    %1979 = vmatpush1.msra.mxu0 0.0
    %1980 = vmatprep.subr.mxu0 0.0
    %1981 = vmatpush1.msra.mxu0 0.0
    %1982 = vmatprep.subr.mxu0 0.0
    %1983 = vmatpush1.msra.mxu0 0.0
    %1984 = vmatprep.subr.mxu0 0.0
    %1985 = vmatpush1.msra.mxu0 0.0
    %1986 = vmatprep.subr.mxu0 0.0
    %1987 = vmatpush1.msra.mxu0 0.0
    %1988 = vmatprep.subr.mxu0 0.0
    %1989 = vmatpush1.msra.mxu0 0.0
    %1990 = vmatprep.subr.mxu0 0.0
    %1991 = vmatpush1.msra.mxu0 0.0
    %1992 = vmatprep.subr.mxu0 0.0
    %1993 = vmatpush1.msra.mxu0 0.0
    %1994 = vmatprep.subr.mxu0 0.0
    %1995 = vmatpush1.msra.mxu0 0.0
    %1996 = vmatprep.subr.mxu0 0.0
    %1997 = vmatpush1.msra.mxu0 0.0
    %1998 = vmatprep.subr.mxu0 0.0
    %1999 = vmatpush1.msra.mxu0 0.0
    %2000 = vmatprep.subr.mxu0 0.0
    %2001 = vmatpush1.msra.mxu0 0.0
    %2002 = vmatprep.subr.mxu0 0.0
    %2003 = vmatpush1.msra.mxu0 0.0
    %2004 = vmatprep.subr.mxu0 0.0
    %2005 = vmatpush1.msra.mxu0 0.0
    %2006 = vmatprep.subr.mxu0 0.0
    %2007 = vmatpush1.msra.mxu0 0.0
    %2008 = vmatprep.subr.mxu0 0.0
    %2009 = vmatpush1.msra.mxu0 0.0
    %2010 = vmatprep.subr.mxu0 0.0
    %2011 = vmatpush1.msra.mxu0 0.0
    %2012 = vmatprep.subr.mxu0 0.0
    %2013 = vmatpush1.msra.mxu0 0.0
    %2014 = vmatprep.subr.mxu0 0.0
    %2015 = vmatpush1.msra.mxu0 0.0
    %2016 = vmatprep.subr.mxu0 0.0
    %2017 = vmatpush1.msra.mxu0 0.0
    %2018 = vmatprep.subr.mxu0 0.0
    %2019 = vmatpush1.msra.mxu0 0.0
    %2020 = vmatprep.mubr.f32.mxu0 0.0
    %2021 = vmatmul.mubr.f32.gmra.mrb[0].mxu0 %v1097
    %v2022 = vpop.f32.mrb[0].mxu0
    %v2023 = vadd.f32 0.0, %v2022
    %v2024 = vpop.f32.mrb[0].mxu0
    %2025 = vdwg.mxu0
    %2026 = vmatprep.subr.mxu0 0.0
    %2027 = vmatpush1.msra.mxu0 %v685
    %2028 = vmatprep.subr.mxu0 0.0
    %2029 = vmatpush1.msra.mxu0 %v686
    %2030 = vmatprep.subr.mxu0 0.0
    %2031 = vmatpush1.msra.mxu0 0.0
    %2032 = vmatprep.subr.mxu0 0.0
    %2033 = vmatpush1.msra.mxu0 0.0
    %2034 = vmatprep.subr.mxu0 0.0
    %2035 = vmatpush1.msra.mxu0 0.0
    %2036 = vmatprep.subr.mxu0 0.0
    %2037 = vmatpush1.msra.mxu0 0.0
    %2038 = vmatprep.subr.mxu0 0.0
    %2039 = vmatpush1.msra.mxu0 0.0
    %2040 = vmatprep.subr.mxu0 0.0
    %2041 = vmatpush1.msra.mxu0 0.0
    %2042 = vmatprep.subr.mxu0 0.0
    %2043 = vmatpush1.msra.mxu0 0.0
    %2044 = vmatprep.subr.mxu0 0.0
    %2045 = vmatpush1.msra.mxu0 0.0
    %2046 = vmatprep.subr.mxu0 0.0
    %2047 = vmatpush1.msra.mxu0 0.0
    %2048 = vmatprep.subr.mxu0 0.0
    %2049 = vmatpush1.msra.mxu0 0.0
    %2050 = vmatprep.subr.mxu0 0.0
    %2051 = vmatpush1.msra.mxu0 0.0
    %2052 = vmatprep.subr.mxu0 0.0
    %2053 = vmatpush1.msra.mxu0 0.0
    %2054 = vmatprep.subr.mxu0 0.0
    %2055 = vmatpush1.msra.mxu0 0.0
    %2056 = vmatprep.subr.mxu0 0.0
    %2057 = vmatpush1.msra.mxu0 0.0
    %2058 = vmatprep.subr.mxu0 0.0
    %2059 = vmatpush1.msra.mxu0 0.0
    %2060 = vmatprep.subr.mxu0 0.0
    %2061 = vmatpush1.msra.mxu0 0.0
    %2062 = vmatprep.subr.mxu0 0.0
    %2063 = vmatpush1.msra.mxu0 0.0
    %2064 = vmatprep.subr.mxu0 0.0
    %2065 = vmatpush1.msra.mxu0 0.0
    %2066 = vmatprep.subr.mxu0 0.0
    %2067 = vmatpush1.msra.mxu0 0.0
    %2068 = vmatprep.subr.mxu0 0.0
    %2069 = vmatpush1.msra.mxu0 0.0
    %2070 = vmatprep.subr.mxu0 0.0
    %2071 = vmatpush1.msra.mxu0 0.0
    %2072 = vmatprep.subr.mxu0 0.0
    %2073 = vmatpush1.msra.mxu0 0.0
    %2074 = vmatprep.subr.mxu0 0.0
    %2075 = vmatpush1.msra.mxu0 0.0
    %2076 = vmatprep.subr.mxu0 0.0
    %2077 = vmatpush1.msra.mxu0 0.0
    %2078 = vmatprep.subr.mxu0 0.0
    %2079 = vmatpush1.msra.mxu0 0.0
    %2080 = vmatprep.subr.mxu0 0.0
    %2081 = vmatpush1.msra.mxu0 0.0
    %2082 = vmatprep.subr.mxu0 0.0
    %2083 = vmatpush1.msra.mxu0 0.0
    %2084 = vmatprep.subr.mxu0 0.0
    %2085 = vmatpush1.msra.mxu0 0.0
    %2086 = vmatprep.subr.mxu0 0.0
    %2087 = vmatpush1.msra.mxu0 0.0
    %2088 = vmatprep.subr.mxu0 0.0
    %2089 = vmatpush1.msra.mxu0 0.0
    %2090 = vmatprep.mubr.f32.mxu0 0.0
    %2091 = vmatmul.mubr.f32.gmra.mrb[0].mxu0 %v1170
    %v2092 = vpop.f32.mrb[0].mxu0
    %v2093 = vadd.f32 0.0, %v2092
    %v2094 = vpop.f32.mrb[0].mxu0
    %2095 = vdwg.mxu0
    %s2096 = scalar_lea.vmem %s7, 128
    %v2097 = vld [vmem:[%s2096] sm:$0xff]
    %v2098 = vld [vmem:[%s2096 + $0x8] sm:$0xff]
    %v2099 = vld [vmem:[%s2096 + $0x10] sm:$0xff]
    %v2100 = vld [vmem:[%s2096 + $0x18] sm:$0xff]
    %v2101 = vld [vmem:[%s2096 + $0x20] sm:$0xff]
    %v2102 = vld [vmem:[%s2096 + $0x28] sm:$0xff]
    %v2103 = vld [vmem:[%s2096 + $0x30] sm:$0xff]
    %v2104 = vld [vmem:[%s2096 + $0x38] sm:$0xff]
    %v2106 = vsel %vm1388, %v2097, 0
    %v2109 = vsel %vm1388, %v2098, 0
    %v2112 = vsel %vm1388, %v2099, 0
    %v2115 = vsel %vm1388, %v2100, 0
    %v2118 = vsel %vm1388, %v2101, 0
    %v2121 = vsel %vm1388, %v2102, 0
    %v2124 = vsel %vm1388, %v2103, 0
    %v2127 = vsel %vm1388, %v2104, 0
    %v2130 = vsel %vm339, %v2023, 0
    %2132 = vmatprep.subr.mxu0 0.0
    %2133 = vmatpush1.msra.mxu0 %v2130
    %2134 = vmatprep.subr.mxu0 0.0
    %2135 = vmatpush1.msra.mxu0 0.0
    %2136 = vmatprep.subr.mxu0 0.0
    %2137 = vmatpush1.msra.mxu0 0.0
    %2138 = vmatprep.subr.mxu0 0.0
    %2139 = vmatpush1.msra.mxu0 0.0
    %2140 = vmatprep.subr.mxu0 0.0
    %2141 = vmatpush1.msra.mxu0 0.0
    %2142 = vmatprep.subr.mxu0 0.0
    %2143 = vmatpush1.msra.mxu0 0.0
    %2144 = vmatprep.subr.mxu0 0.0
    %2145 = vmatpush1.msra.mxu0 0.0
    %2146 = vmatprep.subr.mxu0 0.0
    %2147 = vmatpush1.msra.mxu0 0.0
    %2148 = vmatprep.subr.mxu0 0.0
    %2149 = vmatpush1.msra.mxu0 0.0
    %2150 = vmatprep.subr.mxu0 0.0
    %2151 = vmatpush1.msra.mxu0 0.0
    %2152 = vmatprep.subr.mxu0 0.0
    %2153 = vmatpush1.msra.mxu0 0.0
    %2154 = vmatprep.subr.mxu0 0.0
    %2155 = vmatpush1.msra.mxu0 0.0
    %2156 = vmatprep.subr.mxu0 0.0
    %2157 = vmatpush1.msra.mxu0 0.0
    %2158 = vmatprep.subr.mxu0 0.0
    %2159 = vmatpush1.msra.mxu0 0.0
    %2160 = vmatprep.subr.mxu0 0.0
    %2161 = vmatpush1.msra.mxu0 0.0
    %2162 = vmatprep.subr.mxu0 0.0
    %2163 = vmatpush1.msra.mxu0 0.0
    %2164 = vmatprep.subr.mxu0 0.0
    %2165 = vmatpush1.msra.mxu0 0.0
    %2166 = vmatprep.subr.mxu0 0.0
    %2167 = vmatpush1.msra.mxu0 0.0
    %2168 = vmatprep.subr.mxu0 0.0
    %2169 = vmatpush1.msra.mxu0 0.0
    %2170 = vmatprep.subr.mxu0 0.0
    %2171 = vmatpush1.msra.mxu0 0.0
    %2172 = vmatprep.subr.mxu0 0.0
    %2173 = vmatpush1.msra.mxu0 0.0
    %2174 = vmatprep.subr.mxu0 0.0
    %2175 = vmatpush1.msra.mxu0 0.0
    %2176 = vmatprep.subr.mxu0 0.0
    %2177 = vmatpush1.msra.mxu0 0.0
    %2178 = vmatprep.subr.mxu0 0.0
    %2179 = vmatpush1.msra.mxu0 0.0
    %2180 = vmatprep.subr.mxu0 0.0
    %2181 = vmatpush1.msra.mxu0 0.0
    %2182 = vmatprep.subr.mxu0 0.0
    %2183 = vmatpush1.msra.mxu0 0.0
    %2184 = vmatprep.subr.mxu0 0.0
    %2185 = vmatpush1.msra.mxu0 0.0
    %2186 = vmatprep.subr.mxu0 0.0
    %2187 = vmatpush1.msra.mxu0 0.0
    %2188 = vmatprep.subr.mxu0 0.0
    %2189 = vmatpush1.msra.mxu0 0.0
    %2190 = vmatprep.subr.mxu0 0.0
    %2191 = vmatpush1.msra.mxu0 0.0
    %2192 = vmatprep.subr.mxu0 0.0
    %2193 = vmatpush1.msra.mxu0 0.0
    %2194 = vmatprep.subr.mxu0 0.0
    %2195 = vmatpush1.msra.mxu0 0.0
    %2196 = vmatprep.mubr.f32.mxu0 0.0
    %2197 = vmatmul.mubr.f32.gmra.mrb[0].mxu0 %v2106
    %v2198 = vpop.f32.mrb[0].mxu0
    %v2199 = vadd.f32 0.0, %v2198
    %v2200 = vpop.f32.mrb[0].mxu0
    %2201 = vmatprep.mubr.f32.mxu0 0.0
    %2202 = vmatmul.mubr.f32.gmra.mrb[0].mxu0 %v2109
    %v2203 = vpop.f32.mrb[0].mxu0
    %v2204 = vadd.f32 0.0, %v2203
    %v2205 = vpop.f32.mrb[0].mxu0
    %2206 = vmatprep.mubr.f32.mxu0 0.0
    %2207 = vmatmul.mubr.f32.gmra.mrb[0].mxu0 %v2112
    %v2208 = vpop.f32.mrb[0].mxu0
    %v2209 = vadd.f32 0.0, %v2208
    %v2210 = vpop.f32.mrb[0].mxu0
    %2211 = vmatprep.mubr.f32.mxu0 0.0
    %2212 = vmatmul.mubr.f32.gmra.mrb[0].mxu0 %v2115
    %v2213 = vpop.f32.mrb[0].mxu0
    %v2214 = vadd.f32 0.0, %v2213
    %v2215 = vpop.f32.mrb[0].mxu0
    %2216 = vmatprep.mubr.f32.mxu0 0.0
    %2217 = vmatmul.mubr.f32.gmra.mrb[0].mxu0 %v2118
    %v2218 = vpop.f32.mrb[0].mxu0
    %v2219 = vadd.f32 0.0, %v2218
    %v2220 = vpop.f32.mrb[0].mxu0
    %2221 = vmatprep.mubr.f32.mxu0 0.0
    %2222 = vmatmul.mubr.f32.gmra.mrb[0].mxu0 %v2121
    %v2223 = vpop.f32.mrb[0].mxu0
    %v2224 = vadd.f32 0.0, %v2223
    %v2225 = vpop.f32.mrb[0].mxu0
    %2226 = vmatprep.mubr.f32.mxu0 0.0
    %2227 = vmatmul.mubr.f32.gmra.mrb[0].mxu0 %v2124
    %v2228 = vpop.f32.mrb[0].mxu0
    %v2229 = vadd.f32 0.0, %v2228
    %v2230 = vpop.f32.mrb[0].mxu0
    %2231 = vmatprep.mubr.f32.mxu0 0.0
    %2232 = vmatmul.mubr.f32.gmra.mrb[0].mxu0 %v2127
    %v2233 = vpop.f32.mrb[0].mxu0
    %v2234 = vadd.f32 0.0, %v2233
    %v2235 = vpop.f32.mrb[0].mxu0
    %2236 = vdwg.mxu0
    %v2237 = vadd.f32 %v1948, %v2199
    %v2238 = vadd.f32 %v1949, %v2204
    %v2239 = vadd.f32 %v1950, %v2209
    %v2240 = vadd.f32 %v1951, %v2214
    %v2241 = vadd.f32 %v1952, %v2219
    %v2242 = vadd.f32 %v1953, %v2224
    %v2243 = vadd.f32 %v1954, %v2229
    %v2244 = vadd.f32 %v1955, %v2234
    %s2245 = scalar_lea.vmem %s8, 128
    %v2246 = vld [vmem:[%s2245] sm:$0xff]
    %v2247 = vld [vmem:[%s2245 + $0x8] sm:$0xff]
    %v2248 = vld [vmem:[%s2245 + $0x10] sm:$0xff]
    %v2249 = vld [vmem:[%s2245 + $0x18] sm:$0xff]
    %v2250 = vld [vmem:[%s2245 + $0x20] sm:$0xff]
    %v2251 = vld [vmem:[%s2245 + $0x28] sm:$0xff]
    %v2252 = vld [vmem:[%s2245 + $0x30] sm:$0xff]
    %v2253 = vld [vmem:[%s2245 + $0x38] sm:$0xff]
    %v2255 = vsel %vm1258, %v2246, 0
    %v2258 = vsel %vm1258, %v2247, 0
    %v2261 = vsel %vm1258, %v2248, 0
    %v2264 = vsel %vm1258, %v2249, 0
    %v2267 = vsel %vm1258, %v2250, 0
    %v2270 = vsel %vm1258, %v2251, 0
    %v2273 = vsel %vm1258, %v2252, 0
    %v2276 = vsel %vm1258, %v2253, 0
    %2278 = vmatprep.subr.mxu0 0.0
    %2279 = vmatpush1.msra.mxu0 %v2093
    %2280 = vmatprep.subr.mxu0 0.0
    %2281 = vmatpush1.msra.mxu0 0.0
    %2282 = vmatprep.subr.mxu0 0.0
    %2283 = vmatpush1.msra.mxu0 0.0
    %2284 = vmatprep.subr.mxu0 0.0
    %2285 = vmatpush1.msra.mxu0 0.0
    %2286 = vmatprep.subr.mxu0 0.0
    %2287 = vmatpush1.msra.mxu0 0.0
    %2288 = vmatprep.subr.mxu0 0.0
    %2289 = vmatpush1.msra.mxu0 0.0
    %2290 = vmatprep.subr.mxu0 0.0
    %2291 = vmatpush1.msra.mxu0 0.0
    %2292 = vmatprep.subr.mxu0 0.0
    %2293 = vmatpush1.msra.mxu0 0.0
    %2294 = vmatprep.subr.mxu0 0.0
    %2295 = vmatpush1.msra.mxu0 0.0
    %2296 = vmatprep.subr.mxu0 0.0
    %2297 = vmatpush1.msra.mxu0 0.0
    %2298 = vmatprep.subr.mxu0 0.0
    %2299 = vmatpush1.msra.mxu0 0.0
    %2300 = vmatprep.subr.mxu0 0.0
    %2301 = vmatpush1.msra.mxu0 0.0
    %2302 = vmatprep.subr.mxu0 0.0
    %2303 = vmatpush1.msra.mxu0 0.0
    %2304 = vmatprep.subr.mxu0 0.0
    %2305 = vmatpush1.msra.mxu0 0.0
    %2306 = vmatprep.subr.mxu0 0.0
    %2307 = vmatpush1.msra.mxu0 0.0
    %2308 = vmatprep.subr.mxu0 0.0
    %2309 = vmatpush1.msra.mxu0 0.0
    %2310 = vmatprep.subr.mxu0 0.0
    %2311 = vmatpush1.msra.mxu0 0.0
    %2312 = vmatprep.subr.mxu0 0.0
    %2313 = vmatpush1.msra.mxu0 0.0
    %2314 = vmatprep.subr.mxu0 0.0
    %2315 = vmatpush1.msra.mxu0 0.0
    %2316 = vmatprep.subr.mxu0 0.0
    %2317 = vmatpush1.msra.mxu0 0.0
    %2318 = vmatprep.subr.mxu0 0.0
    %2319 = vmatpush1.msra.mxu0 0.0
    %2320 = vmatprep.subr.mxu0 0.0
    %2321 = vmatpush1.msra.mxu0 0.0
    %2322 = vmatprep.subr.mxu0 0.0
    %2323 = vmatpush1.msra.mxu0 0.0
    %2324 = vmatprep.subr.mxu0 0.0
    %2325 = vmatpush1.msra.mxu0 0.0
    %2326 = vmatprep.subr.mxu0 0.0
    %2327 = vmatpush1.msra.mxu0 0.0
    %2328 = vmatprep.subr.mxu0 0.0
    %2329 = vmatpush1.msra.mxu0 0.0
    %2330 = vmatprep.subr.mxu0 0.0
    %2331 = vmatpush1.msra.mxu0 0.0
    %2332 = vmatprep.subr.mxu0 0.0
    %2333 = vmatpush1.msra.mxu0 0.0
    %2334 = vmatprep.subr.mxu0 0.0
    %2335 = vmatpush1.msra.mxu0 0.0
    %2336 = vmatprep.subr.mxu0 0.0
    %2337 = vmatpush1.msra.mxu0 0.0
    %2338 = vmatprep.subr.mxu0 0.0
    %2339 = vmatpush1.msra.mxu0 0.0
    %2340 = vmatprep.subr.mxu0 0.0
    %2341 = vmatpush1.msra.mxu0 0.0
    %2342 = vmatprep.mubr.f32.mxu0 0.0
    %2343 = vmatmul.mubr.f32.gmra.mrb[0].mxu0 %v2255
    %v2344 = vpop.f32.mrb[0].mxu0
    %v2345 = vadd.f32 0.0, %v2344
    %v2346 = vpop.f32.mrb[0].mxu0
    %2347 = vmatprep.mubr.f32.mxu0 0.0
    %2348 = vmatmul.mubr.f32.gmra.mrb[0].mxu0 %v2258
    %v2349 = vpop.f32.mrb[0].mxu0
    %v2350 = vadd.f32 0.0, %v2349
    %v2351 = vpop.f32.mrb[0].mxu0
    %2352 = vmatprep.mubr.f32.mxu0 0.0
    %2353 = vmatmul.mubr.f32.gmra.mrb[0].mxu0 %v2261
    %v2354 = vpop.f32.mrb[0].mxu0
    %v2355 = vadd.f32 0.0, %v2354
    %v2356 = vpop.f32.mrb[0].mxu0
    %2357 = vmatprep.mubr.f32.mxu0 0.0
    %2358 = vmatmul.mubr.f32.gmra.mrb[0].mxu0 %v2264
    %v2359 = vpop.f32.mrb[0].mxu0
    %v2360 = vadd.f32 0.0, %v2359
    %v2361 = vpop.f32.mrb[0].mxu0
    %2362 = vmatprep.mubr.f32.mxu0 0.0
    %2363 = vmatmul.mubr.f32.gmra.mrb[0].mxu0 %v2267
    %v2364 = vpop.f32.mrb[0].mxu0
    %v2365 = vadd.f32 0.0, %v2364
    %v2366 = vpop.f32.mrb[0].mxu0
    %2367 = vmatprep.mubr.f32.mxu0 0.0
    %2368 = vmatmul.mubr.f32.gmra.mrb[0].mxu0 %v2270
    %v2369 = vpop.f32.mrb[0].mxu0
    %v2370 = vadd.f32 0.0, %v2369
    %v2371 = vpop.f32.mrb[0].mxu0
    %2372 = vmatprep.mubr.f32.mxu0 0.0
    %2373 = vmatmul.mubr.f32.gmra.mrb[0].mxu0 %v2273
    %v2374 = vpop.f32.mrb[0].mxu0
    %v2375 = vadd.f32 0.0, %v2374
    %v2376 = vpop.f32.mrb[0].mxu0
    %2377 = vmatprep.mubr.f32.mxu0 0.0
    %2378 = vmatmul.mubr.f32.gmra.mrb[0].mxu0 %v2276
    %v2379 = vpop.f32.mrb[0].mxu0
    %v2380 = vadd.f32 0.0, %v2379
    %v2381 = vpop.f32.mrb[0].mxu0
    %2382 = vdwg.mxu0
    %v2383 = vadd.f32 %v2237, %v2345
    %v2384 = vadd.f32 %v2238, %v2350
    %v2385 = vadd.f32 %v2239, %v2355
    %v2386 = vadd.f32 %v2240, %v2360
    %v2387 = vadd.f32 %v2241, %v2365
    %v2388 = vadd.f32 %v2242, %v2370
    %v2389 = vadd.f32 %v2243, %v2375
    %v2390 = vadd.f32 %v2244, %v2380
    %v2391 = vmul.f32 %v2383, %v994
    %v2392 = vmul.f32 %v2384, %v998
    %v2393 = vmul.f32 %v2385, %v1002
    %v2394 = vmul.f32 %v2386, %v1006
    %v2395 = vmul.f32 %v2387, %v1010
    %v2396 = vmul.f32 %v2388, %v1014
    %v2397 = vmul.f32 %v2389, %v1018
    %v2398 = vmul.f32 %v2390, %v1022
    %v2399 = vsel %vm97, %v2391, 0.0
    %v2400 = vsel %vm97, %v2392, 0.0
    %v2401 = vadd.f32 %v2399, %v2400
    %v2402 = vsel %vm97, %v2393, 0.0
    %v2403 = vadd.f32 %v2401, %v2402
    %v2404 = vsel %vm97, %v2394, 0.0
    %v2405 = vadd.f32 %v2403, %v2404
    %v2406 = vsel %vm97, %v2395, 0.0
    %v2407 = vadd.f32 %v2405, %v2406
    %v2408 = vsel %vm97, %v2396, 0.0
    %v2409 = vadd.f32 %v2407, %v2408
    %v2410 = vsel %vm97, %v2397, 0.0
    %v2411 = vadd.f32 %v2409, %v2410
    %v2412 = vsel %vm97, %v2398, 0.0
    %v2413 = vadd.f32 %v2411, %v2412
    %v2414 = vadd.f32 %v2413, %v92
    %v2415 = vtanh.pop %v2414
    %v2416 = vmul.f32 %v1090, %v1091
    %v2417 = vsub.f32 1.0, %v1090
    %v2418 = vmul.f32 %v2417, %v2415
    %v2419 = vadd.f32 %v2416, %v2418
    %2420 = vst.msk [vmem:[#allocation2] sm:$0xff] %vm97, %v2419
    %s2421 = scalar_lea.vmem %s0, 16
    %v2422 = vld [vmem:[%s2421] sm:$0xff]
    %v2423 = vld [vmem:[%s2421 + $0x8] sm:$0x3]
    %v2424 = vld [vmem:[%s4] sm:$0xff]
    %v2425 = vld [vmem:[%s4 + $0x8] sm:$0xff]
    %v2427 = vsel %vm97, %v2422, 0
    %v2430 = vsel %vm97, %v2423, 0
    %2432 = vmatprep.subr.mxu0 0.0
    %2433 = vmatpush1.msra.mxu0 %v2424
    %2434 = vmatprep.subr.mxu0 0.0
    %2435 = vmatpush1.msra.mxu0 %v2425
    %2436 = vmatprep.subr.mxu0 0.0
    %2437 = vmatpush1.msra.mxu0 0.0
    %2438 = vmatprep.subr.mxu0 0.0
    %2439 = vmatpush1.msra.mxu0 0.0
    %2440 = vmatprep.subr.mxu0 0.0
    %2441 = vmatpush1.msra.mxu0 0.0
    %2442 = vmatprep.subr.mxu0 0.0
    %2443 = vmatpush1.msra.mxu0 0.0
    %2444 = vmatprep.subr.mxu0 0.0
    %2445 = vmatpush1.msra.mxu0 0.0
    %2446 = vmatprep.subr.mxu0 0.0
    %2447 = vmatpush1.msra.mxu0 0.0
    %2448 = vmatprep.subr.mxu0 0.0
    %2449 = vmatpush1.msra.mxu0 0.0
    %2450 = vmatprep.subr.mxu0 0.0
    %2451 = vmatpush1.msra.mxu0 0.0
    %2452 = vmatprep.subr.mxu0 0.0
    %2453 = vmatpush1.msra.mxu0 0.0
    %2454 = vmatprep.subr.mxu0 0.0
    %2455 = vmatpush1.msra.mxu0 0.0
    %2456 = vmatprep.subr.mxu0 0.0
    %2457 = vmatpush1.msra.mxu0 0.0
    %2458 = vmatprep.subr.mxu0 0.0
    %2459 = vmatpush1.msra.mxu0 0.0
    %2460 = vmatprep.subr.mxu0 0.0
    %2461 = vmatpush1.msra.mxu0 0.0
    %2462 = vmatprep.subr.mxu0 0.0
    %2463 = vmatpush1.msra.mxu0 0.0
    %2464 = vmatprep.subr.mxu0 0.0
    %2465 = vmatpush1.msra.mxu0 0.0
    %2466 = vmatprep.subr.mxu0 0.0
    %2467 = vmatpush1.msra.mxu0 0.0
    %2468 = vmatprep.subr.mxu0 0.0
    %2469 = vmatpush1.msra.mxu0 0.0
    %2470 = vmatprep.subr.mxu0 0.0
    %2471 = vmatpush1.msra.mxu0 0.0
    %2472 = vmatprep.subr.mxu0 0.0
    %2473 = vmatpush1.msra.mxu0 0.0
    %2474 = vmatprep.subr.mxu0 0.0
    %2475 = vmatpush1.msra.mxu0 0.0
    %2476 = vmatprep.subr.mxu0 0.0
    %2477 = vmatpush1.msra.mxu0 0.0
    %2478 = vmatprep.subr.mxu0 0.0
    %2479 = vmatpush1.msra.mxu0 0.0
    %2480 = vmatprep.subr.mxu0 0.0
    %2481 = vmatpush1.msra.mxu0 0.0
    %2482 = vmatprep.subr.mxu0 0.0
    %2483 = vmatpush1.msra.mxu0 0.0
    %2484 = vmatprep.subr.mxu0 0.0
    %2485 = vmatpush1.msra.mxu0 0.0
    %2486 = vmatprep.subr.mxu0 0.0
    %2487 = vmatpush1.msra.mxu0 0.0
    %2488 = vmatprep.subr.mxu0 0.0
    %2489 = vmatpush1.msra.mxu0 0.0
    %2490 = vmatprep.subr.mxu0 0.0
    %2491 = vmatpush1.msra.mxu0 0.0
    %2492 = vmatprep.subr.mxu0 0.0
    %2493 = vmatpush1.msra.mxu0 0.0
    %2494 = vmatprep.subr.mxu0 0.0
    %2495 = vmatpush1.msra.mxu0 0.0
    %2496 = vmatprep.mubr.f32.mxu0 0.0
    %2497 = vmatmul.mubr.f32.gmra.mrb[0].mxu0 %v2427
    %v2498 = vpop.f32.mrb[0].mxu0
    %v2499 = vadd.f32 0.0, %v2498
    %v2500 = vpop.f32.mrb[0].mxu0
    %2501 = vmatprep.mubr.f32.mxu0 0.0
    %2502 = vmatmul.mubr.f32.gmra.mrb[0].mxu0 %v2430
    %v2503 = vpop.f32.mrb[0].mxu0
    %v2504 = vadd.f32 0.0, %v2503
    %v2505 = vpop.f32.mrb[0].mxu0
    %2506 = vdwg.mxu0
    %v2507 = vld [vmem:[%s5] sm:$0xff]
    %v2508 = vld [vmem:[%s5 + $0x8] sm:$0xff]
    %v2509 = vld [vmem:[%s5 + $0x10] sm:$0xff]
    %v2510 = vld [vmem:[%s5 + $0x18] sm:$0xff]
    %v2511 = vld [vmem:[%s5 + $0x20] sm:$0xff]
    %v2512 = vld [vmem:[%s5 + $0x28] sm:$0xff]
    %v2513 = vld [vmem:[%s5 + $0x30] sm:$0xff]
    %v2514 = vld [vmem:[%s5 + $0x38] sm:$0xff]
    %v2515 = vld [vmem:[%s5 + $0x40] sm:$0xff]
    %v2516 = vld [vmem:[%s5 + $0x48] sm:$0xff]
    %v2517 = vld [vmem:[%s5 + $0x50] sm:$0xff]
    %v2518 = vld [vmem:[%s5 + $0x58] sm:$0xff]
    %v2519 = vld [vmem:[%s5 + $0x60] sm:$0xff]
    %v2520 = vld [vmem:[%s5 + $0x68] sm:$0xff]
    %v2521 = vld [vmem:[%s5 + $0x70] sm:$0xff]
    %v2522 = vld [vmem:[%s5 + $0x78] sm:$0xff]
    %v2523 = vld [vmem:[%s195] sm:$0xff]
    %v2524 = vld [vmem:[%s195 + $0x8] sm:$0xff]
    %2525 = vmatprep.subr.mxu0 0.0
    %2526 = vmatpush1.msra.mxu0 %v2523
    %2527 = vmatprep.subr.mxu0 0.0
    %2528 = vmatpush1.msra.mxu0 %v2524
    %2529 = vmatprep.subr.mxu0 0.0
    %2530 = vmatpush1.msra.mxu0 0.0
    %2531 = vmatprep.subr.mxu0 0.0
    %2532 = vmatpush1.msra.mxu0 0.0
    %2533 = vmatprep.subr.mxu0 0.0
    %2534 = vmatpush1.msra.mxu0 0.0
    %2535 = vmatprep.subr.mxu0 0.0
    %2536 = vmatpush1.msra.mxu0 0.0
    %2537 = vmatprep.subr.mxu0 0.0
    %2538 = vmatpush1.msra.mxu0 0.0
    %2539 = vmatprep.subr.mxu0 0.0
    %2540 = vmatpush1.msra.mxu0 0.0
    %2541 = vmatprep.subr.mxu0 0.0
    %2542 = vmatpush1.msra.mxu0 0.0
    %2543 = vmatprep.subr.mxu0 0.0
    %2544 = vmatpush1.msra.mxu0 0.0
    %2545 = vmatprep.subr.mxu0 0.0
    %2546 = vmatpush1.msra.mxu0 0.0
    %2547 = vmatprep.subr.mxu0 0.0
    %2548 = vmatpush1.msra.mxu0 0.0
    %2549 = vmatprep.subr.mxu0 0.0
    %2550 = vmatpush1.msra.mxu0 0.0
    %2551 = vmatprep.subr.mxu0 0.0
    %2552 = vmatpush1.msra.mxu0 0.0
    %2553 = vmatprep.subr.mxu0 0.0
    %2554 = vmatpush1.msra.mxu0 0.0
    %2555 = vmatprep.subr.mxu0 0.0
    %2556 = vmatpush1.msra.mxu0 0.0
    %2557 = vmatprep.subr.mxu0 0.0
    %2558 = vmatpush1.msra.mxu0 0.0
    %2559 = vmatprep.subr.mxu0 0.0
    %2560 = vmatpush1.msra.mxu0 0.0
    %2561 = vmatprep.subr.mxu0 0.0
    %2562 = vmatpush1.msra.mxu0 0.0
    %2563 = vmatprep.subr.mxu0 0.0
    %2564 = vmatpush1.msra.mxu0 0.0
    %2565 = vmatprep.subr.mxu0 0.0
    %2566 = vmatpush1.msra.mxu0 0.0
    %2567 = vmatprep.subr.mxu0 0.0
    %2568 = vmatpush1.msra.mxu0 0.0
    %2569 = vmatprep.subr.mxu0 0.0
    %2570 = vmatpush1.msra.mxu0 0.0
    %2571 = vmatprep.subr.mxu0 0.0
    %2572 = vmatpush1.msra.mxu0 0.0
    %2573 = vmatprep.subr.mxu0 0.0
    %2574 = vmatpush1.msra.mxu0 0.0
    %2575 = vmatprep.subr.mxu0 0.0
    %2576 = vmatpush1.msra.mxu0 0.0
    %2577 = vmatprep.subr.mxu0 0.0
    %2578 = vmatpush1.msra.mxu0 0.0
    %2579 = vmatprep.subr.mxu0 0.0
    %2580 = vmatpush1.msra.mxu0 0.0
    %2581 = vmatprep.subr.mxu0 0.0
    %2582 = vmatpush1.msra.mxu0 0.0
    %2583 = vmatprep.subr.mxu0 0.0
    %2584 = vmatpush1.msra.mxu0 0.0
    %2585 = vmatprep.subr.mxu0 0.0
    %2586 = vmatpush1.msra.mxu0 0.0
    %2587 = vmatprep.subr.mxu0 0.0
    %2588 = vmatpush1.msra.mxu0 0.0
    %2589 = vmatprep.mubr.f32.mxu0 0.0
    %2590 = vmatmul.mubr.f32.gmra.mrb[0].mxu0 %v2427
    %v2591 = vpop.f32.mrb[0].mxu0
    %v2592 = vadd.f32 0.0, %v2591
    %v2593 = vpop.f32.mrb[0].mxu0
    %2594 = vmatprep.mubr.f32.mxu0 0.0
    %2595 = vmatmul.mubr.f32.gmra.mrb[0].mxu0 %v2430
    %v2596 = vpop.f32.mrb[0].mxu0
    %v2597 = vadd.f32 0.0, %v2596
    %v2598 = vpop.f32.mrb[0].mxu0
    %2599 = vdwg.mxu0
    %v2600 = vld [vmem:[%s273] sm:$0xff]
    %v2601 = vld [vmem:[%s273 + $0x8] sm:$0xff]
    %v2602 = vld [vmem:[%s273 + $0x10] sm:$0xff]
    %v2603 = vld [vmem:[%s273 + $0x18] sm:$0xff]
    %v2604 = vld [vmem:[%s273 + $0x20] sm:$0xff]
    %v2605 = vld [vmem:[%s273 + $0x28] sm:$0xff]
    %v2606 = vld [vmem:[%s273 + $0x30] sm:$0xff]
    %v2607 = vld [vmem:[%s273 + $0x38] sm:$0xff]
    %v2608 = vld [vmem:[%s273 + $0x40] sm:$0xff]
    %v2609 = vld [vmem:[%s273 + $0x48] sm:$0xff]
    %v2610 = vld [vmem:[%s273 + $0x50] sm:$0xff]
    %v2611 = vld [vmem:[%s273 + $0x58] sm:$0xff]
    %v2612 = vld [vmem:[%s273 + $0x60] sm:$0xff]
    %v2613 = vld [vmem:[%s273 + $0x68] sm:$0xff]
    %v2614 = vld [vmem:[%s273 + $0x70] sm:$0xff]
    %v2615 = vld [vmem:[%s273 + $0x78] sm:$0xff]
    %v2617 = vsel %vm290, %v2600, 0
    %v2620 = vsel %vm290, %v2601, 0
    %v2623 = vsel %vm290, %v2602, 0
    %v2626 = vsel %vm290, %v2603, 0
    %v2629 = vsel %vm290, %v2604, 0
    %v2632 = vsel %vm290, %v2605, 0
    %v2635 = vsel %vm290, %v2606, 0
    %v2638 = vsel %vm290, %v2607, 0
    %v2641 = vsel %vm290, %v2608, 0
    %v2644 = vsel %vm290, %v2609, 0
    %v2647 = vsel %vm290, %v2610, 0
    %v2650 = vsel %vm290, %v2611, 0
    %v2653 = vsel %vm290, %v2612, 0
    %v2656 = vsel %vm290, %v2613, 0
    %v2659 = vsel %vm290, %v2614, 0
    %v2662 = vsel %vm290, %v2615, 0
    %v2665 = vsel %vm339, %v2597, 0
    %2667 = vmatprep.subr.mxu0 0.0
    %2668 = vmatpush1.msra.mxu0 %v2592
    %2669 = vmatprep.subr.mxu0 0.0
    %2670 = vmatpush1.msra.mxu0 %v2665
    %2671 = vmatprep.subr.mxu0 0.0
    %2672 = vmatpush1.msra.mxu0 0.0
    %2673 = vmatprep.subr.mxu0 0.0
    %2674 = vmatpush1.msra.mxu0 0.0
    %2675 = vmatprep.subr.mxu0 0.0
    %2676 = vmatpush1.msra.mxu0 0.0
    %2677 = vmatprep.subr.mxu0 0.0
    %2678 = vmatpush1.msra.mxu0 0.0
    %2679 = vmatprep.subr.mxu0 0.0
    %2680 = vmatpush1.msra.mxu0 0.0
    %2681 = vmatprep.subr.mxu0 0.0
    %2682 = vmatpush1.msra.mxu0 0.0
    %2683 = vmatprep.subr.mxu0 0.0
    %2684 = vmatpush1.msra.mxu0 0.0
    %2685 = vmatprep.subr.mxu0 0.0
    %2686 = vmatpush1.msra.mxu0 0.0
    %2687 = vmatprep.subr.mxu0 0.0
    %2688 = vmatpush1.msra.mxu0 0.0
    %2689 = vmatprep.subr.mxu0 0.0
    %2690 = vmatpush1.msra.mxu0 0.0
    %2691 = vmatprep.subr.mxu0 0.0
    %2692 = vmatpush1.msra.mxu0 0.0
    %2693 = vmatprep.subr.mxu0 0.0
    %2694 = vmatpush1.msra.mxu0 0.0
    %2695 = vmatprep.subr.mxu0 0.0
    %2696 = vmatpush1.msra.mxu0 0.0
    %2697 = vmatprep.subr.mxu0 0.0
    %2698 = vmatpush1.msra.mxu0 0.0
    %2699 = vmatprep.subr.mxu0 0.0
    %2700 = vmatpush1.msra.mxu0 0.0
    %2701 = vmatprep.subr.mxu0 0.0
    %2702 = vmatpush1.msra.mxu0 0.0
    %2703 = vmatprep.subr.mxu0 0.0
    %2704 = vmatpush1.msra.mxu0 0.0
    %2705 = vmatprep.subr.mxu0 0.0
    %2706 = vmatpush1.msra.mxu0 0.0
    %2707 = vmatprep.subr.mxu0 0.0
    %2708 = vmatpush1.msra.mxu0 0.0
    %2709 = vmatprep.subr.mxu0 0.0
    %2710 = vmatpush1.msra.mxu0 0.0
    %2711 = vmatprep.subr.mxu0 0.0
    %2712 = vmatpush1.msra.mxu0 0.0
    %2713 = vmatprep.subr.mxu0 0.0
    %2714 = vmatpush1.msra.mxu0 0.0
    %2715 = vmatprep.subr.mxu0 0.0
    %2716 = vmatpush1.msra.mxu0 0.0
    %2717 = vmatprep.subr.mxu0 0.0
    %2718 = vmatpush1.msra.mxu0 0.0
    %2719 = vmatprep.subr.mxu0 0.0
    %2720 = vmatpush1.msra.mxu0 0.0
    %2721 = vmatprep.subr.mxu0 0.0
    %2722 = vmatpush1.msra.mxu0 0.0
    %2723 = vmatprep.subr.mxu0 0.0
    %2724 = vmatpush1.msra.mxu0 0.0
    %2725 = vmatprep.subr.mxu0 0.0
    %2726 = vmatpush1.msra.mxu0 0.0
    %2727 = vmatprep.subr.mxu0 0.0
    %2728 = vmatpush1.msra.mxu0 0.0
    %2729 = vmatprep.subr.mxu0 0.0
    %2730 = vmatpush1.msra.mxu0 0.0
    %2731 = vmatprep.mubr.f32.mxu0 0.0
    %2732 = vmatmul.mubr.f32.gmra.mrb[0].mxu0 %v2617
    %v2733 = vpop.f32.mrb[0].mxu0
    %v2734 = vadd.f32 0.0, %v2733
    %v2735 = vpop.f32.mrb[0].mxu0
    %2736 = vmatprep.mubr.f32.mxu0 0.0
    %2737 = vmatmul.mubr.f32.gmra.mrb[0].mxu0 %v2620
    %v2738 = vpop.f32.mrb[0].mxu0
    %v2739 = vadd.f32 0.0, %v2738
    %v2740 = vpop.f32.mrb[0].mxu0
    %2741 = vmatprep.mubr.f32.mxu0 0.0
    %2742 = vmatmul.mubr.f32.gmra.mrb[0].mxu0 %v2623
    %v2743 = vpop.f32.mrb[0].mxu0
    %v2744 = vadd.f32 0.0, %v2743
    %v2745 = vpop.f32.mrb[0].mxu0
    %2746 = vmatprep.mubr.f32.mxu0 0.0
    %2747 = vmatmul.mubr.f32.gmra.mrb[0].mxu0 %v2626
    %v2748 = vpop.f32.mrb[0].mxu0
    %v2749 = vadd.f32 0.0, %v2748
    %v2750 = vpop.f32.mrb[0].mxu0
    %2751 = vmatprep.mubr.f32.mxu0 0.0
    %2752 = vmatmul.mubr.f32.gmra.mrb[0].mxu0 %v2629
    %v2753 = vpop.f32.mrb[0].mxu0
    %v2754 = vadd.f32 0.0, %v2753
    %v2755 = vpop.f32.mrb[0].mxu0
    %2756 = vmatprep.mubr.f32.mxu0 0.0
    %2757 = vmatmul.mubr.f32.gmra.mrb[0].mxu0 %v2632
    %v2758 = vpop.f32.mrb[0].mxu0
    %v2759 = vadd.f32 0.0, %v2758
    %v2760 = vpop.f32.mrb[0].mxu0
    %2761 = vmatprep.mubr.f32.mxu0 0.0
    %2762 = vmatmul.mubr.f32.gmra.mrb[0].mxu0 %v2635
    %v2763 = vpop.f32.mrb[0].mxu0
    %v2764 = vadd.f32 0.0, %v2763
    %v2765 = vpop.f32.mrb[0].mxu0
    %2766 = vmatprep.mubr.f32.mxu0 0.0
    %2767 = vmatmul.mubr.f32.gmra.mrb[0].mxu0 %v2638
    %v2768 = vpop.f32.mrb[0].mxu0
    %v2769 = vadd.f32 0.0, %v2768
    %v2770 = vpop.f32.mrb[0].mxu0
    %2771 = vmatprep.mubr.f32.mxu0 0.0
    %2772 = vmatmul.mubr.f32.gmra.mrb[0].mxu0 %v2641
    %v2773 = vpop.f32.mrb[0].mxu0
    %v2774 = vadd.f32 0.0, %v2773
    %v2775 = vpop.f32.mrb[0].mxu0
    %2776 = vmatprep.mubr.f32.mxu0 0.0
    %2777 = vmatmul.mubr.f32.gmra.mrb[0].mxu0 %v2644
    %v2778 = vpop.f32.mrb[0].mxu0
    %v2779 = vadd.f32 0.0, %v2778
    %v2780 = vpop.f32.mrb[0].mxu0
    %2781 = vmatprep.mubr.f32.mxu0 0.0
    %2782 = vmatmul.mubr.f32.gmra.mrb[0].mxu0 %v2647
    %v2783 = vpop.f32.mrb[0].mxu0
    %v2784 = vadd.f32 0.0, %v2783
    %v2785 = vpop.f32.mrb[0].mxu0
    %2786 = vmatprep.mubr.f32.mxu0 0.0
    %2787 = vmatmul.mubr.f32.gmra.mrb[0].mxu0 %v2650
    %v2788 = vpop.f32.mrb[0].mxu0
    %v2789 = vadd.f32 0.0, %v2788
    %v2790 = vpop.f32.mrb[0].mxu0
    %2791 = vmatprep.mubr.f32.mxu0 0.0
    %2792 = vmatmul.mubr.f32.gmra.mrb[0].mxu0 %v2653
    %v2793 = vpop.f32.mrb[0].mxu0
    %v2794 = vadd.f32 0.0, %v2793
    %v2795 = vpop.f32.mrb[0].mxu0
    %2796 = vmatprep.mubr.f32.mxu0 0.0
    %2797 = vmatmul.mubr.f32.gmra.mrb[0].mxu0 %v2656
    %v2798 = vpop.f32.mrb[0].mxu0
    %v2799 = vadd.f32 0.0, %v2798
    %v2800 = vpop.f32.mrb[0].mxu0
    %2801 = vmatprep.mubr.f32.mxu0 0.0
    %2802 = vmatmul.mubr.f32.gmra.mrb[0].mxu0 %v2659
    %v2803 = vpop.f32.mrb[0].mxu0
    %v2804 = vadd.f32 0.0, %v2803
    %v2805 = vpop.f32.mrb[0].mxu0
    %2806 = vmatprep.mubr.f32.mxu0 0.0
    %2807 = vmatmul.mubr.f32.gmra.mrb[0].mxu0 %v2662
    %v2808 = vpop.f32.mrb[0].mxu0
    %v2809 = vadd.f32 0.0, %v2808
    %v2810 = vpop.f32.mrb[0].mxu0
    %2811 = vdwg.mxu0
    %v2813 = vsel %vm290, %v2507, 0
    %v2816 = vsel %vm290, %v2508, 0
    %v2819 = vsel %vm290, %v2509, 0
    %v2822 = vsel %vm290, %v2510, 0
    %v2825 = vsel %vm290, %v2511, 0
    %v2828 = vsel %vm290, %v2512, 0
    %v2831 = vsel %vm290, %v2513, 0
    %v2834 = vsel %vm290, %v2514, 0
    %v2837 = vsel %vm290, %v2515, 0
    %v2840 = vsel %vm290, %v2516, 0
    %v2843 = vsel %vm290, %v2517, 0
    %v2846 = vsel %vm290, %v2518, 0
    %v2849 = vsel %vm290, %v2519, 0
    %v2852 = vsel %vm290, %v2520, 0
    %v2855 = vsel %vm290, %v2521, 0
    %v2858 = vsel %vm290, %v2522, 0
    %v2861 = vsel %vm339, %v2504, 0
    %2863 = vmatprep.subr.mxu0 0.0
    %2864 = vmatpush1.msra.mxu0 %v2499
    %2865 = vmatprep.subr.mxu0 0.0
    %2866 = vmatpush1.msra.mxu0 %v2861
    %2867 = vmatprep.subr.mxu0 0.0
    %2868 = vmatpush1.msra.mxu0 0.0
    %2869 = vmatprep.subr.mxu0 0.0
    %2870 = vmatpush1.msra.mxu0 0.0
    %2871 = vmatprep.subr.mxu0 0.0
    %2872 = vmatpush1.msra.mxu0 0.0
    %2873 = vmatprep.subr.mxu0 0.0
    %2874 = vmatpush1.msra.mxu0 0.0
    %2875 = vmatprep.subr.mxu0 0.0
    %2876 = vmatpush1.msra.mxu0 0.0
    %2877 = vmatprep.subr.mxu0 0.0
    %2878 = vmatpush1.msra.mxu0 0.0
    %2879 = vmatprep.subr.mxu0 0.0
    %2880 = vmatpush1.msra.mxu0 0.0
    %2881 = vmatprep.subr.mxu0 0.0
    %2882 = vmatpush1.msra.mxu0 0.0
    %2883 = vmatprep.subr.mxu0 0.0
    %2884 = vmatpush1.msra.mxu0 0.0
    %2885 = vmatprep.subr.mxu0 0.0
    %2886 = vmatpush1.msra.mxu0 0.0
    %2887 = vmatprep.subr.mxu0 0.0
    %2888 = vmatpush1.msra.mxu0 0.0
    %2889 = vmatprep.subr.mxu0 0.0
    %2890 = vmatpush1.msra.mxu0 0.0
    %2891 = vmatprep.subr.mxu0 0.0
    %2892 = vmatpush1.msra.mxu0 0.0
    %2893 = vmatprep.subr.mxu0 0.0
    %2894 = vmatpush1.msra.mxu0 0.0
    %2895 = vmatprep.subr.mxu0 0.0
    %2896 = vmatpush1.msra.mxu0 0.0
    %2897 = vmatprep.subr.mxu0 0.0
    %2898 = vmatpush1.msra.mxu0 0.0
    %2899 = vmatprep.subr.mxu0 0.0
    %2900 = vmatpush1.msra.mxu0 0.0
    %2901 = vmatprep.subr.mxu0 0.0
    %2902 = vmatpush1.msra.mxu0 0.0
    %2903 = vmatprep.subr.mxu0 0.0
    %2904 = vmatpush1.msra.mxu0 0.0
    %2905 = vmatprep.subr.mxu0 0.0
    %2906 = vmatpush1.msra.mxu0 0.0
    %2907 = vmatprep.subr.mxu0 0.0
    %2908 = vmatpush1.msra.mxu0 0.0
    %2909 = vmatprep.subr.mxu0 0.0
    %2910 = vmatpush1.msra.mxu0 0.0
    %2911 = vmatprep.subr.mxu0 0.0
    %2912 = vmatpush1.msra.mxu0 0.0
    %2913 = vmatprep.subr.mxu0 0.0
    %2914 = vmatpush1.msra.mxu0 0.0
    %2915 = vmatprep.subr.mxu0 0.0
    %2916 = vmatpush1.msra.mxu0 0.0
    %2917 = vmatprep.subr.mxu0 0.0
    %2918 = vmatpush1.msra.mxu0 0.0
    %2919 = vmatprep.subr.mxu0 0.0
    %2920 = vmatpush1.msra.mxu0 0.0
    %2921 = vmatprep.subr.mxu0 0.0
    %2922 = vmatpush1.msra.mxu0 0.0
    %2923 = vmatprep.subr.mxu0 0.0
    %2924 = vmatpush1.msra.mxu0 0.0
    %2925 = vmatprep.subr.mxu0 0.0
    %2926 = vmatpush1.msra.mxu0 0.0
    %2927 = vmatprep.mubr.f32.mxu0 0.0
    %2928 = vmatmul.mubr.f32.gmra.mrb[0].mxu0 %v2813
    %v2929 = vpop.f32.mrb[0].mxu0
    %v2930 = vadd.f32 %v2734, %v2929
    %v2931 = vpop.f32.mrb[0].mxu0
    %2932 = vmatprep.mubr.f32.mxu0 0.0
    %2933 = vmatmul.mubr.f32.gmra.mrb[0].mxu0 %v2816
    %v2934 = vpop.f32.mrb[0].mxu0
    %v2935 = vadd.f32 %v2739, %v2934
    %v2936 = vpop.f32.mrb[0].mxu0
    %2937 = vmatprep.mubr.f32.mxu0 0.0
    %2938 = vmatmul.mubr.f32.gmra.mrb[0].mxu0 %v2819
    %v2939 = vpop.f32.mrb[0].mxu0
    %v2940 = vadd.f32 %v2744, %v2939
    %v2941 = vpop.f32.mrb[0].mxu0
    %2942 = vmatprep.mubr.f32.mxu0 0.0
    %2943 = vmatmul.mubr.f32.gmra.mrb[0].mxu0 %v2822
    %v2944 = vpop.f32.mrb[0].mxu0
    %v2945 = vadd.f32 %v2749, %v2944
    %v2946 = vpop.f32.mrb[0].mxu0
    %2947 = vmatprep.mubr.f32.mxu0 0.0
    %2948 = vmatmul.mubr.f32.gmra.mrb[0].mxu0 %v2825
    %v2949 = vpop.f32.mrb[0].mxu0
    %v2950 = vadd.f32 %v2754, %v2949
    %v2951 = vpop.f32.mrb[0].mxu0
    %2952 = vmatprep.mubr.f32.mxu0 0.0
    %2953 = vmatmul.mubr.f32.gmra.mrb[0].mxu0 %v2828
    %v2954 = vpop.f32.mrb[0].mxu0
    %v2955 = vadd.f32 %v2759, %v2954
    %v2956 = vpop.f32.mrb[0].mxu0
    %2957 = vmatprep.mubr.f32.mxu0 0.0
    %2958 = vmatmul.mubr.f32.gmra.mrb[0].mxu0 %v2831
    %v2959 = vpop.f32.mrb[0].mxu0
    %v2960 = vadd.f32 %v2764, %v2959
    %v2961 = vpop.f32.mrb[0].mxu0
    %2962 = vmatprep.mubr.f32.mxu0 0.0
    %2963 = vmatmul.mubr.f32.gmra.mrb[0].mxu0 %v2834
    %v2964 = vpop.f32.mrb[0].mxu0
    %v2965 = vadd.f32 %v2769, %v2964
    %v2966 = vpop.f32.mrb[0].mxu0
    %2967 = vmatprep.mubr.f32.mxu0 0.0
    %2968 = vmatmul.mubr.f32.gmra.mrb[0].mxu0 %v2837
    %v2969 = vpop.f32.mrb[0].mxu0
    %v2970 = vadd.f32 %v2774, %v2969
    %v2971 = vpop.f32.mrb[0].mxu0
    %2972 = vmatprep.mubr.f32.mxu0 0.0
    %2973 = vmatmul.mubr.f32.gmra.mrb[0].mxu0 %v2840
    %v2974 = vpop.f32.mrb[0].mxu0
    %v2975 = vadd.f32 %v2779, %v2974
    %v2976 = vpop.f32.mrb[0].mxu0
    %2977 = vmatprep.mubr.f32.mxu0 0.0
    %2978 = vmatmul.mubr.f32.gmra.mrb[0].mxu0 %v2843
    %v2979 = vpop.f32.mrb[0].mxu0
    %v2980 = vadd.f32 %v2784, %v2979
    %v2981 = vpop.f32.mrb[0].mxu0
    %2982 = vmatprep.mubr.f32.mxu0 0.0
    %2983 = vmatmul.mubr.f32.gmra.mrb[0].mxu0 %v2846
    %v2984 = vpop.f32.mrb[0].mxu0
    %v2985 = vadd.f32 %v2789, %v2984
    %v2986 = vpop.f32.mrb[0].mxu0
    %2987 = vmatprep.mubr.f32.mxu0 0.0
    %2988 = vmatmul.mubr.f32.gmra.mrb[0].mxu0 %v2849
    %v2989 = vpop.f32.mrb[0].mxu0
    %v2990 = vadd.f32 %v2794, %v2989
    %v2991 = vpop.f32.mrb[0].mxu0
    %2992 = vmatprep.mubr.f32.mxu0 0.0
    %2993 = vmatmul.mubr.f32.gmra.mrb[0].mxu0 %v2852
    %v2994 = vpop.f32.mrb[0].mxu0
    %v2995 = vadd.f32 %v2799, %v2994
    %v2996 = vpop.f32.mrb[0].mxu0
    %2997 = vmatprep.mubr.f32.mxu0 0.0
    %2998 = vmatmul.mubr.f32.gmra.mrb[0].mxu0 %v2855
    %v2999 = vpop.f32.mrb[0].mxu0
    %v3000 = vadd.f32 %v2804, %v2999
    %v3001 = vpop.f32.mrb[0].mxu0
    %3002 = vmatprep.mubr.f32.mxu0 0.0
    %3003 = vmatmul.mubr.f32.gmra.mrb[0].mxu0 %v2858
    %v3004 = vpop.f32.mrb[0].mxu0
    %v3005 = vadd.f32 %v2809, %v3004
    %v3006 = vpop.f32.mrb[0].mxu0
    %3007 = vdwg.mxu0
    %v3008 = vld [vmem:[%s684] sm:$0xff]
    %v3009 = vld [vmem:[%s684 + $0x8] sm:$0xff]
    %3010 = vmatprep.subr.mxu0 0.0
    %3011 = vmatpush1.msra.mxu0 %v3008
    %3012 = vmatprep.subr.mxu0 0.0
    %3013 = vmatpush1.msra.mxu0 %v3009
    %3014 = vmatprep.subr.mxu0 0.0
    %3015 = vmatpush1.msra.mxu0 0.0
    %3016 = vmatprep.subr.mxu0 0.0
    %3017 = vmatpush1.msra.mxu0 0.0
    %3018 = vmatprep.subr.mxu0 0.0
    %3019 = vmatpush1.msra.mxu0 0.0
    %3020 = vmatprep.subr.mxu0 0.0
    %3021 = vmatpush1.msra.mxu0 0.0
    %3022 = vmatprep.subr.mxu0 0.0
    %3023 = vmatpush1.msra.mxu0 0.0
    %3024 = vmatprep.subr.mxu0 0.0
    %3025 = vmatpush1.msra.mxu0 0.0
    %3026 = vmatprep.subr.mxu0 0.0
    %3027 = vmatpush1.msra.mxu0 0.0
    %3028 = vmatprep.subr.mxu0 0.0
    %3029 = vmatpush1.msra.mxu0 0.0
    %3030 = vmatprep.subr.mxu0 0.0
    %3031 = vmatpush1.msra.mxu0 0.0
    %3032 = vmatprep.subr.mxu0 0.0
    %3033 = vmatpush1.msra.mxu0 0.0
    %3034 = vmatprep.subr.mxu0 0.0
    %3035 = vmatpush1.msra.mxu0 0.0
    %3036 = vmatprep.subr.mxu0 0.0
    %3037 = vmatpush1.msra.mxu0 0.0
    %3038 = vmatprep.subr.mxu0 0.0
    %3039 = vmatpush1.msra.mxu0 0.0
    %3040 = vmatprep.subr.mxu0 0.0
    %3041 = vmatpush1.msra.mxu0 0.0
    %3042 = vmatprep.subr.mxu0 0.0
    %3043 = vmatpush1.msra.mxu0 0.0
    %3044 = vmatprep.subr.mxu0 0.0
    %3045 = vmatpush1.msra.mxu0 0.0
    %3046 = vmatprep.subr.mxu0 0.0
    %3047 = vmatpush1.msra.mxu0 0.0
    %3048 = vmatprep.subr.mxu0 0.0
    %3049 = vmatpush1.msra.mxu0 0.0
    %3050 = vmatprep.subr.mxu0 0.0
    %3051 = vmatpush1.msra.mxu0 0.0
    %3052 = vmatprep.subr.mxu0 0.0
    %3053 = vmatpush1.msra.mxu0 0.0
    %3054 = vmatprep.subr.mxu0 0.0
    %3055 = vmatpush1.msra.mxu0 0.0
    %3056 = vmatprep.subr.mxu0 0.0
    %3057 = vmatpush1.msra.mxu0 0.0
    %3058 = vmatprep.subr.mxu0 0.0
    %3059 = vmatpush1.msra.mxu0 0.0
    %3060 = vmatprep.subr.mxu0 0.0
    %3061 = vmatpush1.msra.mxu0 0.0
    %3062 = vmatprep.subr.mxu0 0.0
    %3063 = vmatpush1.msra.mxu0 0.0
    %3064 = vmatprep.subr.mxu0 0.0
    %3065 = vmatpush1.msra.mxu0 0.0
    %3066 = vmatprep.subr.mxu0 0.0
    %3067 = vmatpush1.msra.mxu0 0.0
    %3068 = vmatprep.subr.mxu0 0.0
    %3069 = vmatpush1.msra.mxu0 0.0
    %3070 = vmatprep.subr.mxu0 0.0
    %3071 = vmatpush1.msra.mxu0 0.0
    %3072 = vmatprep.subr.mxu0 0.0
    %3073 = vmatpush1.msra.mxu0 0.0
    %3074 = vmatprep.mubr.f32.mxu0 0.0
    %3075 = vmatmul.mubr.f32.gmra.mrb[0].mxu0 %v2427
    %v3076 = vpop.f32.mrb[0].mxu0
    %v3077 = vadd.f32 0.0, %v3076
    %v3078 = vpop.f32.mrb[0].mxu0
    %3079 = vmatprep.mubr.f32.mxu0 0.0
    %3080 = vmatmul.mubr.f32.gmra.mrb[0].mxu0 %v2430
    %v3081 = vpop.f32.mrb[0].mxu0
    %v3082 = vadd.f32 0.0, %v3081
    %v3083 = vpop.f32.mrb[0].mxu0
    %3084 = vdwg.mxu0
    %v3085 = vld [vmem:[%s762] sm:$0xff]
    %v3086 = vld [vmem:[%s762 + $0x8] sm:$0xff]
    %v3087 = vld [vmem:[%s762 + $0x10] sm:$0xff]
    %v3088 = vld [vmem:[%s762 + $0x18] sm:$0xff]
    %v3089 = vld [vmem:[%s762 + $0x20] sm:$0xff]
    %v3090 = vld [vmem:[%s762 + $0x28] sm:$0xff]
    %v3091 = vld [vmem:[%s762 + $0x30] sm:$0xff]
    %v3092 = vld [vmem:[%s762 + $0x38] sm:$0xff]
    %v3093 = vld [vmem:[%s762 + $0x40] sm:$0xff]
    %v3094 = vld [vmem:[%s762 + $0x48] sm:$0xff]
    %v3095 = vld [vmem:[%s762 + $0x50] sm:$0xff]
    %v3096 = vld [vmem:[%s762 + $0x58] sm:$0xff]
    %v3097 = vld [vmem:[%s762 + $0x60] sm:$0xff]
    %v3098 = vld [vmem:[%s762 + $0x68] sm:$0xff]
    %v3099 = vld [vmem:[%s762 + $0x70] sm:$0xff]
    %v3100 = vld [vmem:[%s762 + $0x78] sm:$0xff]
    %v3102 = vsel %vm290, %v3085, 0
    %v3105 = vsel %vm290, %v3086, 0
    %v3108 = vsel %vm290, %v3087, 0
    %v3111 = vsel %vm290, %v3088, 0
    %v3114 = vsel %vm290, %v3089, 0
    %v3117 = vsel %vm290, %v3090, 0
    %v3120 = vsel %vm290, %v3091, 0
    %v3123 = vsel %vm290, %v3092, 0
    %v3126 = vsel %vm290, %v3093, 0
    %v3129 = vsel %vm290, %v3094, 0
    %v3132 = vsel %vm290, %v3095, 0
    %v3135 = vsel %vm290, %v3096, 0
    %v3138 = vsel %vm290, %v3097, 0
    %v3141 = vsel %vm290, %v3098, 0
    %v3144 = vsel %vm290, %v3099, 0
    %v3147 = vsel %vm290, %v3100, 0
    %v3150 = vsel %vm339, %v3082, 0
    %3152 = vmatprep.subr.mxu0 0.0
    %3153 = vmatpush1.msra.mxu0 %v3077
    %3154 = vmatprep.subr.mxu0 0.0
    %3155 = vmatpush1.msra.mxu0 %v3150
    %3156 = vmatprep.subr.mxu0 0.0
    %3157 = vmatpush1.msra.mxu0 0.0
    %3158 = vmatprep.subr.mxu0 0.0
    %3159 = vmatpush1.msra.mxu0 0.0
    %3160 = vmatprep.subr.mxu0 0.0
    %3161 = vmatpush1.msra.mxu0 0.0
    %3162 = vmatprep.subr.mxu0 0.0
    %3163 = vmatpush1.msra.mxu0 0.0
    %3164 = vmatprep.subr.mxu0 0.0
    %3165 = vmatpush1.msra.mxu0 0.0
    %3166 = vmatprep.subr.mxu0 0.0
    %3167 = vmatpush1.msra.mxu0 0.0
    %3168 = vmatprep.subr.mxu0 0.0
    %3169 = vmatpush1.msra.mxu0 0.0
    %3170 = vmatprep.subr.mxu0 0.0
    %3171 = vmatpush1.msra.mxu0 0.0
    %3172 = vmatprep.subr.mxu0 0.0
    %3173 = vmatpush1.msra.mxu0 0.0
    %3174 = vmatprep.subr.mxu0 0.0
    %3175 = vmatpush1.msra.mxu0 0.0
    %3176 = vmatprep.subr.mxu0 0.0
    %3177 = vmatpush1.msra.mxu0 0.0
    %3178 = vmatprep.subr.mxu0 0.0
    %3179 = vmatpush1.msra.mxu0 0.0
    %3180 = vmatprep.subr.mxu0 0.0
    %3181 = vmatpush1.msra.mxu0 0.0
    %3182 = vmatprep.subr.mxu0 0.0
    %3183 = vmatpush1.msra.mxu0 0.0
    %3184 = vmatprep.subr.mxu0 0.0
    %3185 = vmatpush1.msra.mxu0 0.0
    %3186 = vmatprep.subr.mxu0 0.0
    %3187 = vmatpush1.msra.mxu0 0.0
    %3188 = vmatprep.subr.mxu0 0.0
    %3189 = vmatpush1.msra.mxu0 0.0
    %3190 = vmatprep.subr.mxu0 0.0
    %3191 = vmatpush1.msra.mxu0 0.0
    %3192 = vmatprep.subr.mxu0 0.0
    %3193 = vmatpush1.msra.mxu0 0.0
    %3194 = vmatprep.subr.mxu0 0.0
    %3195 = vmatpush1.msra.mxu0 0.0
    %3196 = vmatprep.subr.mxu0 0.0
    %3197 = vmatpush1.msra.mxu0 0.0
    %3198 = vmatprep.subr.mxu0 0.0
    %3199 = vmatpush1.msra.mxu0 0.0
    %3200 = vmatprep.subr.mxu0 0.0
    %3201 = vmatpush1.msra.mxu0 0.0
    %3202 = vmatprep.subr.mxu0 0.0
    %3203 = vmatpush1.msra.mxu0 0.0
    %3204 = vmatprep.subr.mxu0 0.0
    %3205 = vmatpush1.msra.mxu0 0.0
    %3206 = vmatprep.subr.mxu0 0.0
    %3207 = vmatpush1.msra.mxu0 0.0
    %3208 = vmatprep.subr.mxu0 0.0
    %3209 = vmatpush1.msra.mxu0 0.0
    %3210 = vmatprep.subr.mxu0 0.0
    %3211 = vmatpush1.msra.mxu0 0.0
    %3212 = vmatprep.subr.mxu0 0.0
    %3213 = vmatpush1.msra.mxu0 0.0
    %3214 = vmatprep.subr.mxu0 0.0
    %3215 = vmatpush1.msra.mxu0 0.0
    %3216 = vmatprep.mubr.f32.mxu0 0.0
    %3217 = vmatmul.mubr.f32.gmra.mrb[0].mxu0 %v3102
    %v3218 = vpop.f32.mrb[0].mxu0
    %v3219 = vadd.f32 0.0, %v3218
    %v3220 = vpop.f32.mrb[0].mxu0
    %3221 = vmatprep.mubr.f32.mxu0 0.0
    %3222 = vmatmul.mubr.f32.gmra.mrb[0].mxu0 %v3105
    %v3223 = vpop.f32.mrb[0].mxu0
    %v3224 = vadd.f32 0.0, %v3223
    %v3225 = vpop.f32.mrb[0].mxu0
    %3226 = vmatprep.mubr.f32.mxu0 0.0
    %3227 = vmatmul.mubr.f32.gmra.mrb[0].mxu0 %v3108
    %v3228 = vpop.f32.mrb[0].mxu0
    %v3229 = vadd.f32 0.0, %v3228
    %v3230 = vpop.f32.mrb[0].mxu0
    %3231 = vmatprep.mubr.f32.mxu0 0.0
    %3232 = vmatmul.mubr.f32.gmra.mrb[0].mxu0 %v3111
    %v3233 = vpop.f32.mrb[0].mxu0
    %v3234 = vadd.f32 0.0, %v3233
    %v3235 = vpop.f32.mrb[0].mxu0
    %3236 = vmatprep.mubr.f32.mxu0 0.0
    %3237 = vmatmul.mubr.f32.gmra.mrb[0].mxu0 %v3114
    %v3238 = vpop.f32.mrb[0].mxu0
    %v3239 = vadd.f32 0.0, %v3238
    %v3240 = vpop.f32.mrb[0].mxu0
    %3241 = vmatprep.mubr.f32.mxu0 0.0
    %3242 = vmatmul.mubr.f32.gmra.mrb[0].mxu0 %v3117
    %v3243 = vpop.f32.mrb[0].mxu0
    %v3244 = vadd.f32 0.0, %v3243
    %v3245 = vpop.f32.mrb[0].mxu0
    %3246 = vmatprep.mubr.f32.mxu0 0.0
    %3247 = vmatmul.mubr.f32.gmra.mrb[0].mxu0 %v3120
    %v3248 = vpop.f32.mrb[0].mxu0
    %v3249 = vadd.f32 0.0, %v3248
    %v3250 = vpop.f32.mrb[0].mxu0
    %3251 = vmatprep.mubr.f32.mxu0 0.0
    %3252 = vmatmul.mubr.f32.gmra.mrb[0].mxu0 %v3123
    %v3253 = vpop.f32.mrb[0].mxu0
    %v3254 = vadd.f32 0.0, %v3253
    %v3255 = vpop.f32.mrb[0].mxu0
    %3256 = vmatprep.mubr.f32.mxu0 0.0
    %3257 = vmatmul.mubr.f32.gmra.mrb[0].mxu0 %v3126
    %v3258 = vpop.f32.mrb[0].mxu0
    %v3259 = vadd.f32 0.0, %v3258
    %v3260 = vpop.f32.mrb[0].mxu0
    %3261 = vmatprep.mubr.f32.mxu0 0.0
    %3262 = vmatmul.mubr.f32.gmra.mrb[0].mxu0 %v3129
    %v3263 = vpop.f32.mrb[0].mxu0
    %v3264 = vadd.f32 0.0, %v3263
    %v3265 = vpop.f32.mrb[0].mxu0
    %3266 = vmatprep.mubr.f32.mxu0 0.0
    %3267 = vmatmul.mubr.f32.gmra.mrb[0].mxu0 %v3132
    %v3268 = vpop.f32.mrb[0].mxu0
    %v3269 = vadd.f32 0.0, %v3268
    %v3270 = vpop.f32.mrb[0].mxu0
    %3271 = vmatprep.mubr.f32.mxu0 0.0
    %3272 = vmatmul.mubr.f32.gmra.mrb[0].mxu0 %v3135
    %v3273 = vpop.f32.mrb[0].mxu0
    %v3274 = vadd.f32 0.0, %v3273
    %v3275 = vpop.f32.mrb[0].mxu0
    %3276 = vmatprep.mubr.f32.mxu0 0.0
    %3277 = vmatmul.mubr.f32.gmra.mrb[0].mxu0 %v3138
    %v3278 = vpop.f32.mrb[0].mxu0
    %v3279 = vadd.f32 0.0, %v3278
    %v3280 = vpop.f32.mrb[0].mxu0
    %3281 = vmatprep.mubr.f32.mxu0 0.0
    %3282 = vmatmul.mubr.f32.gmra.mrb[0].mxu0 %v3141
    %v3283 = vpop.f32.mrb[0].mxu0
    %v3284 = vadd.f32 0.0, %v3283
    %v3285 = vpop.f32.mrb[0].mxu0
    %3286 = vmatprep.mubr.f32.mxu0 0.0
    %3287 = vmatmul.mubr.f32.gmra.mrb[0].mxu0 %v3144
    %v3288 = vpop.f32.mrb[0].mxu0
    %v3289 = vadd.f32 0.0, %v3288
    %v3290 = vpop.f32.mrb[0].mxu0
    %3291 = vmatprep.mubr.f32.mxu0 0.0
    %3292 = vmatmul.mubr.f32.gmra.mrb[0].mxu0 %v3147
    %v3293 = vpop.f32.mrb[0].mxu0
    %v3294 = vadd.f32 0.0, %v3293
    %v3295 = vpop.f32.mrb[0].mxu0
    %3296 = vdwg.mxu0
    %v3297 = vadd.f32 %v2930, %v3219
    %v3298 = vadd.f32 %v2935, %v3224
    %v3299 = vadd.f32 %v2940, %v3229
    %v3300 = vadd.f32 %v2945, %v3234
    %v3301 = vadd.f32 %v2950, %v3239
    %v3302 = vadd.f32 %v2955, %v3244
    %v3303 = vadd.f32 %v2960, %v3249
    %v3304 = vadd.f32 %v2965, %v3254
    %v3305 = vadd.f32 %v2970, %v3259
    %v3306 = vadd.f32 %v2975, %v3264
    %v3307 = vadd.f32 %v2980, %v3269
    %v3308 = vadd.f32 %v2985, %v3274
    %v3309 = vadd.f32 %v2990, %v3279
    %v3310 = vadd.f32 %v2995, %v3284
    %v3311 = vadd.f32 %v3000, %v3289
    %v3312 = vadd.f32 %v3005, %v3294
    %v3313 = vmul.f32 %v3297, %v994
    %v3314 = vmul.f32 %v3298, %v994
    %v3315 = vmul.f32 %v3299, %v998
    %v3316 = vmul.f32 %v3300, %v998
    %v3317 = vmul.f32 %v3301, %v1002
    %v3318 = vmul.f32 %v3302, %v1002
    %v3319 = vmul.f32 %v3303, %v1006
    %v3320 = vmul.f32 %v3304, %v1006
    %v3321 = vmul.f32 %v3305, %v1010
    %v3322 = vmul.f32 %v3306, %v1010
    %v3323 = vmul.f32 %v3307, %v1014
    %v3324 = vmul.f32 %v3308, %v1014
    %v3325 = vmul.f32 %v3309, %v1018
    %v3326 = vmul.f32 %v3310, %v1018
    %v3327 = vmul.f32 %v3311, %v1022
    %v3328 = vmul.f32 %v3312, %v1022
    %v3329 = vsel %vm97, %v3313, 0.0
    %v3330 = vsel %vm97, %v3315, 0.0
    %v3331 = vadd.f32 %v3329, %v3330
    %v3332 = vsel %vm97, %v3317, 0.0
    %v3333 = vadd.f32 %v3331, %v3332
    %v3334 = vsel %vm97, %v3319, 0.0
    %v3335 = vadd.f32 %v3333, %v3334
    %v3336 = vsel %vm97, %v3321, 0.0
    %v3337 = vadd.f32 %v3335, %v3336
    %v3338 = vsel %vm97, %v3323, 0.0
    %v3339 = vadd.f32 %v3337, %v3338
    %v3340 = vsel %vm97, %v3325, 0.0
    %v3341 = vadd.f32 %v3339, %v3340
    %v3342 = vsel %vm97, %v3327, 0.0
    %v3343 = vadd.f32 %v3341, %v3342
    %v3344 = vsel %vm97, %v3314, 0.0
    %v3345 = vsel %vm97, %v3316, 0.0
    %v3346 = vadd.f32 %v3344, %v3345
    %v3347 = vsel %vm97, %v3318, 0.0
    %v3348 = vadd.f32 %v3346, %v3347
    %v3349 = vsel %vm97, %v3320, 0.0
    %v3350 = vadd.f32 %v3348, %v3349
    %v3351 = vsel %vm97, %v3322, 0.0
    %v3352 = vadd.f32 %v3350, %v3351
    %v3353 = vsel %vm97, %v3324, 0.0
    %v3354 = vadd.f32 %v3352, %v3353
    %v3355 = vsel %vm97, %v3326, 0.0
    %v3356 = vadd.f32 %v3354, %v3355
    %v3357 = vsel %vm97, %v3328, 0.0
    %v3358 = vadd.f32 %v3356, %v3357
    %v3359 = vadd.f32 %v3343, %v90
    %v3360 = vadd.f32 %v3358, %v91
    %v3361 = vxor.u32 %v3359, 2147483648
    %v3362 = vxor.u32 %v3360, 2147483648
    %v3363 = vmul.f32 %v3361, 1.442695
    %v3364 = vpow.pop %v3363
    %v3365 = vmul.f32 %v3362, 1.442695
    %v3366 = vpow.pop %v3365
    %v3367 = vadd.f32 %v3364, 1.0
    %v3368 = vadd.f32 %v3366, 1.0
    %v3369 = vrcp.pop %v3367
    %v3370 = vmul.f32 1.0, %v3369
    %v3371 = vrcp.pop %v3368
    %v3372 = vmul.f32 1.0, %v3371
    %s3373 = scalar_lea.vmem %s3, 8
    %v3374 = vld [vmem:[%s3373] sm:$0xff]
    %v3375 = vmul.f32 %v3370, %v3374
    %s3376 = scalar_lea.vmem %s2, 8
    %v3377 = vld [vmem:[%s3376] sm:$0xff]
    %v3378 = vadd.f32 %v3375, %v3377
    %s3379 = scalar_lea.vmem %s1, 2
    %v3380 = vld [vmem:[%s3379] sm:$0x3]
    %v3382 = vsel %vm97, %v3380, 0
    %3384 = vmatprep.subr.mxu0 0.0
    %3385 = vmatpush1.msra.mxu0 %v2424
    %3386 = vmatprep.subr.mxu0 0.0
    %3387 = vmatpush1.msra.mxu0 %v2425
    %3388 = vmatprep.subr.mxu0 0.0
    %3389 = vmatpush1.msra.mxu0 0.0
    %3390 = vmatprep.subr.mxu0 0.0
    %3391 = vmatpush1.msra.mxu0 0.0
    %3392 = vmatprep.subr.mxu0 0.0
    %3393 = vmatpush1.msra.mxu0 0.0
    %3394 = vmatprep.subr.mxu0 0.0
    %3395 = vmatpush1.msra.mxu0 0.0
    %3396 = vmatprep.subr.mxu0 0.0
    %3397 = vmatpush1.msra.mxu0 0.0
    %3398 = vmatprep.subr.mxu0 0.0
    %3399 = vmatpush1.msra.mxu0 0.0
    %3400 = vmatprep.subr.mxu0 0.0
    %3401 = vmatpush1.msra.mxu0 0.0
    %3402 = vmatprep.subr.mxu0 0.0
    %3403 = vmatpush1.msra.mxu0 0.0
    %3404 = vmatprep.subr.mxu0 0.0
    %3405 = vmatpush1.msra.mxu0 0.0
    %3406 = vmatprep.subr.mxu0 0.0
    %3407 = vmatpush1.msra.mxu0 0.0
    %3408 = vmatprep.subr.mxu0 0.0
    %3409 = vmatpush1.msra.mxu0 0.0
    %3410 = vmatprep.subr.mxu0 0.0
    %3411 = vmatpush1.msra.mxu0 0.0
    %3412 = vmatprep.subr.mxu0 0.0
    %3413 = vmatpush1.msra.mxu0 0.0
    %3414 = vmatprep.subr.mxu0 0.0
    %3415 = vmatpush1.msra.mxu0 0.0
    %3416 = vmatprep.subr.mxu0 0.0
    %3417 = vmatpush1.msra.mxu0 0.0
    %3418 = vmatprep.subr.mxu0 0.0
    %3419 = vmatpush1.msra.mxu0 0.0
    %3420 = vmatprep.subr.mxu0 0.0
    %3421 = vmatpush1.msra.mxu0 0.0
    %3422 = vmatprep.subr.mxu0 0.0
    %3423 = vmatpush1.msra.mxu0 0.0
    %3424 = vmatprep.subr.mxu0 0.0
    %3425 = vmatpush1.msra.mxu0 0.0
    %3426 = vmatprep.subr.mxu0 0.0
    %3427 = vmatpush1.msra.mxu0 0.0
    %3428 = vmatprep.subr.mxu0 0.0
    %3429 = vmatpush1.msra.mxu0 0.0
    %3430 = vmatprep.subr.mxu0 0.0
    %3431 = vmatpush1.msra.mxu0 0.0
    %3432 = vmatprep.subr.mxu0 0.0
    %3433 = vmatpush1.msra.mxu0 0.0
    %3434 = vmatprep.subr.mxu0 0.0
    %3435 = vmatpush1.msra.mxu0 0.0
    %3436 = vmatprep.subr.mxu0 0.0
    %3437 = vmatpush1.msra.mxu0 0.0
    %3438 = vmatprep.subr.mxu0 0.0
    %3439 = vmatpush1.msra.mxu0 0.0
    %3440 = vmatprep.subr.mxu0 0.0
    %3441 = vmatpush1.msra.mxu0 0.0
    %3442 = vmatprep.subr.mxu0 0.0
    %3443 = vmatpush1.msra.mxu0 0.0
    %3444 = vmatprep.subr.mxu0 0.0
    %3445 = vmatpush1.msra.mxu0 0.0
    %3446 = vmatprep.subr.mxu0 0.0
    %3447 = vmatpush1.msra.mxu0 0.0
    %3448 = vmatprep.mubr.f32.mxu0 0.0
    %3449 = vmatmul.mubr.f32.gmra.mrb[0].mxu0 %v3382
    %v3450 = vpop.f32.mrb[0].mxu0
    %v3451 = vadd.f32 0.0, %v3450
    %v3452 = vpop.f32.mrb[0].mxu0
    %3453 = vdwg.mxu0
    %v3455 = vsel %vm97, %v3378, 0
    %3457 = vmatprep.subr.mxu0 0.0
    %3458 = vmatpush1.msra.mxu0 %v2424
    %3459 = vmatprep.subr.mxu0 0.0
    %3460 = vmatpush1.msra.mxu0 %v2425
    %3461 = vmatprep.subr.mxu0 0.0
    %3462 = vmatpush1.msra.mxu0 0.0
    %3463 = vmatprep.subr.mxu0 0.0
    %3464 = vmatpush1.msra.mxu0 0.0
    %3465 = vmatprep.subr.mxu0 0.0
    %3466 = vmatpush1.msra.mxu0 0.0
    %3467 = vmatprep.subr.mxu0 0.0
    %3468 = vmatpush1.msra.mxu0 0.0
    %3469 = vmatprep.subr.mxu0 0.0
    %3470 = vmatpush1.msra.mxu0 0.0
    %3471 = vmatprep.subr.mxu0 0.0
    %3472 = vmatpush1.msra.mxu0 0.0
    %3473 = vmatprep.subr.mxu0 0.0
    %3474 = vmatpush1.msra.mxu0 0.0
    %3475 = vmatprep.subr.mxu0 0.0
    %3476 = vmatpush1.msra.mxu0 0.0
    %3477 = vmatprep.subr.mxu0 0.0
    %3478 = vmatpush1.msra.mxu0 0.0
    %3479 = vmatprep.subr.mxu0 0.0
    %3480 = vmatpush1.msra.mxu0 0.0
    %3481 = vmatprep.subr.mxu0 0.0
    %3482 = vmatpush1.msra.mxu0 0.0
    %3483 = vmatprep.subr.mxu0 0.0
    %3484 = vmatpush1.msra.mxu0 0.0
    %3485 = vmatprep.subr.mxu0 0.0
    %3486 = vmatpush1.msra.mxu0 0.0
    %3487 = vmatprep.subr.mxu0 0.0
    %3488 = vmatpush1.msra.mxu0 0.0
    %3489 = vmatprep.subr.mxu0 0.0
    %3490 = vmatpush1.msra.mxu0 0.0
    %3491 = vmatprep.subr.mxu0 0.0
    %3492 = vmatpush1.msra.mxu0 0.0
    %3493 = vmatprep.subr.mxu0 0.0
    %3494 = vmatpush1.msra.mxu0 0.0
    %3495 = vmatprep.subr.mxu0 0.0
    %3496 = vmatpush1.msra.mxu0 0.0
    %3497 = vmatprep.subr.mxu0 0.0
    %3498 = vmatpush1.msra.mxu0 0.0
    %3499 = vmatprep.subr.mxu0 0.0
    %3500 = vmatpush1.msra.mxu0 0.0
    %3501 = vmatprep.subr.mxu0 0.0
    %3502 = vmatpush1.msra.mxu0 0.0
    %3503 = vmatprep.subr.mxu0 0.0
    %3504 = vmatpush1.msra.mxu0 0.0
    %3505 = vmatprep.subr.mxu0 0.0
    %3506 = vmatpush1.msra.mxu0 0.0
    %3507 = vmatprep.subr.mxu0 0.0
    %3508 = vmatpush1.msra.mxu0 0.0
    %3509 = vmatprep.subr.mxu0 0.0
    %3510 = vmatpush1.msra.mxu0 0.0
    %3511 = vmatprep.subr.mxu0 0.0
    %3512 = vmatpush1.msra.mxu0 0.0
    %3513 = vmatprep.subr.mxu0 0.0
    %3514 = vmatpush1.msra.mxu0 0.0
    %3515 = vmatprep.subr.mxu0 0.0
    %3516 = vmatpush1.msra.mxu0 0.0
    %3517 = vmatprep.subr.mxu0 0.0
    %3518 = vmatpush1.msra.mxu0 0.0
    %3519 = vmatprep.subr.mxu0 0.0
    %3520 = vmatpush1.msra.mxu0 0.0
    %3521 = vmatprep.mubr.f32.mxu0 0.0
    %3522 = vmatmul.mubr.f32.gmra.mrb[0].mxu0 %v3455
    %v3523 = vpop.f32.mrb[0].mxu0
    %v3524 = vadd.f32 0.0, %v3523
    %v3525 = vpop.f32.mrb[0].mxu0
    %3526 = vdwg.mxu0
    %v3527 = vld [vmem:[%s7] sm:$0xff]
    %v3528 = vld [vmem:[%s7 + $0x8] sm:$0xff]
    %v3529 = vld [vmem:[%s7 + $0x10] sm:$0xff]
    %v3530 = vld [vmem:[%s7 + $0x18] sm:$0xff]
    %v3531 = vld [vmem:[%s7 + $0x20] sm:$0xff]
    %v3532 = vld [vmem:[%s7 + $0x28] sm:$0xff]
    %v3533 = vld [vmem:[%s7 + $0x30] sm:$0xff]
    %v3534 = vld [vmem:[%s7 + $0x38] sm:$0xff]
    %v3535 = vld [vmem:[%s8] sm:$0xff]
    %v3536 = vld [vmem:[%s8 + $0x8] sm:$0xff]
    %v3537 = vld [vmem:[%s8 + $0x10] sm:$0xff]
    %v3538 = vld [vmem:[%s8 + $0x18] sm:$0xff]
    %v3539 = vld [vmem:[%s8 + $0x20] sm:$0xff]
    %v3540 = vld [vmem:[%s8 + $0x28] sm:$0xff]
    %v3541 = vld [vmem:[%s8 + $0x30] sm:$0xff]
    %v3542 = vld [vmem:[%s8 + $0x38] sm:$0xff]
    %v3544 = vsel %vm1258, %v3535, 0
    %v3547 = vsel %vm1258, %v3536, 0
    %v3550 = vsel %vm1258, %v3537, 0
    %v3553 = vsel %vm1258, %v3538, 0
    %v3556 = vsel %vm1258, %v3539, 0
    %v3559 = vsel %vm1258, %v3540, 0
    %v3562 = vsel %vm1258, %v3541, 0
    %v3565 = vsel %vm1258, %v3542, 0
    %3567 = vmatprep.subr.mxu0 0.0
    %3568 = vmatpush1.msra.mxu0 %v3524
    %3569 = vmatprep.subr.mxu0 0.0
    %3570 = vmatpush1.msra.mxu0 0.0
    %3571 = vmatprep.subr.mxu0 0.0
    %3572 = vmatpush1.msra.mxu0 0.0
    %3573 = vmatprep.subr.mxu0 0.0
    %3574 = vmatpush1.msra.mxu0 0.0
    %3575 = vmatprep.subr.mxu0 0.0
    %3576 = vmatpush1.msra.mxu0 0.0
    %3577 = vmatprep.subr.mxu0 0.0
    %3578 = vmatpush1.msra.mxu0 0.0
    %3579 = vmatprep.subr.mxu0 0.0
    %3580 = vmatpush1.msra.mxu0 0.0
    %3581 = vmatprep.subr.mxu0 0.0
    %3582 = vmatpush1.msra.mxu0 0.0
    %3583 = vmatprep.subr.mxu0 0.0
    %3584 = vmatpush1.msra.mxu0 0.0
    %3585 = vmatprep.subr.mxu0 0.0
    %3586 = vmatpush1.msra.mxu0 0.0
    %3587 = vmatprep.subr.mxu0 0.0
    %3588 = vmatpush1.msra.mxu0 0.0
    %3589 = vmatprep.subr.mxu0 0.0
    %3590 = vmatpush1.msra.mxu0 0.0
    %3591 = vmatprep.subr.mxu0 0.0
    %3592 = vmatpush1.msra.mxu0 0.0
    %3593 = vmatprep.subr.mxu0 0.0
    %3594 = vmatpush1.msra.mxu0 0.0
    %3595 = vmatprep.subr.mxu0 0.0
    %3596 = vmatpush1.msra.mxu0 0.0
    %3597 = vmatprep.subr.mxu0 0.0
    %3598 = vmatpush1.msra.mxu0 0.0
    %3599 = vmatprep.subr.mxu0 0.0
    %3600 = vmatpush1.msra.mxu0 0.0
    %3601 = vmatprep.subr.mxu0 0.0
    %3602 = vmatpush1.msra.mxu0 0.0
    %3603 = vmatprep.subr.mxu0 0.0
    %3604 = vmatpush1.msra.mxu0 0.0
    %3605 = vmatprep.subr.mxu0 0.0
    %3606 = vmatpush1.msra.mxu0 0.0
    %3607 = vmatprep.subr.mxu0 0.0
    %3608 = vmatpush1.msra.mxu0 0.0
    %3609 = vmatprep.subr.mxu0 0.0
    %3610 = vmatpush1.msra.mxu0 0.0
    %3611 = vmatprep.subr.mxu0 0.0
    %3612 = vmatpush1.msra.mxu0 0.0
    %3613 = vmatprep.subr.mxu0 0.0
    %3614 = vmatpush1.msra.mxu0 0.0
    %3615 = vmatprep.subr.mxu0 0.0
    %3616 = vmatpush1.msra.mxu0 0.0
    %3617 = vmatprep.subr.mxu0 0.0
    %3618 = vmatpush1.msra.mxu0 0.0
    %3619 = vmatprep.subr.mxu0 0.0
    %3620 = vmatpush1.msra.mxu0 0.0
    %3621 = vmatprep.subr.mxu0 0.0
    %3622 = vmatpush1.msra.mxu0 0.0
    %3623 = vmatprep.subr.mxu0 0.0
    %3624 = vmatpush1.msra.mxu0 0.0
    %3625 = vmatprep.subr.mxu0 0.0
    %3626 = vmatpush1.msra.mxu0 0.0
    %3627 = vmatprep.subr.mxu0 0.0
    %3628 = vmatpush1.msra.mxu0 0.0
    %3629 = vmatprep.subr.mxu0 0.0
    %3630 = vmatpush1.msra.mxu0 0.0
    %3631 = vmatprep.mubr.f32.mxu0 0.0
    %3632 = vmatmul.mubr.f32.gmra.mrb[0].mxu0 %v3544
    %v3633 = vpop.f32.mrb[0].mxu0
    %v3634 = vadd.f32 0.0, %v3633
    %v3635 = vpop.f32.mrb[0].mxu0
    %3636 = vmatprep.mubr.f32.mxu0 0.0
    %3637 = vmatmul.mubr.f32.gmra.mrb[0].mxu0 %v3547
    %v3638 = vpop.f32.mrb[0].mxu0
    %v3639 = vadd.f32 0.0, %v3638
    %v3640 = vpop.f32.mrb[0].mxu0
    %3641 = vmatprep.mubr.f32.mxu0 0.0
    %3642 = vmatmul.mubr.f32.gmra.mrb[0].mxu0 %v3550
    %v3643 = vpop.f32.mrb[0].mxu0
    %v3644 = vadd.f32 0.0, %v3643
    %v3645 = vpop.f32.mrb[0].mxu0
    %3646 = vmatprep.mubr.f32.mxu0 0.0
    %3647 = vmatmul.mubr.f32.gmra.mrb[0].mxu0 %v3553
    %v3648 = vpop.f32.mrb[0].mxu0
    %v3649 = vadd.f32 0.0, %v3648
    %v3650 = vpop.f32.mrb[0].mxu0
    %3651 = vmatprep.mubr.f32.mxu0 0.0
    %3652 = vmatmul.mubr.f32.gmra.mrb[0].mxu0 %v3556
    %v3653 = vpop.f32.mrb[0].mxu0
    %v3654 = vadd.f32 0.0, %v3653
    %v3655 = vpop.f32.mrb[0].mxu0
    %3656 = vmatprep.mubr.f32.mxu0 0.0
    %3657 = vmatmul.mubr.f32.gmra.mrb[0].mxu0 %v3559
    %v3658 = vpop.f32.mrb[0].mxu0
    %v3659 = vadd.f32 0.0, %v3658
    %v3660 = vpop.f32.mrb[0].mxu0
    %3661 = vmatprep.mubr.f32.mxu0 0.0
    %3662 = vmatmul.mubr.f32.gmra.mrb[0].mxu0 %v3562
    %v3663 = vpop.f32.mrb[0].mxu0
    %v3664 = vadd.f32 0.0, %v3663
    %v3665 = vpop.f32.mrb[0].mxu0
    %3666 = vmatprep.mubr.f32.mxu0 0.0
    %3667 = vmatmul.mubr.f32.gmra.mrb[0].mxu0 %v3565
    %v3668 = vpop.f32.mrb[0].mxu0
    %v3669 = vadd.f32 0.0, %v3668
    %v3670 = vpop.f32.mrb[0].mxu0
    %3671 = vdwg.mxu0
    %v3673 = vsel %vm1388, %v3527, 0
    %v3676 = vsel %vm1388, %v3528, 0
    %v3679 = vsel %vm1388, %v3529, 0
    %v3682 = vsel %vm1388, %v3530, 0
    %v3685 = vsel %vm1388, %v3531, 0
    %v3688 = vsel %vm1388, %v3532, 0
    %v3691 = vsel %vm1388, %v3533, 0
    %v3694 = vsel %vm1388, %v3534, 0
    %v3697 = vsel %vm339, %v3451, 0
    %3699 = vmatprep.subr.mxu0 0.0
    %3700 = vmatpush1.msra.mxu0 %v3697
    %3701 = vmatprep.subr.mxu0 0.0
    %3702 = vmatpush1.msra.mxu0 0.0
    %3703 = vmatprep.subr.mxu0 0.0
    %3704 = vmatpush1.msra.mxu0 0.0
    %3705 = vmatprep.subr.mxu0 0.0
    %3706 = vmatpush1.msra.mxu0 0.0
    %3707 = vmatprep.subr.mxu0 0.0
    %3708 = vmatpush1.msra.mxu0 0.0
    %3709 = vmatprep.subr.mxu0 0.0
    %3710 = vmatpush1.msra.mxu0 0.0
    %3711 = vmatprep.subr.mxu0 0.0
    %3712 = vmatpush1.msra.mxu0 0.0
    %3713 = vmatprep.subr.mxu0 0.0
    %3714 = vmatpush1.msra.mxu0 0.0
    %3715 = vmatprep.subr.mxu0 0.0
    %3716 = vmatpush1.msra.mxu0 0.0
    %3717 = vmatprep.subr.mxu0 0.0
    %3718 = vmatpush1.msra.mxu0 0.0
    %3719 = vmatprep.subr.mxu0 0.0
    %3720 = vmatpush1.msra.mxu0 0.0
    %3721 = vmatprep.subr.mxu0 0.0
    %3722 = vmatpush1.msra.mxu0 0.0
    %3723 = vmatprep.subr.mxu0 0.0
    %3724 = vmatpush1.msra.mxu0 0.0
    %3725 = vmatprep.subr.mxu0 0.0
    %3726 = vmatpush1.msra.mxu0 0.0
    %3727 = vmatprep.subr.mxu0 0.0
    %3728 = vmatpush1.msra.mxu0 0.0
    %3729 = vmatprep.subr.mxu0 0.0
    %3730 = vmatpush1.msra.mxu0 0.0
    %3731 = vmatprep.subr.mxu0 0.0
    %3732 = vmatpush1.msra.mxu0 0.0
    %3733 = vmatprep.subr.mxu0 0.0
    %3734 = vmatpush1.msra.mxu0 0.0
    %3735 = vmatprep.subr.mxu0 0.0
    %3736 = vmatpush1.msra.mxu0 0.0
    %3737 = vmatprep.subr.mxu0 0.0
    %3738 = vmatpush1.msra.mxu0 0.0
    %3739 = vmatprep.subr.mxu0 0.0
    %3740 = vmatpush1.msra.mxu0 0.0
    %3741 = vmatprep.subr.mxu0 0.0
    %3742 = vmatpush1.msra.mxu0 0.0
    %3743 = vmatprep.subr.mxu0 0.0
    %3744 = vmatpush1.msra.mxu0 0.0
    %3745 = vmatprep.subr.mxu0 0.0
    %3746 = vmatpush1.msra.mxu0 0.0
    %3747 = vmatprep.subr.mxu0 0.0
    %3748 = vmatpush1.msra.mxu0 0.0
    %3749 = vmatprep.subr.mxu0 0.0
    %3750 = vmatpush1.msra.mxu0 0.0
    %3751 = vmatprep.subr.mxu0 0.0
    %3752 = vmatpush1.msra.mxu0 0.0
    %3753 = vmatprep.subr.mxu0 0.0
    %3754 = vmatpush1.msra.mxu0 0.0
    %3755 = vmatprep.subr.mxu0 0.0
    %3756 = vmatpush1.msra.mxu0 0.0
    %3757 = vmatprep.subr.mxu0 0.0
    %3758 = vmatpush1.msra.mxu0 0.0
    %3759 = vmatprep.subr.mxu0 0.0
    %3760 = vmatpush1.msra.mxu0 0.0
    %3761 = vmatprep.subr.mxu0 0.0
    %3762 = vmatpush1.msra.mxu0 0.0
    %3763 = vmatprep.mubr.f32.mxu0 0.0
    %3764 = vmatmul.mubr.f32.gmra.mrb[0].mxu0 %v3673
    %v3765 = vpop.f32.mrb[0].mxu0
    %v3766 = vadd.f32 %v3634, %v3765
    %v3767 = vpop.f32.mrb[0].mxu0
    %3768 = vmatprep.mubr.f32.mxu0 0.0
    %3769 = vmatmul.mubr.f32.gmra.mrb[0].mxu0 %v3676
    %v3770 = vpop.f32.mrb[0].mxu0
    %v3771 = vadd.f32 %v3639, %v3770
    %v3772 = vpop.f32.mrb[0].mxu0
    %3773 = vmatprep.mubr.f32.mxu0 0.0
    %3774 = vmatmul.mubr.f32.gmra.mrb[0].mxu0 %v3679
    %v3775 = vpop.f32.mrb[0].mxu0
    %v3776 = vadd.f32 %v3644, %v3775
    %v3777 = vpop.f32.mrb[0].mxu0
    %3778 = vmatprep.mubr.f32.mxu0 0.0
    %3779 = vmatmul.mubr.f32.gmra.mrb[0].mxu0 %v3682
    %v3780 = vpop.f32.mrb[0].mxu0
    %v3781 = vadd.f32 %v3649, %v3780
    %v3782 = vpop.f32.mrb[0].mxu0
    %3783 = vmatprep.mubr.f32.mxu0 0.0
    %3784 = vmatmul.mubr.f32.gmra.mrb[0].mxu0 %v3685
    %v3785 = vpop.f32.mrb[0].mxu0
    %v3786 = vadd.f32 %v3654, %v3785
    %v3787 = vpop.f32.mrb[0].mxu0
    %3788 = vmatprep.mubr.f32.mxu0 0.0
    %3789 = vmatmul.mubr.f32.gmra.mrb[0].mxu0 %v3688
    %v3790 = vpop.f32.mrb[0].mxu0
    %v3791 = vadd.f32 %v3659, %v3790
    %v3792 = vpop.f32.mrb[0].mxu0
    %3793 = vmatprep.mubr.f32.mxu0 0.0
    %3794 = vmatmul.mubr.f32.gmra.mrb[0].mxu0 %v3691
    %v3795 = vpop.f32.mrb[0].mxu0
    %v3796 = vadd.f32 %v3664, %v3795
    %v3797 = vpop.f32.mrb[0].mxu0
    %3798 = vmatprep.mubr.f32.mxu0 0.0
    %3799 = vmatmul.mubr.f32.gmra.mrb[0].mxu0 %v3694
    %v3800 = vpop.f32.mrb[0].mxu0
    %v3801 = vadd.f32 %v3669, %v3800
    %v3802 = vpop.f32.mrb[0].mxu0
    %3803 = vdwg.mxu0
    %3804 = vmatprep.subr.mxu0 0.0
    %3805 = vmatpush1.msra.mxu0 %v2523
    %3806 = vmatprep.subr.mxu0 0.0
    %3807 = vmatpush1.msra.mxu0 %v2524
    %3808 = vmatprep.subr.mxu0 0.0
    %3809 = vmatpush1.msra.mxu0 0.0
    %3810 = vmatprep.subr.mxu0 0.0
    %3811 = vmatpush1.msra.mxu0 0.0
    %3812 = vmatprep.subr.mxu0 0.0
    %3813 = vmatpush1.msra.mxu0 0.0
    %3814 = vmatprep.subr.mxu0 0.0
    %3815 = vmatpush1.msra.mxu0 0.0
    %3816 = vmatprep.subr.mxu0 0.0
    %3817 = vmatpush1.msra.mxu0 0.0
    %3818 = vmatprep.subr.mxu0 0.0
    %3819 = vmatpush1.msra.mxu0 0.0
    %3820 = vmatprep.subr.mxu0 0.0
    %3821 = vmatpush1.msra.mxu0 0.0
    %3822 = vmatprep.subr.mxu0 0.0
    %3823 = vmatpush1.msra.mxu0 0.0
    %3824 = vmatprep.subr.mxu0 0.0
    %3825 = vmatpush1.msra.mxu0 0.0
    %3826 = vmatprep.subr.mxu0 0.0
    %3827 = vmatpush1.msra.mxu0 0.0
    %3828 = vmatprep.subr.mxu0 0.0
    %3829 = vmatpush1.msra.mxu0 0.0
    %3830 = vmatprep.subr.mxu0 0.0
    %3831 = vmatpush1.msra.mxu0 0.0
    %3832 = vmatprep.subr.mxu0 0.0
    %3833 = vmatpush1.msra.mxu0 0.0
    %3834 = vmatprep.subr.mxu0 0.0
    %3835 = vmatpush1.msra.mxu0 0.0
    %3836 = vmatprep.subr.mxu0 0.0
    %3837 = vmatpush1.msra.mxu0 0.0
    %3838 = vmatprep.subr.mxu0 0.0
    %3839 = vmatpush1.msra.mxu0 0.0
    %3840 = vmatprep.subr.mxu0 0.0
    %3841 = vmatpush1.msra.mxu0 0.0
    %3842 = vmatprep.subr.mxu0 0.0
    %3843 = vmatpush1.msra.mxu0 0.0
    %3844 = vmatprep.subr.mxu0 0.0
    %3845 = vmatpush1.msra.mxu0 0.0
    %3846 = vmatprep.subr.mxu0 0.0
    %3847 = vmatpush1.msra.mxu0 0.0
    %3848 = vmatprep.subr.mxu0 0.0
    %3849 = vmatpush1.msra.mxu0 0.0
    %3850 = vmatprep.subr.mxu0 0.0
    %3851 = vmatpush1.msra.mxu0 0.0
    %3852 = vmatprep.subr.mxu0 0.0
    %3853 = vmatpush1.msra.mxu0 0.0
    %3854 = vmatprep.subr.mxu0 0.0
    %3855 = vmatpush1.msra.mxu0 0.0
    %3856 = vmatprep.subr.mxu0 0.0
    %3857 = vmatpush1.msra.mxu0 0.0
    %3858 = vmatprep.subr.mxu0 0.0
    %3859 = vmatpush1.msra.mxu0 0.0
    %3860 = vmatprep.subr.mxu0 0.0
    %3861 = vmatpush1.msra.mxu0 0.0
    %3862 = vmatprep.subr.mxu0 0.0
    %3863 = vmatpush1.msra.mxu0 0.0
    %3864 = vmatprep.subr.mxu0 0.0
    %3865 = vmatpush1.msra.mxu0 0.0
    %3866 = vmatprep.subr.mxu0 0.0
    %3867 = vmatpush1.msra.mxu0 0.0
    %3868 = vmatprep.mubr.f32.mxu0 0.0
    %3869 = vmatmul.mubr.f32.gmra.mrb[0].mxu0 %v3382
    %v3870 = vpop.f32.mrb[0].mxu0
    %v3871 = vadd.f32 0.0, %v3870
    %v3872 = vpop.f32.mrb[0].mxu0
    %3873 = vdwg.mxu0
    %3874 = vmatprep.subr.mxu0 0.0
    %3875 = vmatpush1.msra.mxu0 %v2523
    %3876 = vmatprep.subr.mxu0 0.0
    %3877 = vmatpush1.msra.mxu0 %v2524
    %3878 = vmatprep.subr.mxu0 0.0
    %3879 = vmatpush1.msra.mxu0 0.0
    %3880 = vmatprep.subr.mxu0 0.0
    %3881 = vmatpush1.msra.mxu0 0.0
    %3882 = vmatprep.subr.mxu0 0.0
    %3883 = vmatpush1.msra.mxu0 0.0
    %3884 = vmatprep.subr.mxu0 0.0
    %3885 = vmatpush1.msra.mxu0 0.0
    %3886 = vmatprep.subr.mxu0 0.0
    %3887 = vmatpush1.msra.mxu0 0.0
    %3888 = vmatprep.subr.mxu0 0.0
    %3889 = vmatpush1.msra.mxu0 0.0
    %3890 = vmatprep.subr.mxu0 0.0
    %3891 = vmatpush1.msra.mxu0 0.0
    %3892 = vmatprep.subr.mxu0 0.0
    %3893 = vmatpush1.msra.mxu0 0.0
    %3894 = vmatprep.subr.mxu0 0.0
    %3895 = vmatpush1.msra.mxu0 0.0
    %3896 = vmatprep.subr.mxu0 0.0
    %3897 = vmatpush1.msra.mxu0 0.0
    %3898 = vmatprep.subr.mxu0 0.0
    %3899 = vmatpush1.msra.mxu0 0.0
    %3900 = vmatprep.subr.mxu0 0.0
    %3901 = vmatpush1.msra.mxu0 0.0
    %3902 = vmatprep.subr.mxu0 0.0
    %3903 = vmatpush1.msra.mxu0 0.0
    %3904 = vmatprep.subr.mxu0 0.0
    %3905 = vmatpush1.msra.mxu0 0.0
    %3906 = vmatprep.subr.mxu0 0.0
    %3907 = vmatpush1.msra.mxu0 0.0
    %3908 = vmatprep.subr.mxu0 0.0
    %3909 = vmatpush1.msra.mxu0 0.0
    %3910 = vmatprep.subr.mxu0 0.0
    %3911 = vmatpush1.msra.mxu0 0.0
    %3912 = vmatprep.subr.mxu0 0.0
    %3913 = vmatpush1.msra.mxu0 0.0
    %3914 = vmatprep.subr.mxu0 0.0
    %3915 = vmatpush1.msra.mxu0 0.0
    %3916 = vmatprep.subr.mxu0 0.0
    %3917 = vmatpush1.msra.mxu0 0.0
    %3918 = vmatprep.subr.mxu0 0.0
    %3919 = vmatpush1.msra.mxu0 0.0
    %3920 = vmatprep.subr.mxu0 0.0
    %3921 = vmatpush1.msra.mxu0 0.0
    %3922 = vmatprep.subr.mxu0 0.0
    %3923 = vmatpush1.msra.mxu0 0.0
    %3924 = vmatprep.subr.mxu0 0.0
    %3925 = vmatpush1.msra.mxu0 0.0
    %3926 = vmatprep.subr.mxu0 0.0
    %3927 = vmatpush1.msra.mxu0 0.0
    %3928 = vmatprep.subr.mxu0 0.0
    %3929 = vmatpush1.msra.mxu0 0.0
    %3930 = vmatprep.subr.mxu0 0.0
    %3931 = vmatpush1.msra.mxu0 0.0
    %3932 = vmatprep.subr.mxu0 0.0
    %3933 = vmatpush1.msra.mxu0 0.0
    %3934 = vmatprep.subr.mxu0 0.0
    %3935 = vmatpush1.msra.mxu0 0.0
    %3936 = vmatprep.subr.mxu0 0.0
    %3937 = vmatpush1.msra.mxu0 0.0
    %3938 = vmatprep.mubr.f32.mxu0 0.0
    %3939 = vmatmul.mubr.f32.gmra.mrb[0].mxu0 %v3455
    %v3940 = vpop.f32.mrb[0].mxu0
    %v3941 = vadd.f32 0.0, %v3940
    %v3942 = vpop.f32.mrb[0].mxu0
    %3943 = vdwg.mxu0
    %v3944 = vld [vmem:[%s1661] sm:$0xff]
    %v3945 = vld [vmem:[%s1661 + $0x8] sm:$0xff]
    %v3946 = vld [vmem:[%s1661 + $0x10] sm:$0xff]
    %v3947 = vld [vmem:[%s1661 + $0x18] sm:$0xff]
    %v3948 = vld [vmem:[%s1661 + $0x20] sm:$0xff]
    %v3949 = vld [vmem:[%s1661 + $0x28] sm:$0xff]
    %v3950 = vld [vmem:[%s1661 + $0x30] sm:$0xff]
    %v3951 = vld [vmem:[%s1661 + $0x38] sm:$0xff]
    %v3953 = vsel %vm1388, %v3944, 0
    %v3956 = vsel %vm1388, %v3945, 0
    %v3959 = vsel %vm1388, %v3946, 0
    %v3962 = vsel %vm1388, %v3947, 0
    %v3965 = vsel %vm1388, %v3948, 0
    %v3968 = vsel %vm1388, %v3949, 0
    %v3971 = vsel %vm1388, %v3950, 0
    %v3974 = vsel %vm1388, %v3951, 0
    %v3977 = vsel %vm339, %v3871, 0
    %3979 = vmatprep.subr.mxu0 0.0
    %3980 = vmatpush1.msra.mxu0 %v3977
    %3981 = vmatprep.subr.mxu0 0.0
    %3982 = vmatpush1.msra.mxu0 0.0
    %3983 = vmatprep.subr.mxu0 0.0
    %3984 = vmatpush1.msra.mxu0 0.0
    %3985 = vmatprep.subr.mxu0 0.0
    %3986 = vmatpush1.msra.mxu0 0.0
    %3987 = vmatprep.subr.mxu0 0.0
    %3988 = vmatpush1.msra.mxu0 0.0
    %3989 = vmatprep.subr.mxu0 0.0
    %3990 = vmatpush1.msra.mxu0 0.0
    %3991 = vmatprep.subr.mxu0 0.0
    %3992 = vmatpush1.msra.mxu0 0.0
    %3993 = vmatprep.subr.mxu0 0.0
    %3994 = vmatpush1.msra.mxu0 0.0
    %3995 = vmatprep.subr.mxu0 0.0
    %3996 = vmatpush1.msra.mxu0 0.0
    %3997 = vmatprep.subr.mxu0 0.0
    %3998 = vmatpush1.msra.mxu0 0.0
    %3999 = vmatprep.subr.mxu0 0.0
    %4000 = vmatpush1.msra.mxu0 0.0
    %4001 = vmatprep.subr.mxu0 0.0
    %4002 = vmatpush1.msra.mxu0 0.0
    %4003 = vmatprep.subr.mxu0 0.0
    %4004 = vmatpush1.msra.mxu0 0.0
    %4005 = vmatprep.subr.mxu0 0.0
    %4006 = vmatpush1.msra.mxu0 0.0
    %4007 = vmatprep.subr.mxu0 0.0
    %4008 = vmatpush1.msra.mxu0 0.0
    %4009 = vmatprep.subr.mxu0 0.0
    %4010 = vmatpush1.msra.mxu0 0.0
    %4011 = vmatprep.subr.mxu0 0.0
    %4012 = vmatpush1.msra.mxu0 0.0
    %4013 = vmatprep.subr.mxu0 0.0
    %4014 = vmatpush1.msra.mxu0 0.0
    %4015 = vmatprep.subr.mxu0 0.0
    %4016 = vmatpush1.msra.mxu0 0.0
    %4017 = vmatprep.subr.mxu0 0.0
    %4018 = vmatpush1.msra.mxu0 0.0
    %4019 = vmatprep.subr.mxu0 0.0
    %4020 = vmatpush1.msra.mxu0 0.0
    %4021 = vmatprep.subr.mxu0 0.0
    %4022 = vmatpush1.msra.mxu0 0.0
    %4023 = vmatprep.subr.mxu0 0.0
    %4024 = vmatpush1.msra.mxu0 0.0
    %4025 = vmatprep.subr.mxu0 0.0
    %4026 = vmatpush1.msra.mxu0 0.0
    %4027 = vmatprep.subr.mxu0 0.0
    %4028 = vmatpush1.msra.mxu0 0.0
    %4029 = vmatprep.subr.mxu0 0.0
    %4030 = vmatpush1.msra.mxu0 0.0
    %4031 = vmatprep.subr.mxu0 0.0
    %4032 = vmatpush1.msra.mxu0 0.0
    %4033 = vmatprep.subr.mxu0 0.0
    %4034 = vmatpush1.msra.mxu0 0.0
    %4035 = vmatprep.subr.mxu0 0.0
    %4036 = vmatpush1.msra.mxu0 0.0
    %4037 = vmatprep.subr.mxu0 0.0
    %4038 = vmatpush1.msra.mxu0 0.0
    %4039 = vmatprep.subr.mxu0 0.0
    %4040 = vmatpush1.msra.mxu0 0.0
    %4041 = vmatprep.subr.mxu0 0.0
    %4042 = vmatpush1.msra.mxu0 0.0
    %4043 = vmatprep.mubr.f32.mxu0 0.0
    %4044 = vmatmul.mubr.f32.gmra.mrb[0].mxu0 %v3953
    %v4045 = vpop.f32.mrb[0].mxu0
    %v4046 = vadd.f32 0.0, %v4045
    %v4047 = vpop.f32.mrb[0].mxu0
    %4048 = vmatprep.mubr.f32.mxu0 0.0
    %4049 = vmatmul.mubr.f32.gmra.mrb[0].mxu0 %v3956
    %v4050 = vpop.f32.mrb[0].mxu0
    %v4051 = vadd.f32 0.0, %v4050
    %v4052 = vpop.f32.mrb[0].mxu0
    %4053 = vmatprep.mubr.f32.mxu0 0.0
    %4054 = vmatmul.mubr.f32.gmra.mrb[0].mxu0 %v3959
    %v4055 = vpop.f32.mrb[0].mxu0
    %v4056 = vadd.f32 0.0, %v4055
    %v4057 = vpop.f32.mrb[0].mxu0
    %4058 = vmatprep.mubr.f32.mxu0 0.0
    %4059 = vmatmul.mubr.f32.gmra.mrb[0].mxu0 %v3962
    %v4060 = vpop.f32.mrb[0].mxu0
    %v4061 = vadd.f32 0.0, %v4060
    %v4062 = vpop.f32.mrb[0].mxu0
    %4063 = vmatprep.mubr.f32.mxu0 0.0
    %4064 = vmatmul.mubr.f32.gmra.mrb[0].mxu0 %v3965
    %v4065 = vpop.f32.mrb[0].mxu0
    %v4066 = vadd.f32 0.0, %v4065
    %v4067 = vpop.f32.mrb[0].mxu0
    %4068 = vmatprep.mubr.f32.mxu0 0.0
    %4069 = vmatmul.mubr.f32.gmra.mrb[0].mxu0 %v3968
    %v4070 = vpop.f32.mrb[0].mxu0
    %v4071 = vadd.f32 0.0, %v4070
    %v4072 = vpop.f32.mrb[0].mxu0
    %4073 = vmatprep.mubr.f32.mxu0 0.0
    %4074 = vmatmul.mubr.f32.gmra.mrb[0].mxu0 %v3971
    %v4075 = vpop.f32.mrb[0].mxu0
    %v4076 = vadd.f32 0.0, %v4075
    %v4077 = vpop.f32.mrb[0].mxu0
    %4078 = vmatprep.mubr.f32.mxu0 0.0
    %4079 = vmatmul.mubr.f32.gmra.mrb[0].mxu0 %v3974
    %v4080 = vpop.f32.mrb[0].mxu0
    %v4081 = vadd.f32 0.0, %v4080
    %v4082 = vpop.f32.mrb[0].mxu0
    %4083 = vdwg.mxu0
    %v4084 = vadd.f32 %v3766, %v4046
    %v4085 = vadd.f32 %v3771, %v4051
    %v4086 = vadd.f32 %v3776, %v4056
    %v4087 = vadd.f32 %v3781, %v4061
    %v4088 = vadd.f32 %v3786, %v4066
    %v4089 = vadd.f32 %v3791, %v4071
    %v4090 = vadd.f32 %v3796, %v4076
    %v4091 = vadd.f32 %v3801, %v4081
    %v4092 = vld [vmem:[%s1810] sm:$0xff]
    %v4093 = vld [vmem:[%s1810 + $0x8] sm:$0xff]
    %v4094 = vld [vmem:[%s1810 + $0x10] sm:$0xff]
    %v4095 = vld [vmem:[%s1810 + $0x18] sm:$0xff]
    %v4096 = vld [vmem:[%s1810 + $0x20] sm:$0xff]
    %v4097 = vld [vmem:[%s1810 + $0x28] sm:$0xff]
    %v4098 = vld [vmem:[%s1810 + $0x30] sm:$0xff]
    %v4099 = vld [vmem:[%s1810 + $0x38] sm:$0xff]
    %v4101 = vsel %vm1258, %v4092, 0
    %v4104 = vsel %vm1258, %v4093, 0
    %v4107 = vsel %vm1258, %v4094, 0
    %v4110 = vsel %vm1258, %v4095, 0
    %v4113 = vsel %vm1258, %v4096, 0
    %v4116 = vsel %vm1258, %v4097, 0
    %v4119 = vsel %vm1258, %v4098, 0
    %v4122 = vsel %vm1258, %v4099, 0
    %4124 = vmatprep.subr.mxu0 0.0
    %4125 = vmatpush1.msra.mxu0 %v3941
    %4126 = vmatprep.subr.mxu0 0.0
    %4127 = vmatpush1.msra.mxu0 0.0
    %4128 = vmatprep.subr.mxu0 0.0
    %4129 = vmatpush1.msra.mxu0 0.0
    %4130 = vmatprep.subr.mxu0 0.0
    %4131 = vmatpush1.msra.mxu0 0.0
    %4132 = vmatprep.subr.mxu0 0.0
    %4133 = vmatpush1.msra.mxu0 0.0
    %4134 = vmatprep.subr.mxu0 0.0
    %4135 = vmatpush1.msra.mxu0 0.0
    %4136 = vmatprep.subr.mxu0 0.0
    %4137 = vmatpush1.msra.mxu0 0.0
    %4138 = vmatprep.subr.mxu0 0.0
    %4139 = vmatpush1.msra.mxu0 0.0
    %4140 = vmatprep.subr.mxu0 0.0
    %4141 = vmatpush1.msra.mxu0 0.0
    %4142 = vmatprep.subr.mxu0 0.0
    %4143 = vmatpush1.msra.mxu0 0.0
    %4144 = vmatprep.subr.mxu0 0.0
    %4145 = vmatpush1.msra.mxu0 0.0
    %4146 = vmatprep.subr.mxu0 0.0
    %4147 = vmatpush1.msra.mxu0 0.0
    %4148 = vmatprep.subr.mxu0 0.0
    %4149 = vmatpush1.msra.mxu0 0.0
    %4150 = vmatprep.subr.mxu0 0.0
    %4151 = vmatpush1.msra.mxu0 0.0
    %4152 = vmatprep.subr.mxu0 0.0
    %4153 = vmatpush1.msra.mxu0 0.0
    %4154 = vmatprep.subr.mxu0 0.0
    %4155 = vmatpush1.msra.mxu0 0.0
    %4156 = vmatprep.subr.mxu0 0.0
    %4157 = vmatpush1.msra.mxu0 0.0
    %4158 = vmatprep.subr.mxu0 0.0
    %4159 = vmatpush1.msra.mxu0 0.0
    %4160 = vmatprep.subr.mxu0 0.0
    %4161 = vmatpush1.msra.mxu0 0.0
    %4162 = vmatprep.subr.mxu0 0.0
    %4163 = vmatpush1.msra.mxu0 0.0
    %4164 = vmatprep.subr.mxu0 0.0
    %4165 = vmatpush1.msra.mxu0 0.0
    %4166 = vmatprep.subr.mxu0 0.0
    %4167 = vmatpush1.msra.mxu0 0.0
    %4168 = vmatprep.subr.mxu0 0.0
    %4169 = vmatpush1.msra.mxu0 0.0
    %4170 = vmatprep.subr.mxu0 0.0
    %4171 = vmatpush1.msra.mxu0 0.0
    %4172 = vmatprep.subr.mxu0 0.0
    %4173 = vmatpush1.msra.mxu0 0.0
    %4174 = vmatprep.subr.mxu0 0.0
    %4175 = vmatpush1.msra.mxu0 0.0
    %4176 = vmatprep.subr.mxu0 0.0
    %4177 = vmatpush1.msra.mxu0 0.0
    %4178 = vmatprep.subr.mxu0 0.0
    %4179 = vmatpush1.msra.mxu0 0.0
    %4180 = vmatprep.subr.mxu0 0.0
    %4181 = vmatpush1.msra.mxu0 0.0
    %4182 = vmatprep.subr.mxu0 0.0
    %4183 = vmatpush1.msra.mxu0 0.0
    %4184 = vmatprep.subr.mxu0 0.0
    %4185 = vmatpush1.msra.mxu0 0.0
    %4186 = vmatprep.subr.mxu0 0.0
    %4187 = vmatpush1.msra.mxu0 0.0
    %4188 = vmatprep.mubr.f32.mxu0 0.0
    %4189 = vmatmul.mubr.f32.gmra.mrb[0].mxu0 %v4101
    %v4190 = vpop.f32.mrb[0].mxu0
    %v4191 = vadd.f32 0.0, %v4190
    %v4192 = vpop.f32.mrb[0].mxu0
    %4193 = vmatprep.mubr.f32.mxu0 0.0
    %4194 = vmatmul.mubr.f32.gmra.mrb[0].mxu0 %v4104
    %v4195 = vpop.f32.mrb[0].mxu0
    %v4196 = vadd.f32 0.0, %v4195
    %v4197 = vpop.f32.mrb[0].mxu0
    %4198 = vmatprep.mubr.f32.mxu0 0.0
    %4199 = vmatmul.mubr.f32.gmra.mrb[0].mxu0 %v4107
    %v4200 = vpop.f32.mrb[0].mxu0
    %v4201 = vadd.f32 0.0, %v4200
    %v4202 = vpop.f32.mrb[0].mxu0
    %4203 = vmatprep.mubr.f32.mxu0 0.0
    %4204 = vmatmul.mubr.f32.gmra.mrb[0].mxu0 %v4110
    %v4205 = vpop.f32.mrb[0].mxu0
    %v4206 = vadd.f32 0.0, %v4205
    %v4207 = vpop.f32.mrb[0].mxu0
    %4208 = vmatprep.mubr.f32.mxu0 0.0
    %4209 = vmatmul.mubr.f32.gmra.mrb[0].mxu0 %v4113
    %v4210 = vpop.f32.mrb[0].mxu0
    %v4211 = vadd.f32 0.0, %v4210
    %v4212 = vpop.f32.mrb[0].mxu0
    %4213 = vmatprep.mubr.f32.mxu0 0.0
    %4214 = vmatmul.mubr.f32.gmra.mrb[0].mxu0 %v4116
    %v4215 = vpop.f32.mrb[0].mxu0
    %v4216 = vadd.f32 0.0, %v4215
    %v4217 = vpop.f32.mrb[0].mxu0
    %4218 = vmatprep.mubr.f32.mxu0 0.0
    %4219 = vmatmul.mubr.f32.gmra.mrb[0].mxu0 %v4119
    %v4220 = vpop.f32.mrb[0].mxu0
    %v4221 = vadd.f32 0.0, %v4220
    %v4222 = vpop.f32.mrb[0].mxu0
    %4223 = vmatprep.mubr.f32.mxu0 0.0
    %4224 = vmatmul.mubr.f32.gmra.mrb[0].mxu0 %v4122
    %v4225 = vpop.f32.mrb[0].mxu0
    %v4226 = vadd.f32 0.0, %v4225
    %v4227 = vpop.f32.mrb[0].mxu0
    %4228 = vdwg.mxu0
    %v4229 = vadd.f32 %v4084, %v4191
    %v4230 = vadd.f32 %v4085, %v4196
    %v4231 = vadd.f32 %v4086, %v4201
    %v4232 = vadd.f32 %v4087, %v4206
    %v4233 = vadd.f32 %v4088, %v4211
    %v4234 = vadd.f32 %v4089, %v4216
    %v4235 = vadd.f32 %v4090, %v4221
    %v4236 = vadd.f32 %v4091, %v4226
    %4237 = vmatprep.subr.mxu0 0.0
    %4238 = vmatpush1.msra.mxu0 %v3008
    %4239 = vmatprep.subr.mxu0 0.0
    %4240 = vmatpush1.msra.mxu0 %v3009
    %4241 = vmatprep.subr.mxu0 0.0
    %4242 = vmatpush1.msra.mxu0 0.0
    %4243 = vmatprep.subr.mxu0 0.0
    %4244 = vmatpush1.msra.mxu0 0.0
    %4245 = vmatprep.subr.mxu0 0.0
    %4246 = vmatpush1.msra.mxu0 0.0
    %4247 = vmatprep.subr.mxu0 0.0
    %4248 = vmatpush1.msra.mxu0 0.0
    %4249 = vmatprep.subr.mxu0 0.0
    %4250 = vmatpush1.msra.mxu0 0.0
    %4251 = vmatprep.subr.mxu0 0.0
    %4252 = vmatpush1.msra.mxu0 0.0
    %4253 = vmatprep.subr.mxu0 0.0
    %4254 = vmatpush1.msra.mxu0 0.0
    %4255 = vmatprep.subr.mxu0 0.0
    %4256 = vmatpush1.msra.mxu0 0.0
    %4257 = vmatprep.subr.mxu0 0.0
    %4258 = vmatpush1.msra.mxu0 0.0
    %4259 = vmatprep.subr.mxu0 0.0
    %4260 = vmatpush1.msra.mxu0 0.0
    %4261 = vmatprep.subr.mxu0 0.0
    %4262 = vmatpush1.msra.mxu0 0.0
    %4263 = vmatprep.subr.mxu0 0.0
    %4264 = vmatpush1.msra.mxu0 0.0
    %4265 = vmatprep.subr.mxu0 0.0
    %4266 = vmatpush1.msra.mxu0 0.0
    %4267 = vmatprep.subr.mxu0 0.0
    %4268 = vmatpush1.msra.mxu0 0.0
    %4269 = vmatprep.subr.mxu0 0.0
    %4270 = vmatpush1.msra.mxu0 0.0
    %4271 = vmatprep.subr.mxu0 0.0
    %4272 = vmatpush1.msra.mxu0 0.0
    %4273 = vmatprep.subr.mxu0 0.0
    %4274 = vmatpush1.msra.mxu0 0.0
    %4275 = vmatprep.subr.mxu0 0.0
    %4276 = vmatpush1.msra.mxu0 0.0
    %4277 = vmatprep.subr.mxu0 0.0
    %4278 = vmatpush1.msra.mxu0 0.0
    %4279 = vmatprep.subr.mxu0 0.0
    %4280 = vmatpush1.msra.mxu0 0.0
    %4281 = vmatprep.subr.mxu0 0.0
    %4282 = vmatpush1.msra.mxu0 0.0
    %4283 = vmatprep.subr.mxu0 0.0
    %4284 = vmatpush1.msra.mxu0 0.0
    %4285 = vmatprep.subr.mxu0 0.0
    %4286 = vmatpush1.msra.mxu0 0.0
    %4287 = vmatprep.subr.mxu0 0.0
    %4288 = vmatpush1.msra.mxu0 0.0
    %4289 = vmatprep.subr.mxu0 0.0
    %4290 = vmatpush1.msra.mxu0 0.0
    %4291 = vmatprep.subr.mxu0 0.0
    %4292 = vmatpush1.msra.mxu0 0.0
    %4293 = vmatprep.subr.mxu0 0.0
    %4294 = vmatpush1.msra.mxu0 0.0
    %4295 = vmatprep.subr.mxu0 0.0
    %4296 = vmatpush1.msra.mxu0 0.0
    %4297 = vmatprep.subr.mxu0 0.0
    %4298 = vmatpush1.msra.mxu0 0.0
    %4299 = vmatprep.subr.mxu0 0.0
    %4300 = vmatpush1.msra.mxu0 0.0
    %4301 = vmatprep.mubr.f32.mxu0 0.0
    %4302 = vmatmul.mubr.f32.gmra.mrb[0].mxu0 %v3382
    %v4303 = vpop.f32.mrb[0].mxu0
    %v4304 = vadd.f32 0.0, %v4303
    %v4305 = vpop.f32.mrb[0].mxu0
    %4306 = vdwg.mxu0
    %4307 = vmatprep.subr.mxu0 0.0
    %4308 = vmatpush1.msra.mxu0 %v3008
    %4309 = vmatprep.subr.mxu0 0.0
    %4310 = vmatpush1.msra.mxu0 %v3009
    %4311 = vmatprep.subr.mxu0 0.0
    %4312 = vmatpush1.msra.mxu0 0.0
    %4313 = vmatprep.subr.mxu0 0.0
    %4314 = vmatpush1.msra.mxu0 0.0
    %4315 = vmatprep.subr.mxu0 0.0
    %4316 = vmatpush1.msra.mxu0 0.0
    %4317 = vmatprep.subr.mxu0 0.0
    %4318 = vmatpush1.msra.mxu0 0.0
    %4319 = vmatprep.subr.mxu0 0.0
    %4320 = vmatpush1.msra.mxu0 0.0
    %4321 = vmatprep.subr.mxu0 0.0
    %4322 = vmatpush1.msra.mxu0 0.0
    %4323 = vmatprep.subr.mxu0 0.0
    %4324 = vmatpush1.msra.mxu0 0.0
    %4325 = vmatprep.subr.mxu0 0.0
    %4326 = vmatpush1.msra.mxu0 0.0
    %4327 = vmatprep.subr.mxu0 0.0
    %4328 = vmatpush1.msra.mxu0 0.0
    %4329 = vmatprep.subr.mxu0 0.0
    %4330 = vmatpush1.msra.mxu0 0.0
    %4331 = vmatprep.subr.mxu0 0.0
    %4332 = vmatpush1.msra.mxu0 0.0
    %4333 = vmatprep.subr.mxu0 0.0
    %4334 = vmatpush1.msra.mxu0 0.0
    %4335 = vmatprep.subr.mxu0 0.0
    %4336 = vmatpush1.msra.mxu0 0.0
    %4337 = vmatprep.subr.mxu0 0.0
    %4338 = vmatpush1.msra.mxu0 0.0
    %4339 = vmatprep.subr.mxu0 0.0
    %4340 = vmatpush1.msra.mxu0 0.0
    %4341 = vmatprep.subr.mxu0 0.0
    %4342 = vmatpush1.msra.mxu0 0.0
    %4343 = vmatprep.subr.mxu0 0.0
    %4344 = vmatpush1.msra.mxu0 0.0
    %4345 = vmatprep.subr.mxu0 0.0
    %4346 = vmatpush1.msra.mxu0 0.0
    %4347 = vmatprep.subr.mxu0 0.0
    %4348 = vmatpush1.msra.mxu0 0.0
    %4349 = vmatprep.subr.mxu0 0.0
    %4350 = vmatpush1.msra.mxu0 0.0
    %4351 = vmatprep.subr.mxu0 0.0
    %4352 = vmatpush1.msra.mxu0 0.0
    %4353 = vmatprep.subr.mxu0 0.0
    %4354 = vmatpush1.msra.mxu0 0.0
    %4355 = vmatprep.subr.mxu0 0.0
    %4356 = vmatpush1.msra.mxu0 0.0
    %4357 = vmatprep.subr.mxu0 0.0
    %4358 = vmatpush1.msra.mxu0 0.0
    %4359 = vmatprep.subr.mxu0 0.0
    %4360 = vmatpush1.msra.mxu0 0.0
    %4361 = vmatprep.subr.mxu0 0.0
    %4362 = vmatpush1.msra.mxu0 0.0
    %4363 = vmatprep.subr.mxu0 0.0
    %4364 = vmatpush1.msra.mxu0 0.0
    %4365 = vmatprep.subr.mxu0 0.0
    %4366 = vmatpush1.msra.mxu0 0.0
    %4367 = vmatprep.subr.mxu0 0.0
    %4368 = vmatpush1.msra.mxu0 0.0
    %4369 = vmatprep.subr.mxu0 0.0
    %4370 = vmatpush1.msra.mxu0 0.0
    %4371 = vmatprep.mubr.f32.mxu0 0.0
    %4372 = vmatmul.mubr.f32.gmra.mrb[0].mxu0 %v3455
    %v4373 = vpop.f32.mrb[0].mxu0
    %v4374 = vadd.f32 0.0, %v4373
    %v4375 = vpop.f32.mrb[0].mxu0
    %4376 = vdwg.mxu0
    %v4377 = vld [vmem:[%s2096] sm:$0xff]
    %v4378 = vld [vmem:[%s2096 + $0x8] sm:$0xff]
    %v4379 = vld [vmem:[%s2096 + $0x10] sm:$0xff]
    %v4380 = vld [vmem:[%s2096 + $0x18] sm:$0xff]
    %v4381 = vld [vmem:[%s2096 + $0x20] sm:$0xff]
    %v4382 = vld [vmem:[%s2096 + $0x28] sm:$0xff]
    %v4383 = vld [vmem:[%s2096 + $0x30] sm:$0xff]
    %v4384 = vld [vmem:[%s2096 + $0x38] sm:$0xff]
    %v4386 = vsel %vm1388, %v4377, 0
    %v4389 = vsel %vm1388, %v4378, 0
    %v4392 = vsel %vm1388, %v4379, 0
    %v4395 = vsel %vm1388, %v4380, 0
    %v4398 = vsel %vm1388, %v4381, 0
    %v4401 = vsel %vm1388, %v4382, 0
    %v4404 = vsel %vm1388, %v4383, 0
    %v4407 = vsel %vm1388, %v4384, 0
    %v4410 = vsel %vm339, %v4304, 0
    %4412 = vmatprep.subr.mxu0 0.0
    %4413 = vmatpush1.msra.mxu0 %v4410
    %4414 = vmatprep.subr.mxu0 0.0
    %4415 = vmatpush1.msra.mxu0 0.0
    %4416 = vmatprep.subr.mxu0 0.0
    %4417 = vmatpush1.msra.mxu0 0.0
    %4418 = vmatprep.subr.mxu0 0.0
    %4419 = vmatpush1.msra.mxu0 0.0
    %4420 = vmatprep.subr.mxu0 0.0
    %4421 = vmatpush1.msra.mxu0 0.0
    %4422 = vmatprep.subr.mxu0 0.0
    %4423 = vmatpush1.msra.mxu0 0.0
    %4424 = vmatprep.subr.mxu0 0.0
    %4425 = vmatpush1.msra.mxu0 0.0
    %4426 = vmatprep.subr.mxu0 0.0
    %4427 = vmatpush1.msra.mxu0 0.0
    %4428 = vmatprep.subr.mxu0 0.0
    %4429 = vmatpush1.msra.mxu0 0.0
    %4430 = vmatprep.subr.mxu0 0.0
    %4431 = vmatpush1.msra.mxu0 0.0
    %4432 = vmatprep.subr.mxu0 0.0
    %4433 = vmatpush1.msra.mxu0 0.0
    %4434 = vmatprep.subr.mxu0 0.0
    %4435 = vmatpush1.msra.mxu0 0.0
    %4436 = vmatprep.subr.mxu0 0.0
    %4437 = vmatpush1.msra.mxu0 0.0
    %4438 = vmatprep.subr.mxu0 0.0
    %4439 = vmatpush1.msra.mxu0 0.0
    %4440 = vmatprep.subr.mxu0 0.0
    %4441 = vmatpush1.msra.mxu0 0.0
    %4442 = vmatprep.subr.mxu0 0.0
    %4443 = vmatpush1.msra.mxu0 0.0
    %4444 = vmatprep.subr.mxu0 0.0
    %4445 = vmatpush1.msra.mxu0 0.0
    %4446 = vmatprep.subr.mxu0 0.0
    %4447 = vmatpush1.msra.mxu0 0.0
    %4448 = vmatprep.subr.mxu0 0.0
    %4449 = vmatpush1.msra.mxu0 0.0
    %4450 = vmatprep.subr.mxu0 0.0
    %4451 = vmatpush1.msra.mxu0 0.0
    %4452 = vmatprep.subr.mxu0 0.0
    %4453 = vmatpush1.msra.mxu0 0.0
    %4454 = vmatprep.subr.mxu0 0.0
    %4455 = vmatpush1.msra.mxu0 0.0
    %4456 = vmatprep.subr.mxu0 0.0
    %4457 = vmatpush1.msra.mxu0 0.0
    %4458 = vmatprep.subr.mxu0 0.0
    %4459 = vmatpush1.msra.mxu0 0.0
    %4460 = vmatprep.subr.mxu0 0.0
    %4461 = vmatpush1.msra.mxu0 0.0
    %4462 = vmatprep.subr.mxu0 0.0
    %4463 = vmatpush1.msra.mxu0 0.0
    %4464 = vmatprep.subr.mxu0 0.0
    %4465 = vmatpush1.msra.mxu0 0.0
    %4466 = vmatprep.subr.mxu0 0.0
    %4467 = vmatpush1.msra.mxu0 0.0
    %4468 = vmatprep.subr.mxu0 0.0
    %4469 = vmatpush1.msra.mxu0 0.0
    %4470 = vmatprep.subr.mxu0 0.0
    %4471 = vmatpush1.msra.mxu0 0.0
    %4472 = vmatprep.subr.mxu0 0.0
    %4473 = vmatpush1.msra.mxu0 0.0
    %4474 = vmatprep.subr.mxu0 0.0
    %4475 = vmatpush1.msra.mxu0 0.0
    %4476 = vmatprep.mubr.f32.mxu0 0.0
    %4477 = vmatmul.mubr.f32.gmra.mrb[0].mxu0 %v4386
    %v4478 = vpop.f32.mrb[0].mxu0
    %v4479 = vadd.f32 0.0, %v4478
    %v4480 = vpop.f32.mrb[0].mxu0
    %4481 = vmatprep.mubr.f32.mxu0 0.0
    %4482 = vmatmul.mubr.f32.gmra.mrb[0].mxu0 %v4389
    %v4483 = vpop.f32.mrb[0].mxu0
    %v4484 = vadd.f32 0.0, %v4483
    %v4485 = vpop.f32.mrb[0].mxu0
    %4486 = vmatprep.mubr.f32.mxu0 0.0
    %4487 = vmatmul.mubr.f32.gmra.mrb[0].mxu0 %v4392
    %v4488 = vpop.f32.mrb[0].mxu0
    %v4489 = vadd.f32 0.0, %v4488
    %v4490 = vpop.f32.mrb[0].mxu0
    %4491 = vmatprep.mubr.f32.mxu0 0.0
    %4492 = vmatmul.mubr.f32.gmra.mrb[0].mxu0 %v4395
    %v4493 = vpop.f32.mrb[0].mxu0
    %v4494 = vadd.f32 0.0, %v4493
    %v4495 = vpop.f32.mrb[0].mxu0
    %4496 = vmatprep.mubr.f32.mxu0 0.0
    %4497 = vmatmul.mubr.f32.gmra.mrb[0].mxu0 %v4398
    %v4498 = vpop.f32.mrb[0].mxu0
    %v4499 = vadd.f32 0.0, %v4498
    %v4500 = vpop.f32.mrb[0].mxu0
    %4501 = vmatprep.mubr.f32.mxu0 0.0
    %4502 = vmatmul.mubr.f32.gmra.mrb[0].mxu0 %v4401
    %v4503 = vpop.f32.mrb[0].mxu0
    %v4504 = vadd.f32 0.0, %v4503
    %v4505 = vpop.f32.mrb[0].mxu0
    %4506 = vmatprep.mubr.f32.mxu0 0.0
    %4507 = vmatmul.mubr.f32.gmra.mrb[0].mxu0 %v4404
    %v4508 = vpop.f32.mrb[0].mxu0
    %v4509 = vadd.f32 0.0, %v4508
    %v4510 = vpop.f32.mrb[0].mxu0
    %4511 = vmatprep.mubr.f32.mxu0 0.0
    %4512 = vmatmul.mubr.f32.gmra.mrb[0].mxu0 %v4407
    %v4513 = vpop.f32.mrb[0].mxu0
    %v4514 = vadd.f32 0.0, %v4513
    %v4515 = vpop.f32.mrb[0].mxu0
    %4516 = vdwg.mxu0
    %v4517 = vadd.f32 %v4229, %v4479
    %v4518 = vadd.f32 %v4230, %v4484
    %v4519 = vadd.f32 %v4231, %v4489
    %v4520 = vadd.f32 %v4232, %v4494
    %v4521 = vadd.f32 %v4233, %v4499
    %v4522 = vadd.f32 %v4234, %v4504
    %v4523 = vadd.f32 %v4235, %v4509
    %v4524 = vadd.f32 %v4236, %v4514
    %v4525 = vld [vmem:[%s2245] sm:$0xff]
    %v4526 = vld [vmem:[%s2245 + $0x8] sm:$0xff]
    %v4527 = vld [vmem:[%s2245 + $0x10] sm:$0xff]
    %v4528 = vld [vmem:[%s2245 + $0x18] sm:$0xff]
    %v4529 = vld [vmem:[%s2245 + $0x20] sm:$0xff]
    %v4530 = vld [vmem:[%s2245 + $0x28] sm:$0xff]
    %v4531 = vld [vmem:[%s2245 + $0x30] sm:$0xff]
    %v4532 = vld [vmem:[%s2245 + $0x38] sm:$0xff]
    %v4534 = vsel %vm1258, %v4525, 0
    %v4537 = vsel %vm1258, %v4526, 0
    %v4540 = vsel %vm1258, %v4527, 0
    %v4543 = vsel %vm1258, %v4528, 0
    %v4546 = vsel %vm1258, %v4529, 0
    %v4549 = vsel %vm1258, %v4530, 0
    %v4552 = vsel %vm1258, %v4531, 0
    %v4555 = vsel %vm1258, %v4532, 0
    %4557 = vmatprep.subr.mxu0 0.0
    %4558 = vmatpush1.msra.mxu0 %v4374
    %4559 = vmatprep.subr.mxu0 0.0
    %4560 = vmatpush1.msra.mxu0 0.0
    %4561 = vmatprep.subr.mxu0 0.0
    %4562 = vmatpush1.msra.mxu0 0.0
    %4563 = vmatprep.subr.mxu0 0.0
    %4564 = vmatpush1.msra.mxu0 0.0
    %4565 = vmatprep.subr.mxu0 0.0
    %4566 = vmatpush1.msra.mxu0 0.0
    %4567 = vmatprep.subr.mxu0 0.0
    %4568 = vmatpush1.msra.mxu0 0.0
    %4569 = vmatprep.subr.mxu0 0.0
    %4570 = vmatpush1.msra.mxu0 0.0
    %4571 = vmatprep.subr.mxu0 0.0
    %4572 = vmatpush1.msra.mxu0 0.0
    %4573 = vmatprep.subr.mxu0 0.0
    %4574 = vmatpush1.msra.mxu0 0.0
    %4575 = vmatprep.subr.mxu0 0.0
    %4576 = vmatpush1.msra.mxu0 0.0
    %4577 = vmatprep.subr.mxu0 0.0
    %4578 = vmatpush1.msra.mxu0 0.0
    %4579 = vmatprep.subr.mxu0 0.0
    %4580 = vmatpush1.msra.mxu0 0.0
    %4581 = vmatprep.subr.mxu0 0.0
    %4582 = vmatpush1.msra.mxu0 0.0
    %4583 = vmatprep.subr.mxu0 0.0
    %4584 = vmatpush1.msra.mxu0 0.0
    %4585 = vmatprep.subr.mxu0 0.0
    %4586 = vmatpush1.msra.mxu0 0.0
    %4587 = vmatprep.subr.mxu0 0.0
    %4588 = vmatpush1.msra.mxu0 0.0
    %4589 = vmatprep.subr.mxu0 0.0
    %4590 = vmatpush1.msra.mxu0 0.0
    %4591 = vmatprep.subr.mxu0 0.0
    %4592 = vmatpush1.msra.mxu0 0.0
    %4593 = vmatprep.subr.mxu0 0.0
    %4594 = vmatpush1.msra.mxu0 0.0
    %4595 = vmatprep.subr.mxu0 0.0
    %4596 = vmatpush1.msra.mxu0 0.0
    %4597 = vmatprep.subr.mxu0 0.0
    %4598 = vmatpush1.msra.mxu0 0.0
    %4599 = vmatprep.subr.mxu0 0.0
    %4600 = vmatpush1.msra.mxu0 0.0
    %4601 = vmatprep.subr.mxu0 0.0
    %4602 = vmatpush1.msra.mxu0 0.0
    %4603 = vmatprep.subr.mxu0 0.0
    %4604 = vmatpush1.msra.mxu0 0.0
    %4605 = vmatprep.subr.mxu0 0.0
    %4606 = vmatpush1.msra.mxu0 0.0
    %4607 = vmatprep.subr.mxu0 0.0
    %4608 = vmatpush1.msra.mxu0 0.0
    %4609 = vmatprep.subr.mxu0 0.0
    %4610 = vmatpush1.msra.mxu0 0.0
    %4611 = vmatprep.subr.mxu0 0.0
    %4612 = vmatpush1.msra.mxu0 0.0
    %4613 = vmatprep.subr.mxu0 0.0
    %4614 = vmatpush1.msra.mxu0 0.0
    %4615 = vmatprep.subr.mxu0 0.0
    %4616 = vmatpush1.msra.mxu0 0.0
    %4617 = vmatprep.subr.mxu0 0.0
    %4618 = vmatpush1.msra.mxu0 0.0
    %4619 = vmatprep.subr.mxu0 0.0
    %4620 = vmatpush1.msra.mxu0 0.0
    %4621 = vmatprep.mubr.f32.mxu0 0.0
    %4622 = vmatmul.mubr.f32.gmra.mrb[0].mxu0 %v4534
    %v4623 = vpop.f32.mrb[0].mxu0
    %v4624 = vadd.f32 0.0, %v4623
    %v4625 = vpop.f32.mrb[0].mxu0
    %4626 = vmatprep.mubr.f32.mxu0 0.0
    %4627 = vmatmul.mubr.f32.gmra.mrb[0].mxu0 %v4537
    %v4628 = vpop.f32.mrb[0].mxu0
    %v4629 = vadd.f32 0.0, %v4628
    %v4630 = vpop.f32.mrb[0].mxu0
    %4631 = vmatprep.mubr.f32.mxu0 0.0
    %4632 = vmatmul.mubr.f32.gmra.mrb[0].mxu0 %v4540
    %v4633 = vpop.f32.mrb[0].mxu0
    %v4634 = vadd.f32 0.0, %v4633
    %v4635 = vpop.f32.mrb[0].mxu0
    %4636 = vmatprep.mubr.f32.mxu0 0.0
    %4637 = vmatmul.mubr.f32.gmra.mrb[0].mxu0 %v4543
    %v4638 = vpop.f32.mrb[0].mxu0
    %v4639 = vadd.f32 0.0, %v4638
    %v4640 = vpop.f32.mrb[0].mxu0
    %4641 = vmatprep.mubr.f32.mxu0 0.0
    %4642 = vmatmul.mubr.f32.gmra.mrb[0].mxu0 %v4546
    %v4643 = vpop.f32.mrb[0].mxu0
    %v4644 = vadd.f32 0.0, %v4643
    %v4645 = vpop.f32.mrb[0].mxu0
    %4646 = vmatprep.mubr.f32.mxu0 0.0
    %4647 = vmatmul.mubr.f32.gmra.mrb[0].mxu0 %v4549
    %v4648 = vpop.f32.mrb[0].mxu0
    %v4649 = vadd.f32 0.0, %v4648
    %v4650 = vpop.f32.mrb[0].mxu0
    %4651 = vmatprep.mubr.f32.mxu0 0.0
    %4652 = vmatmul.mubr.f32.gmra.mrb[0].mxu0 %v4552
    %v4653 = vpop.f32.mrb[0].mxu0
    %v4654 = vadd.f32 0.0, %v4653
    %v4655 = vpop.f32.mrb[0].mxu0
    %4656 = vmatprep.mubr.f32.mxu0 0.0
    %4657 = vmatmul.mubr.f32.gmra.mrb[0].mxu0 %v4555
    %v4658 = vpop.f32.mrb[0].mxu0
    %v4659 = vadd.f32 0.0, %v4658
    %v4660 = vpop.f32.mrb[0].mxu0
    %4661 = vdwg.mxu0
    %v4662 = vadd.f32 %v4517, %v4624
    %v4663 = vadd.f32 %v4518, %v4629
    %v4664 = vadd.f32 %v4519, %v4634
    %v4665 = vadd.f32 %v4520, %v4639
    %v4666 = vadd.f32 %v4521, %v4644
    %v4667 = vadd.f32 %v4522, %v4649
    %v4668 = vadd.f32 %v4523, %v4654
    %v4669 = vadd.f32 %v4524, %v4659
    %v4670 = vmul.f32 %v4662, %v994
    %v4671 = vmul.f32 %v4663, %v998
    %v4672 = vmul.f32 %v4664, %v1002
    %v4673 = vmul.f32 %v4665, %v1006
    %v4674 = vmul.f32 %v4666, %v1010
    %v4675 = vmul.f32 %v4667, %v1014
    %v4676 = vmul.f32 %v4668, %v1018
    %v4677 = vmul.f32 %v4669, %v1022
    %v4678 = vsel %vm97, %v4670, 0.0
    %v4679 = vsel %vm97, %v4671, 0.0
    %v4680 = vadd.f32 %v4678, %v4679
    %v4681 = vsel %vm97, %v4672, 0.0
    %v4682 = vadd.f32 %v4680, %v4681
    %v4683 = vsel %vm97, %v4673, 0.0
    %v4684 = vadd.f32 %v4682, %v4683
    %v4685 = vsel %vm97, %v4674, 0.0
    %v4686 = vadd.f32 %v4684, %v4685
    %v4687 = vsel %vm97, %v4675, 0.0
    %v4688 = vadd.f32 %v4686, %v4687
    %v4689 = vsel %vm97, %v4676, 0.0
    %v4690 = vadd.f32 %v4688, %v4689
    %v4691 = vsel %vm97, %v4677, 0.0
    %v4692 = vadd.f32 %v4690, %v4691
    %v4693 = vadd.f32 %v4692, %v92
    %v4694 = vtanh.pop %v4693
    %v4695 = vmul.f32 %v3372, %v3374
    %v4696 = vsub.f32 1.0, %v3372
    %v4697 = vmul.f32 %v4696, %v4694
    %v4698 = vadd.f32 %v4695, %v4697
    %s4699 = scalar_lea.vmem [#allocation2], 8
    %4700 = vst.msk [vmem:[%s4699] sm:$0xff] %vm97, %v4698
    // Predicated region
    $region46: #{zfcshgcn_cnn_cell_forward.1} parent=1 // pred_check
      _
    $region47: #{zfcshgcn_cnn_cell_forward.1} parent=1 // pred_check_branch
      %4702 = sbr.rel (0) target = $region49
    $region48: #{zfcshgcn_cnn_cell_forward.1} parent=1 // pred_region
      %s4704 = ssub.s32 256, 256
      %4705 = vsyncadd [#allocation3], %s4704
      %s4706 = sshll.u32 [#allocation2], 4
      %s4707 = int_to_ptr.vmem [resolvable:$true] %s4706
      %4712 = dma.vmem_to_hbm [thread:$0]  %s4707, 256, %s11, [#allocation3], 128, 128, 8
    $region49: #{zfcshgcn_cnn_cell_forward.1} parent=1 // pred_fallthru
      _
    // Predicated region
    $region50: #{zfcshgcn_cnn_cell_forward.1} parent=1 // pred_check
      _
    $region51: #{zfcshgcn_cnn_cell_forward.1} parent=1 // pred_check_branch
      %4714 = sbr.rel (0) target = $region53
    $region52: #{zfcshgcn_cnn_cell_forward.1} parent=1 // pred_region
      %4715 = dma.done [#allocation3], 256
    $region53: #{zfcshgcn_cnn_cell_forward.1} parent=1 // pred_fallthru
      _
    %4716 = vsyncpa [#allocation3], 1

</llo_original>
